<compile_context>
chip_gen: v7x
topology: tpu7x:2x2x1
jax: 0.10.0
libtpu: 0.0.40
codegen_flags: <defaults>
</compile_context>

<pallas_src>
import functools
import math

import jax
import jax.numpy as jnp
from jax.experimental import pallas as pl
from jax.experimental.pallas import tpu as pltpu

# ------------------------------------------------------------------ configs --
VISION_CFG = dict(hidden_size=32, intermediate_size=64, num_hidden_layers=2,
                  num_attention_heads=4, num_channels=3, image_size=16,
                  patch_size=8, layer_norm_eps=1e-6)
TEXT_CFG = dict(vocab_size=128, hidden_size=32, intermediate_size=64,
                num_hidden_layers=2, num_attention_heads=4,
                num_key_value_heads=2, head_dim=16,
                max_position_embeddings=128, rms_norm_eps=1e-6,
                rope_theta=10000.0)
PALI_CFG = dict(image_token_index=127, vocab_size=128, projection_dim=32,
                hidden_size=32, pad_token_id=None)
NUM_IMAGE_TOKENS = (VISION_CFG['image_size'] // VISION_CFG['patch_size']) ** 2

_VMEM_LIMIT = 32 * 1024 * 1024   # <= half of v7x's 64 MiB per-TC VMEM


# ------------------------------------------------------------------ helpers --
def _gelu_tanh(x):
    c = math.sqrt(2.0 / math.pi)
    return 0.5 * x * (1.0 + jnp.tanh(c * (x + 0.044715 * x * x * x)))


def _row_tile(M, target=256):
    """Row tile that divides M exactly (never pads inside jit); prefers >=2
    tiles so both v7x TensorCores get work on the 'parallel' row axis."""
    if M <= 8:
        return M
    if M <= target:
        half = M // 2
        if M % 2 == 0 and half % 8 == 0:
            return half
        return M
    t = (target // 8) * 8
    while t > 8 and M % t:
        t -= 8
    return t if M % t == 0 else M


def _col_tile(N, target=512):
    """Column / contraction tile that divides N exactly; full extent when N
    fits in one block (the (8,128) rule is satisfied by full-extent blocks)."""
    if N <= target:
        return N
    t = (target // 128) * 128
    while t > 128 and N % t:
        t -= 128
    return t if N % t == 0 else N


def _params(sem):
    return pltpu.CompilerParams(dimension_semantics=sem,
                                vmem_limit_bytes=_VMEM_LIMIT)


# ------------------------------------------------------------ plain linear ---
def _linear_kernel(*refs, has_bias):
    if has_bias:
        x_ref, w_ref, b_ref, o_ref = refs
    else:
        x_ref, w_ref, o_ref = refs
    out = jnp.dot(x_ref[...].astype(jnp.bfloat16), w_ref[...],
                  preferred_element_type=jnp.float32)
    if has_bias:
        out = out + b_ref[...]
    o_ref[...] = out.astype(o_ref.dtype)


def _linear_acc_kernel(*refs, has_bias):
    if has_bias:
        x_ref, w_ref, b_ref, o_ref, acc_ref = refs
    else:
        x_ref, w_ref, o_ref, acc_ref = refs

    @pl.when(pl.program_id(2) == 0)
    def _():
        acc_ref[...] = jnp.zeros_like(acc_ref)

    acc_ref[...] += jnp.dot(x_ref[...].astype(jnp.bfloat16), w_ref[...],
                            preferred_element_type=jnp.float32)

    @pl.when(pl.program_id(2) == pl.num_programs(2) - 1)
    def _():
        out = acc_ref[...]
        if has_bias:
            out = out + b_ref[...]
        o_ref[...] = out.astype(o_ref.dtype)


def tiled_linear(x, w, b=None, *, out_dtype=jnp.float32,
                 tm=256, tn=512, tk=512):
    """x:[M,K] @ w:[K,N](bf16) (+ b:[1,N]).  Single-K fast path skips the fp32
    accumulator; the K-tiled accumulator path is used only when K > tk."""
    M, K = x.shape
    N = w.shape[1]
    tm = _row_tile(M, tm)
    tn = _col_tile(N, tn)
    tk = _col_tile(K, tk)
    has_bias = b is not None
    args = [x, w] + ([b] if has_bias else [])
    if tk == K:
        in_specs = [pl.BlockSpec((tm, K), lambda i, j: (i, 0)),
                    pl.BlockSpec((K, tn), lambda i, j: (0, j))]
        if has_bias:
            in_specs.append(pl.BlockSpec((1, tn), lambda i, j: (0, j)))
        return pl.pallas_call(
            functools.partial(_linear_kernel, has_bias=has_bias),
            grid=(M // tm, N // tn),
            in_specs=in_specs,
            out_specs=pl.BlockSpec((tm, tn), lambda i, j: (i, j)),
            out_shape=jax.ShapeDtypeStruct((M, N), out_dtype),
            compiler_params=_params(("parallel", "parallel")),
        )(*args)
    in_specs = [pl.BlockSpec((tm, tk), lambda i, j, k: (i, k)),
                pl.BlockSpec((tk, tn), lambda i, j, k: (k, j))]
    if has_bias:
        in_specs.append(pl.BlockSpec((1, tn), lambda i, j, k: (0, j)))
    return pl.pallas_call(
        functools.partial(_linear_acc_kernel, has_bias=has_bias),
        grid=(M // tm, N // tn, K // tk),
        in_specs=in_specs,
        out_specs=pl.BlockSpec((tm, tn), lambda i, j, k: (i, j)),
        out_shape=jax.ShapeDtypeStruct((M, N), out_dtype),
        scratch_shapes=[pltpu.VMEM((tm, tn), jnp.float32)],
        compiler_params=_params(("parallel", "parallel", "arbitrary")),
    )(*args)


# ------------------------------------------- fused RMSNorm + linear ----------
def _rms_linear_kernel(*refs, eps, has_bias):
    if has_bias:
        x_ref, nw_ref, w_ref, b_ref, o_ref, xn_ref = refs
    else:
        x_ref, nw_ref, w_ref, o_ref, xn_ref = refs

    # Normalize once per row block (cached bf16 in VMEM), reuse for every
    # output-column tile.
    @pl.when(pl.program_id(1) == 0)
    def _():
        x = x_ref[...].astype(jnp.float32)
        var = jnp.mean(x * x, axis=-1, keepdims=True)
        xn_ref[...] = (x * jax.lax.rsqrt(var + eps)
                       * (1.0 + nw_ref[...])).astype(jnp.bfloat16)

    out = jnp.dot(xn_ref[...], w_ref[...], preferred_element_type=jnp.float32)
    if has_bias:
        out = out + b_ref[...]
    o_ref[...] = out.astype(o_ref.dtype)


def rms_linear(x, norm_w, w, b=None, *, eps, out_dtype=jnp.float32,
               tm=256, tn=512):
    M, D = x.shape
    N = w.shape[1]
    tm = _row_tile(M, tm)
    tn = _col_tile(N, tn)
    has_bias = b is not None
    args = [x, norm_w, w] + ([b] if has_bias else [])
    in_specs = [pl.BlockSpec((tm, D), lambda i, j: (i, 0)),
                pl.BlockSpec((1, D), lambda i, j: (0, 0)),
                pl.BlockSpec((D, tn), lambda i, j: (0, j))]
    if has_bias:
        in_specs.append(pl.BlockSpec((1, tn), lambda i, j: (0, j)))
    return pl.pallas_call(
        functools.partial(_rms_linear_kernel, eps=eps, has_bias=has_bias),
        grid=(M // tm, N // tn),
        in_specs=in_specs,
        out_specs=pl.BlockSpec((tm, tn), lambda i, j: (i, j)),
        out_shape=jax.ShapeDtypeStruct((M, N), out_dtype),
        scratch_shapes=[pltpu.VMEM((tm, D), jnp.bfloat16)],
        compiler_params=_params(("parallel", "arbitrary")),
    )(*args)


# ------------------------------------------- fused LayerNorm + linear --------
def _ln_linear_kernel(x_ref, g_ref, be_ref, w_ref, b_ref, o_ref, xn_ref, *, eps):
    @pl.when(pl.program_id(1) == 0)
    def _():
        x = x_ref[...].astype(jnp.float32)
        mu = jnp.mean(x, axis=-1, keepdims=True)
        var = jnp.mean((x - mu) ** 2, axis=-1, keepdims=True)
        xn_ref[...] = ((x - mu) * jax.lax.rsqrt(var + eps) * g_ref[...]
                       + be_ref[...]).astype(jnp.bfloat16)

    o_ref[...] = (jnp.dot(xn_ref[...], w_ref[...],
                          preferred_element_type=jnp.float32)
                  + b_ref[...]).astype(o_ref.dtype)


def ln_linear(x, g, be, w, b, *, eps, out_dtype=jnp.float32, tm=256, tn=512):
    M, D = x.shape
    N = w.shape[1]
    tm = _row_tile(M, tm)
    tn = _col_tile(N, tn)
    return pl.pallas_call(
        functools.partial(_ln_linear_kernel, eps=eps),
        grid=(M // tm, N // tn),
        in_specs=[pl.BlockSpec((tm, D), lambda i, j: (i, 0)),
                  pl.BlockSpec((1, D), lambda i, j: (0, 0)),
                  pl.BlockSpec((1, D), lambda i, j: (0, 0)),
                  pl.BlockSpec((D, tn), lambda i, j: (0, j)),
                  pl.BlockSpec((1, tn), lambda i, j: (0, j))],
        out_specs=pl.BlockSpec((tm, tn), lambda i, j: (i, j)),
        out_shape=jax.ShapeDtypeStruct((M, N), out_dtype),
        scratch_shapes=[pltpu.VMEM((tm, D), jnp.bfloat16)],
        compiler_params=_params(("parallel", "arbitrary")),
    )(x, g, be, w, b)


# -------------------- fused attention + o_proj (+bias) + residual ------------
def _fused_attn_kernel(*refs, nh, kvh, hd, scale, has_rope, has_obias):
    i = 0
    qkv_ref = refs[i]; i += 1
    if has_rope:
        qcs_ref, kcs_ref = refs[i], refs[i + 1]; i += 2
    ow_ref = refs[i]; i += 1
    if has_obias:
        ob_ref = refs[i]; i += 1
    res_ref, o_ref = refs[i], refs[i + 1]

    nq = nh * hd
    nk = kvh * hd
    n_rep = nh // kvh
    qkv = qkv_ref[0].astype(jnp.float32)              # (S, nq + 2*nk)
    if has_rope:
        qcs = qcs_ref[0]                               # (S, hd), scale folded in
        kcs = kcs_ref[0]

    heads = []
    for g in range(kvh):                               # GQA: K/V shared per group
        k = qkv[:, nq + g * hd: nq + (g + 1) * hd]
        v = qkv[:, nq + nk + g * hd: nq + nk + (g + 1) * hd]
        if has_rope:
            k = k * kcs                                # reference rotate_half == id
        kb = k.astype(jnp.bfloat16)
        vb = v.astype(jnp.bfloat16)
        for r in range(n_rep):
            hh = g * n_rep + r
            q = qkv[:, hh * hd:(hh + 1) * hd]
            q = q * qcs if has_rope else q * jnp.float32(scale)
            # Prefill additive mask is identically zero in the reference.
            s = jax.lax.dot_general(q.astype(jnp.bfloat16), kb,
                                    (((1,), (1,)), ((), ())),
                                    preferred_element_type=jnp.float32)
            s = s - jnp.max(s, axis=-1, keepdims=True)
            p = jnp.exp(s)
            p = p * pl.reciprocal(jnp.sum(p, axis=-1, keepdims=True), approx=True)
            heads.append(jnp.dot(p.astype(jnp.bfloat16), vb,
                                 preferred_element_type=jnp.float32))
    a = jnp.concatenate(heads, axis=-1).astype(jnp.bfloat16)      # (S, nq)
    out = jnp.dot(a, ow_ref[...], preferred_element_type=jnp.float32)
    if has_obias:
        out = out + ob_ref[...]
    o_ref[0] = out + res_ref[0]


def fused_attention(qkv, o_w, residual, *, nh, kvh, hd, scale,
                    qcs=None, kcs=None, o_b=None):
    """qkv:[B,S,(nh+2kvh)*hd] bf16, residual:[B,S,D] f32 -> [B,S,D] f32.
    o_proj (+bias) and the residual add are fused so the lane-sparse per-head
    (S, hd) slabs never round-trip HBM.
    TODO(synk): add flash-style query/KV tiling with online softmax for
    production prefill lengths; a single (S,S) score block is optimal at S=8."""
    B, S, QKV = qkv.shape
    D = o_w.shape[1]
    has_rope = qcs is not None
    has_obias = o_b is not None
    args = [qkv]
    in_specs = [pl.BlockSpec((1, S, QKV), lambda b: (b, 0, 0))]
    if has_rope:
        args += [qcs, kcs]
        in_specs += [pl.BlockSpec((1, S, hd), lambda b: (b, 0, 0)),
                     pl.BlockSpec((1, S, hd), lambda b: (b, 0, 0))]
    args.append(o_w)
    in_specs.append(pl.BlockSpec((o_w.shape[0], D), lambda b: (0, 0)))
    if has_obias:
        args.append(o_b)
        in_specs.append(pl.BlockSpec((1, D), lambda b: (0, 0)))
    args.append(residual)
    in_specs.append(pl.BlockSpec((1, S, D), lambda b: (b, 0, 0)))
    return pl.pallas_call(
        functools.partial(_fused_attn_kernel, nh=nh, kvh=kvh, hd=hd, scale=scale,
                          has_rope=has_rope, has_obias=has_obias),
        grid=(B,),
        in_specs=in_specs,
        out_specs=pl.BlockSpec((1, S, D), lambda b: (b, 0, 0)),
        out_shape=jax.ShapeDtypeStruct((B, S, D), jnp.float32),
        compiler_params=_params(("parallel",)),
    )(*args)


# ------------------ fused RMSNorm + gated MLP + residual (Gemma) -------------
def _rms_mlp_kernel(x_ref, nw_ref, gu_ref, wd_ref, o_ref, *, eps, inter):
    x = x_ref[...].astype(jnp.float32)
    var = jnp.mean(x * x, axis=-1, keepdims=True)
    xn = (x * jax.lax.rsqrt(var + eps) * (1.0 + nw_ref[...])).astype(jnp.bfloat16)
    gu = jnp.dot(xn, gu_ref[...], preferred_element_type=jnp.float32)  # (tm, 2I)
    h = (_gelu_tanh(gu[:, :inter]) * gu[:, inter:]).astype(jnp.bfloat16)
    o_ref[...] = x + jnp.dot(h, wd_ref[...], preferred_element_type=jnp.float32)


def rms_mlp_residual(x, norm_w, gu_w, down_w, *, eps, tm=256):
    M, D = x.shape
    I = down_w.shape[0]
    tm = _row_tile(M, tm)
    # gate|up concatenated at init into one [D, 2I] weight -> one wider MXU push.
    # TODO(synk): tile the intermediate axis with an fp32 accumulator for
    # production-size MLPs; I=64 here so a single full-extent block is optimal.
    return pl.pallas_call(
        functools.partial(_rms_mlp_kernel, eps=eps, inter=I),
        grid=(M // tm,),
        in_specs=[pl.BlockSpec((tm, D), lambda i: (i, 0)),
                  pl.BlockSpec((1, D), lambda i: (0, 0)),
                  pl.BlockSpec((D, 2 * I), lambda i: (0, 0)),
                  pl.BlockSpec((I, D), lambda i: (0, 0))],
        out_specs=pl.BlockSpec((tm, D), lambda i: (i, 0)),
        out_shape=jax.ShapeDtypeStruct((M, D), jnp.float32),
        compiler_params=_params(("parallel",)),
    )(x, norm_w, gu_w, down_w)


# ------------------ fused LayerNorm + MLP + residual (SigLIP) ----------------
def _ln_mlp_kernel(x_ref, g_ref, be_ref, w1_ref, b1_ref, w2_ref, b2_ref,
                   o_ref, *, eps):
    x = x_ref[...].astype(jnp.float32)
    mu = jnp.mean(x, axis=-1, keepdims=True)
    var = jnp.mean((x - mu) ** 2, axis=-1, keepdims=True)
    xn = ((x - mu) * jax.lax.rsqrt(var + eps) * g_ref[...]
          + be_ref[...]).astype(jnp.bfloat16)
    h = jnp.dot(xn, w1_ref[...], preferred_element_type=jnp.float32) + b1_ref[...]
    h = _gelu_tanh(h).astype(jnp.bfloat16)
    o_ref[...] = (x + b2_ref[...]
                  + jnp.dot(h, w2_ref[...], preferred_element_type=jnp.float32))


def ln_mlp_residual(x, g, be, w1, b1, w2, b2, *, eps, tm=256):
    M, D = x.shape
    I = w1.shape[1]
    tm = _row_tile(M, tm)
    return pl.pallas_call(
        functools.partial(_ln_mlp_kernel, eps=eps),
        grid=(M // tm,),
        in_specs=[pl.BlockSpec((tm, D), lambda i: (i, 0)),
                  pl.BlockSpec((1, D), lambda i: (0, 0)),
                  pl.BlockSpec((1, D), lambda i: (0, 0)),
                  pl.BlockSpec((D, I), lambda i: (0, 0)),
                  pl.BlockSpec((1, I), lambda i: (0, 0)),
                  pl.BlockSpec((I, D), lambda i: (0, 0)),
                  pl.BlockSpec((1, D), lambda i: (0, 0))],
        out_specs=pl.BlockSpec((tm, D), lambda i: (i, 0)),
        out_shape=jax.ShapeDtypeStruct((M, D), jnp.float32),
        compiler_params=_params(("parallel",)),
    )(x, g, be, w1, b1, w2, b2)


# -------------------------------------------------------------- model logic --
def siglip_vision_tower(vp, pixel_values, cfg):
    B, C, Himg, Wimg = pixel_values.shape
    p = cfg['patch_size']
    vd = cfg['hidden_size']
    nh = cfg['num_attention_heads']
    hd = vd // nh
    eps = cfg['layer_norm_eps']
    Hp, Wp = Himg // p, Wimg // p
    P = Hp * Wp
    # Conv2d(kernel=patch, stride=patch) == patch extraction + matmul; patches
    # flattened in (C, kh, kw) order to match torch conv weights.
    patches = pixel_values.reshape(B, C, Hp, p, Wp, p)
    patches = patches.transpose(0, 2, 4, 1, 3, 5).reshape(B * P, C * p * p)
    x = tiled_linear(patches, vp['patch_w'], vp['patch_b'])          # [B*P, vd]
    x = (x.reshape(B, P, vd) + vp['pos_emb'][None]).reshape(B * P, vd)
    for lp in vp['layers']:
        # LayerNorm + fused QKV projection (one kernel), bf16 activation out.
        qkv = ln_linear(x, lp['ln1_g'], lp['ln1_b'], lp['qkv_w'], lp['qkv_b'],
                        eps=eps, out_dtype=jnp.bfloat16)             # [B*P, 3*vd]
        # attention + o_proj + bias + residual fused; no transposes around it.
        x = fused_attention(qkv.reshape(B, P, 3 * vd), lp['o_w'],
                            x.reshape(B, P, vd), nh=nh, kvh=nh, hd=hd,
                            scale=hd ** -0.5, o_b=lp['o_b']).reshape(B * P, vd)
        # LayerNorm + MLP + residual fused.
        x = ln_mlp_residual(x, lp['ln2_g'], lp['ln2_b'], lp['fc1_w'], lp['fc1_b'],
                            lp['fc2_w'], lp['fc2_b'], eps=eps)
    return x   # [B*P, vd]; post-LayerNorm fused into the multimodal projector


def gemma_rope_cos_sin(position_ids, head_dim, theta):
    inv_freq = 1.0 / (theta ** (jnp.arange(0, head_dim, 2, dtype=jnp.float32)
                                / head_dim))
    freqs = position_ids.astype(jnp.float32)[:, :, None] * inv_freq[None, None, :]
    emb = jnp.concatenate([freqs, freqs], axis=-1)     # [B, S, head_dim]
    return jnp.cos(emb), jnp.sin(emb)


def gemma_lm(tp, inputs_embeds, position_ids, cfg):
    B, S, D = inputs_embeds.shape
    nh, kvh, hd = (cfg['num_attention_heads'], cfg['num_key_value_heads'],
                   cfg['head_dim'])
    eps = cfg['rms_norm_eps']
    h = (inputs_embeds * jnp.float32(D ** 0.5)).reshape(B * S, D)
    # Reference rotate_half is cat(x1, x2) == identity, so RoPE degenerates to
    # x*(cos+sin); the 1/sqrt(head_dim) attention scale is folded into qcs.
    cos, sin = gemma_rope_cos_sin(position_ids, hd, cfg['rope_theta'])
    cs = cos + sin                                      # [B, S, hd]
    qcs = cs * jnp.float32(1.0 / math.sqrt(hd))
    for lp in tp['layers']:
        # RMSNorm + fused QKV projection (one kernel), bf16 activation out.
        qkv = rms_linear(h, lp['in_norm'], lp['qkv_w'], eps=eps,
                         out_dtype=jnp.bfloat16)        # [B*S, (nh+2kvh)*hd]
        # GQA attention + o_proj + residual fused (K/V shared per group in-kernel).
        h = fused_attention(qkv.reshape(B, S, -1), lp['o_w'],
                            h.reshape(B, S, D), nh=nh, kvh=kvh, hd=hd,
                            scale=1.0, qcs=qcs, kcs=cs).reshape(B * S, D)
        # RMSNorm + gated MLP (gate|up fused weight) + residual fused.
        h = rms_mlp_residual(h, lp['post_norm'], lp['gu_w'], lp['down_w'], eps=eps)
    # final RMSNorm fused into the lm_head.
    logits = rms_linear(h, tp['final_norm'], tp['lm_head_w'],
                        b=tp['lm_head_b'], eps=eps)
    return logits.reshape(B, S, -1)


def paligemma_forward(params, input_ids, pixel_values, attention_mask):
    B, S = input_ids.shape
    D = TEXT_CFG['hidden_size']
    P = NUM_IMAGE_TOKENS
    image_token = PALI_CFG['image_token_index']
    pad_id = -1   # pad_token_id is None -> -1

    # 1. token embeddings (gather; glue)
    inputs_embeds = jnp.take(params['text']['embed'], input_ids, axis=0)
    # 2. vision tower; post-LayerNorm fused into the multimodal projector
    img = siglip_vision_tower(params['vision'],
                              pixel_values.astype(jnp.float32), VISION_CFG)
    proj = ln_linear(img, params['vision']['post_g'], params['vision']['post_b'],
                     params['mm_w'], params['mm_b'],
                     eps=VISION_CFG['layer_norm_eps']).reshape(B, P, D)
    # 3. merge image / text / pad embeddings
    scaled_img = proj / jnp.float32(PALI_CFG['hidden_size'] ** 0.5)
    image_mask = input_ids == image_token
    text_mask = (input_ids != image_token) & (input_ids != pad_id)
    pad_mask = input_ids == pad_id
    combined = jnp.where(text_mask[..., None], inputs_embeds, 0.0)
    # TODO(synk): masked_scatter equivalent assumes image tokens occupy the
    # leading NUM_IMAGE_TOKENS slots (standard PaliGemma prompt layout).
    img_padded = jnp.pad(scaled_img, ((0, 0), (0, S - P), (0, 0)))
    combined = jnp.where(image_mask[..., None], img_padded, combined)
    combined = jnp.where(pad_mask[..., None], 0.0, combined)
    # prefill (kv_cache None): reference additive mask is all zeros -> omitted.
    position_ids = jnp.cumsum(attention_mask, axis=-1)
    position_ids = jnp.where(attention_mask == 0, 1, position_ids)
    # 4. language model + lm_head
    return gemma_lm(params['text'], combined, position_ids, TEXT_CFG)


# -------------------------------------------------------- deterministic init --
def init_params(seed=0):
    """All weights pre-shaped / pre-cast once here: matmul weights bf16,
    biases & norm weights as (1, dim) f32 -> nothing is padded, reshaped, or
    cast inside the jitted forward."""
    key = jax.random.PRNGKey(seed)

    def nxt():
        nonlocal key
        key, sub = jax.random.split(key)
        return sub

    def wgt(shape, scale=0.02):
        return (scale * jax.random.normal(nxt(), shape)).astype(jnp.bfloat16)

    def f32(shape, scale=0.02):
        return (scale * jax.random.normal(nxt(), shape)).astype(jnp.float32)

    def zeros(n):
        return jnp.zeros((1, n), jnp.float32)

    def ones(n):
        return jnp.ones((1, n), jnp.float32)

    vd, vi = VISION_CFG['hidden_size'], VISION_CFG['intermediate_size']
    C, p = VISION_CFG['num_channels'], VISION_CFG['patch_size']
    P = NUM_IMAGE_TOKENS
    vision = dict(patch_w=wgt((C * p * p, vd)), patch_b=zeros(vd),
                  pos_emb=f32((P, vd)),
                  post_g=ones(vd), post_b=zeros(vd), layers=[])
    for _ in range(VISION_CFG['num_hidden_layers']):
        vision['layers'].append(dict(
            ln1_g=ones(vd), ln1_b=zeros(vd),
            qkv_w=wgt((vd, 3 * vd)), qkv_b=zeros(3 * vd),
            o_w=wgt((vd, vd)), o_b=zeros(vd),
            ln2_g=ones(vd), ln2_b=zeros(vd),
            fc1_w=wgt((vd, vi)), fc1_b=zeros(vi),
            fc2_w=wgt((vi, vd)), fc2_b=zeros(vd)))

    D, I = TEXT_CFG['hidden_size'], TEXT_CFG['intermediate_size']
    V = TEXT_CFG['vocab_size']
    nh, kvh, hd = (TEXT_CFG['num_attention_heads'],
                   TEXT_CFG['num_key_value_heads'], TEXT_CFG['head_dim'])
    text = dict(embed=f32((V, D), 1.0),
                final_norm=zeros(D),               # GemmaRMSNorm init: zeros
                lm_head_w=wgt((D, V)), lm_head_b=zeros(V),
                layers=[])
    for _ in range(TEXT_CFG['num_hidden_layers']):
        gate, up = wgt((D, I)), wgt((D, I))
        text['layers'].append(dict(
            in_norm=zeros(D),
            qkv_w=wgt((D, (nh + 2 * kvh) * hd)),   # fused q|k|v projection
            o_w=wgt((nh * hd, D)),
            post_norm=zeros(D),
            gu_w=jnp.concatenate([gate, up], axis=1),   # fused gate|up
            down_w=wgt((I, D))))

    return dict(vision=vision, text=text,
                mm_w=wgt((vd, PALI_CFG['projection_dim'])),
                mm_b=zeros(PALI_CFG['projection_dim']))


# ------------------------------------------------------------------ run it --
if __name__ == "__main__":
    params = init_params(seed=0)

    B, S = 2, 8
    P = NUM_IMAGE_TOKENS
    k_ids, k_pix = jax.random.split(jax.random.PRNGKey(0))
    text_ids = jax.random.randint(k_ids, (B, S - P), 1, 126, dtype=jnp.int32)
    input_ids = jnp.concatenate(
        [jnp.full((B, P), PALI_CFG['image_token_index'], jnp.int32), text_ids],
        axis=1)
    pixel_values = jax.random.normal(
        k_pix, (B, VISION_CFG['num_channels'],
                VISION_CFG['image_size'], VISION_CFG['image_size']),
        dtype=jnp.float32)
    attention_mask = jnp.ones((B, S), jnp.int32)

    fwd = jax.jit(paligemma_forward)
    logits = jax.block_until_ready(
        fwd(params, input_ids, pixel_values, attention_mask))

    assert logits.shape == (B, S, TEXT_CFG['vocab_size']), logits.shape
    assert logits.dtype == jnp.float32
    assert bool(jnp.all(jnp.isfinite(logits)))
    print("KERNEL_OK")
</pallas_src>

<mosaic_0001>
module attributes {stable_mosaic.version = 11 : i64} {
  func.func @_linear_kernel(%arg0: i32, %arg1: i32, %arg2: memref<8x192xf32, #tpu.memory_space<vmem>>, %arg3: memref<192x32xbf16, #tpu.memory_space<vmem>>, %arg4: memref<1x32xf32, #tpu.memory_space<vmem>>, %arg5: memref<8x32xf32, #tpu.memory_space<vmem>>) attributes {dimension_semantics = [#tpu.dimension_semantics<parallel>, #tpu.dimension_semantics<parallel>], iteration_bounds = array<i64: 1, 1>, scalar_prefetch = 0 : i64, scratch_operands = 0 : i64, tpu.core_type = #tpu.core_type<tc>, window_params = [{transform_indices = @transform_0, window_bounds = array<i64: 8, 192>}, {transform_indices = @transform_1, window_bounds = array<i64: 192, 32>}, {transform_indices = @transform_2, window_bounds = array<i64: 1, 32>}, {transform_indices = @transform_3, window_bounds = array<i64: 8, 32>}]} {
    %c0 = arith.constant 0 : index
    %c0_0 = arith.constant 0 : index
    %0 = vector.load %arg2[%c0, %c0_0] : memref<8x192xf32, #tpu.memory_space<vmem>>, vector<8x192xf32>
    %1 = arith.truncf %0 : vector<8x192xf32> to vector<8x192xbf16>
    %c0_1 = arith.constant 0 : index
    %c0_2 = arith.constant 0 : index
    %2 = vector.load %arg3[%c0_1, %c0_2] : memref<192x32xbf16, #tpu.memory_space<vmem>>, vector<192x32xbf16>
    %cst = arith.constant dense<0.000000e+00> : vector<8x32xf32>
    %3 = tpu.matmul %1, %2, %cst {dimension_numbers = #tpu.dot_dimension_numbers<[1], [0], [0], [1], [0, 0, 1, 1], [], []>} : vector<8x192xbf16>, vector<192x32xbf16>, vector<8x32xf32> -> vector<8x32xf32>
    %c0_3 = arith.constant 0 : index
    %c0_4 = arith.constant 0 : index
    %4 = vector.load %arg4[%c0_3, %c0_4] : memref<1x32xf32, #tpu.memory_space<vmem>>, vector<1x32xf32>
    %5 = vector.broadcast %4 : vector<1x32xf32> to vector<8x32xf32>
    %6 = arith.addf %3, %5 : vector<8x32xf32>
    %c0_5 = arith.constant 0 : index
    %c0_6 = arith.constant 0 : index
    %7 = vector.load %arg5[%c0_5, %c0_6] : memref<8x32xf32, #tpu.memory_space<vmem>>, vector<8x32xf32>
    tpu.vector_store %arg5[%c0_5, %c0_6], %6 {strides = array<i32>} : memref<8x32xf32, #tpu.memory_space<vmem>>, vector<8x32xf32>,
    return
  }
  func.func @transform_0(%arg0: i32, %arg1: i32) -> (i32, i32) {
    %c0_i32 = arith.constant 0 : i32
    %c0_i32_0 = arith.constant 0 : i32
    return %arg0, %c0_i32 : i32, i32
  }
  func.func @transform_1(%arg0: i32, %arg1: i32) -> (i32, i32) {
    %c0_i32 = arith.constant 0 : i32
    %c0_i32_0 = arith.constant 0 : i32
    return %c0_i32, %arg1 : i32, i32
  }
  func.func @transform_2(%arg0: i32, %arg1: i32) -> (i32, i32) {
    %c0_i32 = arith.constant 0 : i32
    %c0_i32_0 = arith.constant 0 : i32
    return %c0_i32, %arg1 : i32, i32
  }
  func.func @transform_3(%arg0: i32, %arg1: i32) -> (i32, i32) {
    %c0_i32 = arith.constant 0 : i32
    return %arg0, %arg1 : i32, i32
  }
}

module attributes {stable_mosaic.version = 11 : i64} {
  func.func @_ln_linear_kernel(%arg0: i32, %arg1: i32, %arg2: memref<8x32xf32, #tpu.memory_space<vmem>>, %arg3: memref<1x32xf32, #tpu.memory_space<vmem>>, %arg4: memref<1x32xf32, #tpu.memory_space<vmem>>, %arg5: memref<32x96xbf16, #tpu.memory_space<vmem>>, %arg6: memref<1x96xf32, #tpu.memory_space<vmem>>, %arg7: memref<8x96xbf16, #tpu.memory_space<vmem>>, %arg8: memref<8x32xbf16, #tpu.memory_space<vmem>>) attributes {dimension_semantics = [#tpu.dimension_semantics<parallel>, #tpu.dimension_semantics<arbitrary>], iteration_bounds = array<i64: 1, 1>, scalar_prefetch = 0 : i64, scratch_operands = 1 : i64, tpu.core_type = #tpu.core_type<tc>, window_params = [{transform_indices = @transform_0, window_bounds = array<i64: 8, 32>}, {pipeline_mode = #tpu.pipeline_mode<synchronous>, transform_indices = @transform_1, window_bounds = array<i64: 1, 32>}, {pipeline_mode = #tpu.pipeline_mode<synchronous>, transform_indices = @transform_2, window_bounds = array<i64: 1, 32>}, {transform_indices = @transform_3, window_bounds = array<i64: 32, 96>}, {transform_indices = @transform_4, window_bounds = array<i64: 1, 96>}, {transform_indices = @transform_5, window_bounds = array<i64: 8, 96>}]} {
    %c0_i32 = arith.constant 0 : i32
    %0 = arith.cmpi eq, %arg1, %c0_i32 : i32
    %1 = arith.extui %0 : i1 to i32
    %c0_i32_0 = arith.constant 0 : i32
    %2 = arith.cmpi ne, %1, %c0_i32_0 : i32
    scf.if %2 {
      %c0_8 = arith.constant 0 : index
      %c0_9 = arith.constant 0 : index
      %11 = vector.load %arg2[%c0_8, %c0_9] : memref<8x32xf32, #tpu.memory_space<vmem>>, vector<8x32xf32>
      %cst_10 = arith.constant dense<0.000000e+00> : vector<8xf32>
      %12 = vector.multi_reduction <add>, %11, %cst_10 [1] : vector<8x32xf32> to vector<8xf32>
      %13 = vector.shape_cast %12 : vector<8xf32> to vector<8x1xf32>
      %cst_11 = arith.constant 3.200000e+01 : f32
      %14 = vector.broadcast %cst_11 : f32 to vector<8x1xf32>
      %15 = arith.divf %13, %14 : vector<8x1xf32>
      %16 = vector.broadcast %15 : vector<8x1xf32> to vector<8x32xf32>
      %17 = arith.subf %11, %16 : vector<8x32xf32>
      %18 = arith.mulf %17, %17 : vector<8x32xf32>
      %cst_12 = arith.constant dense<0.000000e+00> : vector<8xf32>
      %19 = vector.multi_reduction <add>, %18, %cst_12 [1] : vector<8x32xf32> to vector<8xf32>
      %20 = vector.shape_cast %19 : vector<8xf32> to vector<8x1xf32>
      %cst_13 = arith.constant 3.200000e+01 : f32
      %21 = vector.broadcast %cst_13 : f32 to vector<8x1xf32>
      %22 = arith.divf %20, %21 : vector<8x1xf32>
      %23 = vector.broadcast %15 : vector<8x1xf32> to vector<8x32xf32>
      %24 = arith.subf %11, %23 : vector<8x32xf32>
      %cst_14 = arith.constant 9.99999997E-7 : f32
      %25 = vector.broadcast %cst_14 : f32 to vector<8x1xf32>
      %26 = arith.addf %22, %25 : vector<8x1xf32>
      %27 = math.rsqrt %26 : vector<8x1xf32>
      %28 = vector.broadcast %27 : vector<8x1xf32> to vector<8x32xf32>
      %29 = arith.mulf %24, %28 : vector<8x32xf32>
      %c0_15 = arith.constant 0 : index
      %c0_16 = arith.constant 0 : index
      %30 = vector.load %arg3[%c0_15, %c0_16] : memref<1x32xf32, #tpu.memory_space<vmem>>, vector<1x32xf32>
      %31 = vector.broadcast %30 : vector<1x32xf32> to vector<8x32xf32>
      %32 = arith.mulf %29, %31 : vector<8x32xf32>
      %c0_17 = arith.constant 0 : index
      %c0_18 = arith.constant 0 : index
      %33 = vector.load %arg4[%c0_17, %c0_18] : memref<1x32xf32, #tpu.memory_space<vmem>>, vector<1x32xf32>
      %34 = vector.broadcast %33 : vector<1x32xf32> to vector<8x32xf32>
      %35 = arith.addf %32, %34 : vector<8x32xf32>
      %36 = arith.truncf %35 : vector<8x32xf32> to vector<8x32xbf16>
      %c0_19 = arith.constant 0 : index
      %c0_20 = arith.constant 0 : index
      %37 = vector.load %arg8[%c0_19, %c0_20] : memref<8x32xbf16, #tpu.memory_space<vmem>>, vector<8x32xbf16>
      tpu.vector_store %arg8[%c0_19, %c0_20], %36 {strides = array<i32>} : memref<8x32xbf16, #tpu.memory_space<vmem>>, vector<8x32xbf16>,
    } else {
    }
    %c0 = arith.constant 0 : index
    %c0_1 = arith.constant 0 : index
    %3 = vector.load %arg8[%c0, %c0_1] : memref<8x32xbf16, #tpu.memory_space<vmem>>, vector<8x32xbf16>
    %c0_2 = arith.constant 0 : index
    %c0_3 = arith.constant 0 : index
    %4 = vector.load %arg5[%c0_2, %c0_3] : memref<32x96xbf16, #tpu.memory_space<vmem>>, vector<32x96xbf16>
    %cst = arith.constant dense<0.000000e+00> : vector<8x96xf32>
    %5 = tpu.matmul %3, %4, %cst {dimension_numbers = #tpu.dot_dimension_numbers<[1], [0], [0], [1], [0, 0, 1, 1], [], []>} : vector<8x32xbf16>, vector<32x96xbf16>, vector<8x96xf32> -> vector<8x96xf32>
    %c0_4 = arith.constant 0 : index
    %c0_5 = arith.constant 0 : index
    %6 = vector.load %arg6[%c0_4, %c0_5] : memref<1x96xf32, #tpu.memory_space<vmem>>, vector<1x96xf32>
    %7 = vector.broadcast %6 : vector<1x96xf32> to vector<8x96xf32>
    %8 = arith.addf %5, %7 : vector<8x96xf32>
    %9 = arith.truncf %8 : vector<8x96xf32> to vector<8x96xbf16>
    %c0_6 = arith.constant 0 : index
    %c0_7 = arith.constant 0 : index
    %10 = vector.load %arg7[%c0_6, %c0_7] : memref<8x96xbf16, #tpu.memory_space<vmem>>, vector<8x96xbf16>
    tpu.vector_store %arg7[%c0_6, %c0_7], %9 {strides = array<i32>} : memref<8x96xbf16, #tpu.memory_space<vmem>>, vector<8x96xbf16>,
    return
  }
  func.func @transform_0(%arg0: i32, %arg1: i32) -> (i32, i32) {
    %c0_i32 = arith.constant 0 : i32
    %c0_i32_0 = arith.constant 0 : i32
    return %arg0, %c0_i32 : i32, i32
  }
  func.func @transform_1(%arg0: i32, %arg1: i32) -> (i32, i32) {
    %c0_i32 = arith.constant 0 : i32
    %c0_i32_0 = arith.constant 0 : i32
    %c0_i32_1 = arith.constant 0 : i32
    return %c0_i32, %c0_i32_0 : i32, i32
  }
  func.func @transform_2(%arg0: i32, %arg1: i32) -> (i32, i32) {
    %c0_i32 = arith.constant 0 : i32
    %c0_i32_0 = arith.constant 0 : i32
    %c0_i32_1 = arith.constant 0 : i32
    return %c0_i32, %c0_i32_0 : i32, i32
  }
  func.func @transform_3(%arg0: i32, %arg1: i32) -> (i32, i32) {
    %c0_i32 = arith.constant 0 : i32
    %c0_i32_0 = arith.constant 0 : i32
    return %c0_i32, %arg1 : i32, i32
  }
  func.func @transform_4(%arg0: i32, %arg1: i32) -> (i32, i32) {
    %c0_i32 = arith.constant 0 : i32
    %c0_i32_0 = arith.constant 0 : i32
    return %c0_i32, %arg1 : i32, i32
  }
  func.func @transform_5(%arg0: i32, %arg1: i32) -> (i32, i32) {
    %c0_i32 = arith.constant 0 : i32
    return %arg0, %arg1 : i32, i32
  }
}

module attributes {stable_mosaic.version = 11 : i64} {
  func.func @_fused_attn_kernel(%arg0: i32, %arg1: memref<1x4x96xbf16, #tpu.memory_space<vmem>>, %arg2: memref<32x32xbf16, #tpu.memory_space<vmem>>, %arg3: memref<1x32xf32, #tpu.memory_space<vmem>>, %arg4: memref<1x4x32xf32, #tpu.memory_space<vmem>>, %arg5: memref<1x4x32xf32, #tpu.memory_space<vmem>>) attributes {dimension_semantics = [#tpu.dimension_semantics<parallel>], iteration_bounds = array<i64: 2>, scalar_prefetch = 0 : i64, scratch_operands = 0 : i64, tpu.core_type = #tpu.core_type<tc>, window_params = [{transform_indices = @transform_0, window_bounds = array<i64: 1, 4, 96>}, {pipeline_mode = #tpu.pipeline_mode<synchronous>, transform_indices = @transform_1, window_bounds = array<i64: 32, 32>}, {pipeline_mode = #tpu.pipeline_mode<synchronous>, transform_indices = @transform_2, window_bounds = array<i64: 1, 32>}, {transform_indices = @transform_3, window_bounds = array<i64: 1, 4, 32>}, {transform_indices = @transform_4, window_bounds = array<i64: 1, 4, 32>}]} {
    %c0 = arith.constant 0 : index
    %c0_0 = arith.constant 0 : index
    %c0_1 = arith.constant 0 : index
    %0 = vector.load %arg1[%c0, %c0_0, %c0_1] : memref<1x4x96xbf16, #tpu.memory_space<vmem>>, vector<1x4x96xbf16>
    %1 = vector.shape_cast %0 : vector<1x4x96xbf16> to vector<4x96xbf16>
    %2 = arith.extf %1 : vector<4x96xbf16> to vector<4x96xf32>
    %3 = vector.extract_strided_slice %2 {offsets = [0, 32], sizes = [4, 8], strides = [1, 1]} : vector<4x96xf32> to vector<4x8xf32>
    %4 = vector.extract_strided_slice %2 {offsets = [0, 64], sizes = [4, 8], strides = [1, 1]} : vector<4x96xf32> to vector<4x8xf32>
    %5 = arith.truncf %3 : vector<4x8xf32> to vector<4x8xbf16>
    %6 = arith.truncf %4 : vector<4x8xf32> to vector<4x8xbf16>
    %7 = vector.extract_strided_slice %2 {offsets = [0, 0], sizes = [4, 8], strides = [1, 1]} : vector<4x96xf32> to vector<4x8xf32>
    %cst = arith.constant 0.353553385 : f32
    %8 = vector.broadcast %cst : f32 to vector<4x8xf32>
    %9 = arith.mulf %7, %8 : vector<4x8xf32>
    %10 = arith.truncf %9 : vector<4x8xf32> to vector<4x8xbf16>
    %cst_2 = arith.constant dense<0.000000e+00> : vector<4x4xf32>
    %11 = tpu.matmul %10, %5, %cst_2 {dimension_numbers = #tpu.dot_dimension_numbers<[1], [1], [0], [0], [0, 0, 1, 0], [], []>} : vector<4x8xbf16>, vector<4x8xbf16>, vector<4x4xf32> -> vector<4x4xf32>
    %cst_3 = arith.constant dense<0xFF800000> : vector<4xf32>
    %12 = vector.multi_reduction <maximumf>, %11, %cst_3 [1] : vector<4x4xf32> to vector<4xf32>
    %13 = vector.shape_cast %12 : vector<4xf32> to vector<4x1xf32>
    %14 = vector.broadcast %13 : vector<4x1xf32> to vector<4x4xf32>
    %15 = arith.subf %11, %14 : vector<4x4xf32>
    %16 = math.exp %15 : vector<4x4xf32>
    %cst_4 = arith.constant dense<0.000000e+00> : vector<4xf32>
    %17 = vector.multi_reduction <add>, %16, %cst_4 [1] : vector<4x4xf32> to vector<4xf32>
    %18 = vector.shape_cast %17 : vector<4xf32> to vector<4x1xf32>
    %19 = tpu.reciprocal %18 {approx = true} : vector<4x1xf32> -> vector<4x1xf32>
    %20 = vector.broadcast %19 : vector<4x1xf32> to vector<4x4xf32>
    %21 = arith.mulf %16, %20 : vector<4x4xf32>
    %22 = arith.truncf %21 : vector<4x4xf32> to vector<4x4xbf16>
    %cst_5 = arith.constant dense<0.000000e+00> : vector<4x8xf32>
    %23 = tpu.matmul %22, %6, %cst_5 {dimension_numbers = #tpu.dot_dimension_numbers<[1], [0], [0], [1], [0, 0, 1, 1], [], []>} : vector<4x4xbf16>, vector<4x8xbf16>, vector<4x8xf32> -> vector<4x8xf32>
    %24 = vector.extract_strided_slice %2 {offsets = [0, 40], sizes = [4, 8], strides = [1, 1]} : vector<4x96xf32> to vector<4x8xf32>
    %25 = vector.extract_strided_slice %2 {offsets = [0, 72], sizes = [4, 8], strides = [1, 1]} : vector<4x96xf32> to vector<4x8xf32>
    %26 = arith.truncf %24 : vector<4x8xf32> to vector<4x8xbf16>
    %27 = arith.truncf %25 : vector<4x8xf32> to vector<4x8xbf16>
    %28 = vector.extract_strided_slice %2 {offsets = [0, 8], sizes = [4, 8], strides = [1, 1]} : vector<4x96xf32> to vector<4x8xf32>
    %cst_6 = arith.constant 0.353553385 : f32
    %29 = vector.broadcast %cst_6 : f32 to vector<4x8xf32>
    %30 = arith.mulf %28, %29 : vector<4x8xf32>
    %31 = arith.truncf %30 : vector<4x8xf32> to vector<4x8xbf16>
    %cst_7 = arith.constant dense<0.000000e+00> : vector<4x4xf32>
    %32 = tpu.matmul %31, %26, %cst_7 {dimension_numbers = #tpu.dot_dimension_numbers<[1], [1], [0], [0], [0, 0, 1, 0], [], []>} : vector<4x8xbf16>, vector<4x8xbf16>, vector<4x4xf32> -> vector<4x4xf32>
    %cst_8 = arith.constant dense<0xFF800000> : vector<4xf32>
    %33 = vector.multi_reduction <maximumf>, %32, %cst_8 [1] : vector<4x4xf32> to vector<4xf32>
    %34 = vector.shape_cast %33 : vector<4xf32> to vector<4x1xf32>
    %35 = vector.broadcast %34 : vector<4x1xf32> to vector<4x4xf32>
    %36 = arith.subf %32, %35 : vector<4x4xf32>
    %37 = math.exp %36 : vector<4x4xf32>
    %cst_9 = arith.constant dense<0.000000e+00> : vector<4xf32>
    %38 = vector.multi_reduction <add>, %37, %cst_9 [1] : vector<4x4xf32> to vector<4xf32>
    %39 = vector.shape_cast %38 : vector<4xf32> to vector<4x1xf32>
    %40 = tpu.reciprocal %39 {approx = true} : vector<4x1xf32> -> vector<4x1xf32>
    %41 = vector.broadcast %40 : vector<4x1xf32> to vector<4x4xf32>
    %42 = arith.mulf %37, %41 : vector<4x4xf32>
    %43 = arith.truncf %42 : vector<4x4xf32> to vector<4x4xbf16>
    %cst_10 = arith.constant dense<0.000000e+00> : vector<4x8xf32>
    %44 = tpu.matmul %43, %27, %cst_10 {dimension_numbers = #tpu.dot_dimension_numbers<[1], [0], [0], [1], [0, 0, 1, 1], [], []>} : vector<4x4xbf16>, vector<4x8xbf16>, vector<4x8xf32> -> vector<4x8xf32>
    %45 = vector.extract_strided_slice %2 {offsets = [0, 48], sizes = [4, 8], strides = [1, 1]} : vector<4x96xf32> to vector<4x8xf32>
    %46 = vector.extract_strided_slice %2 {offsets = [0, 80], sizes = [4, 8], strides = [1, 1]} : vector<4x96xf32> to vector<4x8xf32>
    %47 = arith.truncf %45 : vector<4x8xf32> to vector<4x8xbf16>
    %48 = arith.truncf %46 : vector<4x8xf32> to vector<4x8xbf16>
    %49 = vector.extract_strided_slice %2 {offsets = [0, 16], sizes = [4, 8], strides = [1, 1]} : vector<4x96xf32> to vector<4x8xf32>
    %cst_11 = arith.constant 0.353553385 : f32
    %50 = vector.broadcast %cst_11 : f32 to vector<4x8xf32>
    %51 = arith.mulf %49, %50 : vector<4x8xf32>
    %52 = arith.truncf %51 : vector<4x8xf32> to vector<4x8xbf16>
    %cst_12 = arith.constant dense<0.000000e+00> : vector<4x4xf32>
    %53 = tpu.matmul %52, %47, %cst_12 {dimension_numbers = #tpu.dot_dimension_numbers<[1], [1], [0], [0], [0, 0, 1, 0], [], []>} : vector<4x8xbf16>, vector<4x8xbf16>, vector<4x4xf32> -> vector<4x4xf32>
    %cst_13 = arith.constant dense<0xFF800000> : vector<4xf32>
    %54 = vector.multi_reduction <maximumf>, %53, %cst_13 [1] : vector<4x4xf32> to vector<4xf32>
    %55 = vector.shape_cast %54 : vector<4xf32> to vector<4x1xf32>
    %56 = vector.broadcast %55 : vector<4x1xf32> to vector<4x4xf32>
    %57 = arith.subf %53, %56 : vector<4x4xf32>
    %58 = math.exp %57 : vector<4x4xf32>
    %cst_14 = arith.constant dense<0.000000e+00> : vector<4xf32>
    %59 = vector.multi_reduction <add>, %58, %cst_14 [1] : vector<4x4xf32> to vector<4xf32>
    %60 = vector.shape_cast %59 : vector<4xf32> to vector<4x1xf32>
    %61 = tpu.reciprocal %60 {approx = true} : vector<4x1xf32> -> vector<4x1xf32>
    %62 = vector.broadcast %61 : vector<4x1xf32> to vector<4x4xf32>
    %63 = arith.mulf %58, %62 : vector<4x4xf32>
    %64 = arith.truncf %63 : vector<4x4xf32> to vector<4x4xbf16>
    %cst_15 = arith.constant dense<0.000000e+00> : vector<4x8xf32>
    %65 = tpu.matmul %64, %48, %cst_15 {dimension_numbers = #tpu.dot_dimension_numbers<[1], [0], [0], [1], [0, 0, 1, 1], [], []>} : vector<4x4xbf16>, vector<4x8xbf16>, vector<4x8xf32> -> vector<4x8xf32>
    %66 = vector.extract_strided_slice %2 {offsets = [0, 56], sizes = [4, 8], strides = [1, 1]} : vector<4x96xf32> to vector<4x8xf32>
    %67 = vector.extract_strided_slice %2 {offsets = [0, 88], sizes = [4, 8], strides = [1, 1]} : vector<4x96xf32> to vector<4x8xf32>
    %68 = arith.truncf %66 : vector<4x8xf32> to vector<4x8xbf16>
    %69 = arith.truncf %67 : vector<4x8xf32> to vector<4x8xbf16>
    %70 = vector.extract_strided_slice %2 {offsets = [0, 24], sizes = [4, 8], strides = [1, 1]} : vector<4x96xf32> to vector<4x8xf32>
    %cst_16 = arith.constant 0.353553385 : f32
    %71 = vector.broadcast %cst_16 : f32 to vector<4x8xf32>
    %72 = arith.mulf %70, %71 : vector<4x8xf32>
    %73 = arith.truncf %72 : vector<4x8xf32> to vector<4x8xbf16>
    %cst_17 = arith.constant dense<0.000000e+00> : vector<4x4xf32>
    %74 = tpu.matmul %73, %68, %cst_17 {dimension_numbers = #tpu.dot_dimension_numbers<[1], [1], [0], [0], [0, 0, 1, 0], [], []>} : vector<4x8xbf16>, vector<4x8xbf16>, vector<4x4xf32> -> vector<4x4xf32>
    %cst_18 = arith.constant dense<0xFF800000> : vector<4xf32>
    %75 = vector.multi_reduction <maximumf>, %74, %cst_18 [1] : vector<4x4xf32> to vector<4xf32>
    %76 = vector.shape_cast %75 : vector<4xf32> to vector<4x1xf32>
    %77 = vector.broadcast %76 : vector<4x1xf32> to vector<4x4xf32>
    %78 = arith.subf %74, %77 : vector<4x4xf32>
    %79 = math.exp %78 : vector<4x4xf32>
    %cst_19 = arith.constant dense<0.000000e+00> : vector<4xf32>
    %80 = vector.multi_reduction <add>, %79, %cst_19 [1] : vector<4x4xf32> to vector<4xf32>
    %81 = vector.shape_cast %80 : vector<4xf32> to vector<4x1xf32>
    %82 = tpu.reciprocal %81 {approx = true} : vector<4x1xf32> -> vector<4x1xf32>
    %83 = vector.broadcast %82 : vector<4x1xf32> to vector<4x4xf32>
    %84 = arith.mulf %79, %83 : vector<4x4xf32>
    %85 = arith.truncf %84 : vector<4x4xf32> to vector<4x4xbf16>
    %cst_20 = arith.constant dense<0.000000e+00> : vector<4x8xf32>
    %86 = tpu.matmul %85, %69, %cst_20 {dimension_numbers = #tpu.dot_dimension_numbers<[1], [0], [0], [1], [0, 0, 1, 1], [], []>} : vector<4x4xbf16>, vector<4x8xbf16>, vector<4x8xf32> -> vector<4x8xf32>
    %87 = tpu.concatenate %23, %44, %65, %86 in 1 : vector<4x8xf32>, vector<4x8xf32>, vector<4x8xf32>, vector<4x8xf32> -> vector<4x32xf32>
    %88 = arith.truncf %87 : vector<4x32xf32> to vector<4x32xbf16>
    %c0_21 = arith.constant 0 : index
    %c0_22 = arith.constant 0 : index
    %89 = vector.load %arg2[%c0_21, %c0_22] : memref<32x32xbf16, #tpu.memory_space<vmem>>, vector<32x32xbf16>
    %cst_23 = arith.constant dense<0.000000e+00> : vector<4x32xf32>
    %90 = tpu.matmul %88, %89, %cst_23 {dimension_numbers = #tpu.dot_dimension_numbers<[1], [0], [0], [1], [0, 0, 1, 1], [], []>} : vector<4x32xbf16>, vector<32x32xbf16>, vector<4x32xf32> -> vector<4x32xf32>
    %c0_24 = arith.constant 0 : index
    %c0_25 = arith.constant 0 : index
    %91 = vector.load %arg3[%c0_24, %c0_25] : memref<1x32xf32, #tpu.memory_space<vmem>>, vector<1x32xf32>
    %92 = vector.broadcast %91 : vector<1x32xf32> to vector<4x32xf32>
    %93 = arith.addf %90, %92 : vector<4x32xf32>
    %c0_26 = arith.constant 0 : index
    %c0_27 = arith.constant 0 : index
    %c0_28 = arith.constant 0 : index
    %94 = vector.load %arg4[%c0_26, %c0_27, %c0_28] : memref<1x4x32xf32, #tpu.memory_space<vmem>>, vector<1x4x32xf32>
    %95 = vector.shape_cast %94 : vector<1x4x32xf32> to vector<4x32xf32>
    %96 = arith.addf %93, %95 : vector<4x32xf32>
    %c0_29 = arith.constant 0 : index
    %c0_30 = arith.constant 0 : index
    %c0_31 = arith.constant 0 : index
    %97 = vector.load %arg5[%c0_29, %c0_30, %c0_31] : memref<1x4x32xf32, #tpu.memory_space<vmem>>, vector<1x4x32xf32>
    %98 = vector.shape_cast %97 : vector<1x4x32xf32> to vector<4x32xf32>
    %99 = vector.shape_cast %96 : vector<4x32xf32> to vector<1x4x32xf32>
    tpu.vector_store %arg5[%c0_29, %c0_30, %c0_31], %99 {strides = array<i32>} : memref<1x4x32xf32, #tpu.memory_space<vmem>>, vector<1x4x32xf32>,
    return
  }
  func.func @transform_0(%arg0: i32) -> (i32, i32, i32) {
    %c0_i32 = arith.constant 0 : i32
    %c0_i32_0 = arith.constant 0 : i32
    %c0_i32_1 = arith.constant 0 : i32
    return %arg0, %c0_i32, %c0_i32_0 : i32, i32, i32
  }
  func.func @transform_1(%arg0: i32) -> (i32, i32) {
    %c0_i32 = arith.constant 0 : i32
    %c0_i32_0 = arith.constant 0 : i32
    %c0_i32_1 = arith.constant 0 : i32
    return %c0_i32, %c0_i32_0 : i32, i32
  }
  func.func @transform_2(%arg0: i32) -> (i32, i32) {
    %c0_i32 = arith.constant 0 : i32
    %c0_i32_0 = arith.constant 0 : i32
    %c0_i32_1 = arith.constant 0 : i32
    return %c0_i32, %c0_i32_0 : i32, i32
  }
  func.func @transform_3(%arg0: i32) -> (i32, i32, i32) {
    %c0_i32 = arith.constant 0 : i32
    %c0_i32_0 = arith.constant 0 : i32
    %c0_i32_1 = arith.constant 0 : i32
    return %arg0, %c0_i32, %c0_i32_0 : i32, i32, i32
  }
  func.func @transform_4(%arg0: i32) -> (i32, i32, i32) {
    %c0_i32 = arith.constant 0 : i32
    %c0_i32_0 = arith.constant 0 : i32
    %c0_i32_1 = arith.constant 0 : i32
    return %arg0, %c0_i32, %c0_i32_0 : i32, i32, i32
  }
}

module attributes {stable_mosaic.version = 11 : i64} {
  func.func @_ln_mlp_kernel(%arg0: i32, %arg1: memref<8x32xf32, #tpu.memory_space<vmem>>, %arg2: memref<1x32xf32, #tpu.memory_space<vmem>>, %arg3: memref<1x32xf32, #tpu.memory_space<vmem>>, %arg4: memref<32x64xbf16, #tpu.memory_space<vmem>>, %arg5: memref<1x64xf32, #tpu.memory_space<vmem>>, %arg6: memref<64x32xbf16, #tpu.memory_space<vmem>>, %arg7: memref<1x32xf32, #tpu.memory_space<vmem>>, %arg8: memref<8x32xf32, #tpu.memory_space<vmem>>) attributes {dimension_semantics = [#tpu.dimension_semantics<parallel>], iteration_bounds = array<i64: 1>, scalar_prefetch = 0 : i64, scratch_operands = 0 : i64, tpu.core_type = #tpu.core_type<tc>, window_params = [{transform_indices = @transform_0, window_bounds = array<i64: 8, 32>}, {pipeline_mode = #tpu.pipeline_mode<synchronous>, transform_indices = @transform_1, window_bounds = array<i64: 1, 32>}, {pipeline_mode = #tpu.pipeline_mode<synchronous>, transform_indices = @transform_2, window_bounds = array<i64: 1, 32>}, {pipeline_mode = #tpu.pipeline_mode<synchronous>, transform_indices = @transform_3, window_bounds = array<i64: 32, 64>}, {pipeline_mode = #tpu.pipeline_mode<synchronous>, transform_indices = @transform_4, window_bounds = array<i64: 1, 64>}, {pipeline_mode = #tpu.pipeline_mode<synchronous>, transform_indices = @transform_5, window_bounds = array<i64: 64, 32>}, {pipeline_mode = #tpu.pipeline_mode<synchronous>, transform_indices = @transform_6, window_bounds = array<i64: 1, 32>}, {transform_indices = @transform_7, window_bounds = array<i64: 8, 32>}]} {
    %c0 = arith.constant 0 : index
    %c0_0 = arith.constant 0 : index
    %0 = vector.load %arg1[%c0, %c0_0] : memref<8x32xf32, #tpu.memory_space<vmem>>, vector<8x32xf32>
    %cst = arith.constant dense<0.000000e+00> : vector<8xf32>
    %1 = vector.multi_reduction <add>, %0, %cst [1] : vector<8x32xf32> to vector<8xf32>
    %2 = vector.shape_cast %1 : vector<8xf32> to vector<8x1xf32>
    %cst_1 = arith.constant 3.200000e+01 : f32
    %3 = vector.broadcast %cst_1 : f32 to vector<8x1xf32>
    %4 = arith.divf %2, %3 : vector<8x1xf32>
    %5 = vector.broadcast %4 : vector<8x1xf32> to vector<8x32xf32>
    %6 = arith.subf %0, %5 : vector<8x32xf32>
    %7 = arith.mulf %6, %6 : vector<8x32xf32>
    %cst_2 = arith.constant dense<0.000000e+00> : vector<8xf32>
    %8 = vector.multi_reduction <add>, %7, %cst_2 [1] : vector<8x32xf32> to vector<8xf32>
    %9 = vector.shape_cast %8 : vector<8xf32> to vector<8x1xf32>
    %cst_3 = arith.constant 3.200000e+01 : f32
    %10 = vector.broadcast %cst_3 : f32 to vector<8x1xf32>
    %11 = arith.divf %9, %10 : vector<8x1xf32>
    %12 = vector.broadcast %4 : vector<8x1xf32> to vector<8x32xf32>
    %13 = arith.subf %0, %12 : vector<8x32xf32>
    %cst_4 = arith.constant 9.99999997E-7 : f32
    %14 = vector.broadcast %cst_4 : f32 to vector<8x1xf32>
    %15 = arith.addf %11, %14 : vector<8x1xf32>
    %16 = math.rsqrt %15 : vector<8x1xf32>
    %17 = vector.broadcast %16 : vector<8x1xf32> to vector<8x32xf32>
    %18 = arith.mulf %13, %17 : vector<8x32xf32>
    %c0_5 = arith.constant 0 : index
    %c0_6 = arith.constant 0 : index
    %19 = vector.load %arg2[%c0_5, %c0_6] : memref<1x32xf32, #tpu.memory_space<vmem>>, vector<1x32xf32>
    %20 = vector.broadcast %19 : vector<1x32xf32> to vector<8x32xf32>
    %21 = arith.mulf %18, %20 : vector<8x32xf32>
    %c0_7 = arith.constant 0 : index
    %c0_8 = arith.constant 0 : index
    %22 = vector.load %arg3[%c0_7, %c0_8] : memref<1x32xf32, #tpu.memory_space<vmem>>, vector<1x32xf32>
    %23 = vector.broadcast %22 : vector<1x32xf32> to vector<8x32xf32>
    %24 = arith.addf %21, %23 : vector<8x32xf32>
    %25 = arith.truncf %24 : vector<8x32xf32> to vector<8x32xbf16>
    %c0_9 = arith.constant 0 : index
    %c0_10 = arith.constant 0 : index
    %26 = vector.load %arg4[%c0_9, %c0_10] : memref<32x64xbf16, #tpu.memory_space<vmem>>, vector<32x64xbf16>
    %cst_11 = arith.constant dense<0.000000e+00> : vector<8x64xf32>
    %27 = tpu.matmul %25, %26, %cst_11 {dimension_numbers = #tpu.dot_dimension_numbers<[1], [0], [0], [1], [0, 0, 1, 1], [], []>} : vector<8x32xbf16>, vector<32x64xbf16>, vector<8x64xf32> -> vector<8x64xf32>
    %c0_12 = arith.constant 0 : index
    %c0_13 = arith.constant 0 : index
    %28 = vector.load %arg5[%c0_12, %c0_13] : memref<1x64xf32, #tpu.memory_space<vmem>>, vector<1x64xf32>
    %29 = vector.broadcast %28 : vector<1x64xf32> to vector<8x64xf32>
    %30 = arith.addf %27, %29 : vector<8x64xf32>
    %cst_14 = arith.constant 5.000000e-01 : f32
    %31 = vector.broadcast %cst_14 : f32 to vector<8x64xf32>
    %32 = arith.mulf %31, %30 : vector<8x64xf32>
    %cst_15 = arith.constant 4.471500e-02 : f32
    %33 = vector.broadcast %cst_15 : f32 to vector<8x64xf32>
    %34 = arith.mulf %33, %30 : vector<8x64xf32>
    %35 = arith.mulf %34, %30 : vector<8x64xf32>
    %36 = arith.mulf %35, %30 : vector<8x64xf32>
    %37 = arith.addf %30, %36 : vector<8x64xf32>
    %cst_16 = arith.constant 0.797884583 : f32
    %38 = vector.broadcast %cst_16 : f32 to vector<8x64xf32>
    %39 = arith.mulf %38, %37 : vector<8x64xf32>
    %40 = math.tanh %39 : vector<8x64xf32>
    %cst_17 = arith.constant 1.000000e+00 : f32
    %41 = vector.broadcast %cst_17 : f32 to vector<8x64xf32>
    %42 = arith.addf %41, %40 : vector<8x64xf32>
    %43 = arith.mulf %32, %42 : vector<8x64xf32>
    %44 = arith.truncf %43 : vector<8x64xf32> to vector<8x64xbf16>
    %c0_18 = arith.constant 0 : index
    %c0_19 = arith.constant 0 : index
    %45 = vector.load %arg7[%c0_18, %c0_19] : memref<1x32xf32, #tpu.memory_space<vmem>>, vector<1x32xf32>
    %46 = vector.broadcast %45 : vector<1x32xf32> to vector<8x32xf32>
    %47 = arith.addf %0, %46 : vector<8x32xf32>
    %c0_20 = arith.constant 0 : index
    %c0_21 = arith.constant 0 : index
    %48 = vector.load %arg6[%c0_20, %c0_21] : memref<64x32xbf16, #tpu.memory_space<vmem>>, vector<64x32xbf16>
    %cst_22 = arith.constant dense<0.000000e+00> : vector<8x32xf32>
    %49 = tpu.matmul %44, %48, %cst_22 {dimension_numbers = #tpu.dot_dimension_numbers<[1], [0], [0], [1], [0, 0, 1, 1], [], []>} : vector<8x64xbf16>, vector<64x32xbf16>, vector<8x32xf32> -> vector<8x32xf32>
    %50 = arith.addf %47, %49 : vector<8x32xf32>
    %c0_23 = arith.constant 0 : index
    %c0_24 = arith.constant 0 : index
    %51 = vector.load %arg8[%c0_23, %c0_24] : memref<8x32xf32, #tpu.memory_space<vmem>>, vector<8x32xf32>
    tpu.vector_store %arg8[%c0_23, %c0_24], %50 {strides = array<i32>} : memref<8x32xf32, #tpu.memory_space<vmem>>, vector<8x32xf32>,
    return
  }
  func.func @transform_0(%arg0: i32) -> (i32, i32) {
    %c0_i32 = arith.constant 0 : i32
    %c0_i32_0 = arith.constant 0 : i32
    return %arg0, %c0_i32 : i32, i32
  }
  func.func @transform_1(%arg0: i32) -> (i32, i32) {
    %c0_i32 = arith.constant 0 : i32
    %c0_i32_0 = arith.constant 0 : i32
    %c0_i32_1 = arith.constant 0 : i32
    return %c0_i32, %c0_i32_0 : i32, i32
  }
  func.func @transform_2(%arg0: i32) -> (i32, i32) {
    %c0_i32 = arith.constant 0 : i32
    %c0_i32_0 = arith.constant 0 : i32
    %c0_i32_1 = arith.constant 0 : i32
    return %c0_i32, %c0_i32_0 : i32, i32
  }
  func.func @transform_3(%arg0: i32) -> (i32, i32) {
    %c0_i32 = arith.constant 0 : i32
    %c0_i32_0 = arith.constant 0 : i32
    %c0_i32_1 = arith.constant 0 : i32
    return %c0_i32, %c0_i32_0 : i32, i32
  }
  func.func @transform_4(%arg0: i32) -> (i32, i32) {
    %c0_i32 = arith.constant 0 : i32
    %c0_i32_0 = arith.constant 0 : i32
    %c0_i32_1 = arith.constant 0 : i32
    return %c0_i32, %c0_i32_0 : i32, i32
  }
  func.func @transform_5(%arg0: i32) -> (i32, i32) {
    %c0_i32 = arith.constant 0 : i32
    %c0_i32_0 = arith.constant 0 : i32
    %c0_i32_1 = arith.constant 0 : i32
    return %c0_i32, %c0_i32_0 : i32, i32
  }
  func.func @transform_6(%arg0: i32) -> (i32, i32) {
    %c0_i32 = arith.constant 0 : i32
    %c0_i32_0 = arith.constant 0 : i32
    %c0_i32_1 = arith.constant 0 : i32
    return %c0_i32, %c0_i32_0 : i32, i32
  }
  func.func @transform_7(%arg0: i32) -> (i32, i32) {
    %c0_i32 = arith.constant 0 : i32
    %c0_i32_0 = arith.constant 0 : i32
    return %arg0, %c0_i32 : i32, i32
  }
}

module attributes {stable_mosaic.version = 11 : i64} {
  func.func @_ln_linear_kernel(%arg0: i32, %arg1: i32, %arg2: memref<8x32xf32, #tpu.memory_space<vmem>>, %arg3: memref<1x32xf32, #tpu.memory_space<vmem>>, %arg4: memref<1x32xf32, #tpu.memory_space<vmem>>, %arg5: memref<32x32xbf16, #tpu.memory_space<vmem>>, %arg6: memref<1x32xf32, #tpu.memory_space<vmem>>, %arg7: memref<8x32xf32, #tpu.memory_space<vmem>>, %arg8: memref<8x32xbf16, #tpu.memory_space<vmem>>) attributes {dimension_semantics = [#tpu.dimension_semantics<parallel>, #tpu.dimension_semantics<arbitrary>], iteration_bounds = array<i64: 1, 1>, scalar_prefetch = 0 : i64, scratch_operands = 1 : i64, tpu.core_type = #tpu.core_type<tc>, window_params = [{transform_indices = @transform_0, window_bounds = array<i64: 8, 32>}, {pipeline_mode = #tpu.pipeline_mode<synchronous>, transform_indices = @transform_1, window_bounds = array<i64: 1, 32>}, {pipeline_mode = #tpu.pipeline_mode<synchronous>, transform_indices = @transform_2, window_bounds = array<i64: 1, 32>}, {transform_indices = @transform_3, window_bounds = array<i64: 32, 32>}, {transform_indices = @transform_4, window_bounds = array<i64: 1, 32>}, {transform_indices = @transform_5, window_bounds = array<i64: 8, 32>}]} {
    %c0_i32 = arith.constant 0 : i32
    %0 = arith.cmpi eq, %arg1, %c0_i32 : i32
    %1 = arith.extui %0 : i1 to i32
    %c0_i32_0 = arith.constant 0 : i32
    %2 = arith.cmpi ne, %1, %c0_i32_0 : i32
    scf.if %2 {
      %c0_8 = arith.constant 0 : index
      %c0_9 = arith.constant 0 : index
      %10 = vector.load %arg2[%c0_8, %c0_9] : memref<8x32xf32, #tpu.memory_space<vmem>>, vector<8x32xf32>
      %cst_10 = arith.constant dense<0.000000e+00> : vector<8xf32>
      %11 = vector.multi_reduction <add>, %10, %cst_10 [1] : vector<8x32xf32> to vector<8xf32>
      %12 = vector.shape_cast %11 : vector<8xf32> to vector<8x1xf32>
      %cst_11 = arith.constant 3.200000e+01 : f32
      %13 = vector.broadcast %cst_11 : f32 to vector<8x1xf32>
      %14 = arith.divf %12, %13 : vector<8x1xf32>
      %15 = vector.broadcast %14 : vector<8x1xf32> to vector<8x32xf32>
      %16 = arith.subf %10, %15 : vector<8x32xf32>
      %17 = arith.mulf %16, %16 : vector<8x32xf32>
      %cst_12 = arith.constant dense<0.000000e+00> : vector<8xf32>
      %18 = vector.multi_reduction <add>, %17, %cst_12 [1] : vector<8x32xf32> to vector<8xf32>
      %19 = vector.shape_cast %18 : vector<8xf32> to vector<8x1xf32>
      %cst_13 = arith.constant 3.200000e+01 : f32
      %20 = vector.broadcast %cst_13 : f32 to vector<8x1xf32>
      %21 = arith.divf %19, %20 : vector<8x1xf32>
      %22 = vector.broadcast %14 : vector<8x1xf32> to vector<8x32xf32>
      %23 = arith.subf %10, %22 : vector<8x32xf32>
      %cst_14 = arith.constant 9.99999997E-7 : f32
      %24 = vector.broadcast %cst_14 : f32 to vector<8x1xf32>
      %25 = arith.addf %21, %24 : vector<8x1xf32>
      %26 = math.rsqrt %25 : vector<8x1xf32>
      %27 = vector.broadcast %26 : vector<8x1xf32> to vector<8x32xf32>
      %28 = arith.mulf %23, %27 : vector<8x32xf32>
      %c0_15 = arith.constant 0 : index
      %c0_16 = arith.constant 0 : index
      %29 = vector.load %arg3[%c0_15, %c0_16] : memref<1x32xf32, #tpu.memory_space<vmem>>, vector<1x32xf32>
      %30 = vector.broadcast %29 : vector<1x32xf32> to vector<8x32xf32>
      %31 = arith.mulf %28, %30 : vector<8x32xf32>
      %c0_17 = arith.constant 0 : index
      %c0_18 = arith.constant 0 : index
      %32 = vector.load %arg4[%c0_17, %c0_18] : memref<1x32xf32, #tpu.memory_space<vmem>>, vector<1x32xf32>
      %33 = vector.broadcast %32 : vector<1x32xf32> to vector<8x32xf32>
      %34 = arith.addf %31, %33 : vector<8x32xf32>
      %35 = arith.truncf %34 : vector<8x32xf32> to vector<8x32xbf16>
      %c0_19 = arith.constant 0 : index
      %c0_20 = arith.constant 0 : index
      %36 = vector.load %arg8[%c0_19, %c0_20] : memref<8x32xbf16, #tpu.memory_space<vmem>>, vector<8x32xbf16>
      tpu.vector_store %arg8[%c0_19, %c0_20], %35 {strides = array<i32>} : memref<8x32xbf16, #tpu.memory_space<vmem>>, vector<8x32xbf16>,
    } else {
    }
    %c0 = arith.constant 0 : index
    %c0_1 = arith.constant 0 : index
    %3 = vector.load %arg8[%c0, %c0_1] : memref<8x32xbf16, #tpu.memory_space<vmem>>, vector<8x32xbf16>
    %c0_2 = arith.constant 0 : index
    %c0_3 = arith.constant 0 : index
    %4 = vector.load %arg5[%c0_2, %c0_3] : memref<32x32xbf16, #tpu.memory_space<vmem>>, vector<32x32xbf16>
    %cst = arith.constant dense<0.000000e+00> : vector<8x32xf32>
    %5 = tpu.matmul %3, %4, %cst {dimension_numbers = #tpu.dot_dimension_numbers<[1], [0], [0], [1], [0, 0, 1, 1], [], []>} : vector<8x32xbf16>, vector<32x32xbf16>, vector<8x32xf32> -> vector<8x32xf32>
    %c0_4 = arith.constant 0 : index
    %c0_5 = arith.constant 0 : index
    %6 = vector.load %arg6[%c0_4, %c0_5] : memref<1x32xf32, #tpu.memory_space<vmem>>, vector<1x32xf32>
    %7 = vector.broadcast %6 : vector<1x32xf32> to vector<8x32xf32>
    %8 = arith.addf %5, %7 : vector<8x32xf32>
    %c0_6 = arith.constant 0 : index
    %c0_7 = arith.constant 0 : index
    %9 = vector.load %arg7[%c0_6, %c0_7] : memref<8x32xf32, #tpu.memory_space<vmem>>, vector<8x32xf32>
    tpu.vector_store %arg7[%c0_6, %c0_7], %8 {strides = array<i32>} : memref<8x32xf32, #tpu.memory_space<vmem>>, vector<8x32xf32>,
    return
  }
  func.func @transform_0(%arg0: i32, %arg1: i32) -> (i32, i32) {
    %c0_i32 = arith.constant 0 : i32
    %c0_i32_0 = arith.constant 0 : i32
    return %arg0, %c0_i32 : i32, i32
  }
  func.func @transform_1(%arg0: i32, %arg1: i32) -> (i32, i32) {
    %c0_i32 = arith.constant 0 : i32
    %c0_i32_0 = arith.constant 0 : i32
    %c0_i32_1 = arith.constant 0 : i32
    return %c0_i32, %c0_i32_0 : i32, i32
  }
  func.func @transform_2(%arg0: i32, %arg1: i32) -> (i32, i32) {
    %c0_i32 = arith.constant 0 : i32
    %c0_i32_0 = arith.constant 0 : i32
    %c0_i32_1 = arith.constant 0 : i32
    return %c0_i32, %c0_i32_0 : i32, i32
  }
  func.func @transform_3(%arg0: i32, %arg1: i32) -> (i32, i32) {
    %c0_i32 = arith.constant 0 : i32
    %c0_i32_0 = arith.constant 0 : i32
    return %c0_i32, %arg1 : i32, i32
  }
  func.func @transform_4(%arg0: i32, %arg1: i32) -> (i32, i32) {
    %c0_i32 = arith.constant 0 : i32
    %c0_i32_0 = arith.constant 0 : i32
    return %c0_i32, %arg1 : i32, i32
  }
  func.func @transform_5(%arg0: i32, %arg1: i32) -> (i32, i32) {
    %c0_i32 = arith.constant 0 : i32
    return %arg0, %arg1 : i32, i32
  }
}

module attributes {stable_mosaic.version = 11 : i64} {
  func.func @_rms_linear_kernel(%arg0: i32, %arg1: i32, %arg2: memref<8x32xf32, #tpu.memory_space<vmem>>, %arg3: memref<1x32xf32, #tpu.memory_space<vmem>>, %arg4: memref<32x128xbf16, #tpu.memory_space<vmem>>, %arg5: memref<8x128xbf16, #tpu.memory_space<vmem>>, %arg6: memref<8x32xbf16, #tpu.memory_space<vmem>>) attributes {dimension_semantics = [#tpu.dimension_semantics<parallel>, #tpu.dimension_semantics<arbitrary>], iteration_bounds = array<i64: 2, 1>, scalar_prefetch = 0 : i64, scratch_operands = 1 : i64, tpu.core_type = #tpu.core_type<tc>, window_params = [{transform_indices = @transform_0, window_bounds = array<i64: 8, 32>}, {pipeline_mode = #tpu.pipeline_mode<synchronous>, transform_indices = @transform_1, window_bounds = array<i64: 1, 32>}, {transform_indices = @transform_2, window_bounds = array<i64: 32, 128>}, {transform_indices = @transform_3, window_bounds = array<i64: 8, 128>}]} {
    %c0_i32 = arith.constant 0 : i32
    %0 = arith.cmpi eq, %arg1, %c0_i32 : i32
    %1 = arith.extui %0 : i1 to i32
    %c0_i32_0 = arith.constant 0 : i32
    %2 = arith.cmpi ne, %1, %c0_i32_0 : i32
    scf.if %2 {
      %c0_6 = arith.constant 0 : index
      %c0_7 = arith.constant 0 : index
      %8 = vector.load %arg2[%c0_6, %c0_7] : memref<8x32xf32, #tpu.memory_space<vmem>>, vector<8x32xf32>
      %9 = arith.mulf %8, %8 : vector<8x32xf32>
      %cst_8 = arith.constant dense<0.000000e+00> : vector<8xf32>
      %10 = vector.multi_reduction <add>, %9, %cst_8 [1] : vector<8x32xf32> to vector<8xf32>
      %11 = vector.shape_cast %10 : vector<8xf32> to vector<8x1xf32>
      %cst_9 = arith.constant 3.200000e+01 : f32
      %12 = vector.broadcast %cst_9 : f32 to vector<8x1xf32>
      %13 = arith.divf %11, %12 : vector<8x1xf32>
      %cst_10 = arith.constant 9.99999997E-7 : f32
      %14 = vector.broadcast %cst_10 : f32 to vector<8x1xf32>
      %15 = arith.addf %13, %14 : vector<8x1xf32>
      %16 = math.rsqrt %15 : vector<8x1xf32>
      %17 = vector.broadcast %16 : vector<8x1xf32> to vector<8x32xf32>
      %18 = arith.mulf %8, %17 : vector<8x32xf32>
      %c0_11 = arith.constant 0 : index
      %c0_12 = arith.constant 0 : index
      %19 = vector.load %arg3[%c0_11, %c0_12] : memref<1x32xf32, #tpu.memory_space<vmem>>, vector<1x32xf32>
      %cst_13 = arith.constant 1.000000e+00 : f32
      %20 = vector.broadcast %cst_13 : f32 to vector<1x32xf32>
      %21 = arith.addf %20, %19 : vector<1x32xf32>
      %22 = vector.broadcast %21 : vector<1x32xf32> to vector<8x32xf32>
      %23 = arith.mulf %18, %22 : vector<8x32xf32>
      %24 = arith.truncf %23 : vector<8x32xf32> to vector<8x32xbf16>
      %c0_14 = arith.constant 0 : index
      %c0_15 = arith.constant 0 : index
      %25 = vector.load %arg6[%c0_14, %c0_15] : memref<8x32xbf16, #tpu.memory_space<vmem>>, vector<8x32xbf16>
      tpu.vector_store %arg6[%c0_14, %c0_15], %24 {strides = array<i32>} : memref<8x32xbf16, #tpu.memory_space<vmem>>, vector<8x32xbf16>,
    } else {
    }
    %c0 = arith.constant 0 : index
    %c0_1 = arith.constant 0 : index
    %3 = vector.load %arg6[%c0, %c0_1] : memref<8x32xbf16, #tpu.memory_space<vmem>>, vector<8x32xbf16>
    %c0_2 = arith.constant 0 : index
    %c0_3 = arith.constant 0 : index
    %4 = vector.load %arg4[%c0_2, %c0_3] : memref<32x128xbf16, #tpu.memory_space<vmem>>, vector<32x128xbf16>
    %cst = arith.constant dense<0.000000e+00> : vector<8x128xf32>
    %5 = tpu.matmul %3, %4, %cst {dimension_numbers = #tpu.dot_dimension_numbers<[1], [0], [0], [1], [0, 0, 1, 1], [], []>} : vector<8x32xbf16>, vector<32x128xbf16>, vector<8x128xf32> -> vector<8x128xf32>
    %6 = arith.truncf %5 : vector<8x128xf32> to vector<8x128xbf16>
    %c0_4 = arith.constant 0 : index
    %c0_5 = arith.constant 0 : index
    %7 = vector.load %arg5[%c0_4, %c0_5] : memref<8x128xbf16, #tpu.memory_space<vmem>>, vector<8x128xbf16>
    tpu.vector_store %arg5[%c0_4, %c0_5], %6 {strides = array<i32>} : memref<8x128xbf16, #tpu.memory_space<vmem>>, vector<8x128xbf16>,
    return
  }
  func.func @transform_0(%arg0: i32, %arg1: i32) -> (i32, i32) {
    %c0_i32 = arith.constant 0 : i32
    %c0_i32_0 = arith.constant 0 : i32
    return %arg0, %c0_i32 : i32, i32
  }
  func.func @transform_1(%arg0: i32, %arg1: i32) -> (i32, i32) {
    %c0_i32 = arith.constant 0 : i32
    %c0_i32_0 = arith.constant 0 : i32
    %c0_i32_1 = arith.constant 0 : i32
    return %c0_i32, %c0_i32_0 : i32, i32
  }
  func.func @transform_2(%arg0: i32, %arg1: i32) -> (i32, i32) {
    %c0_i32 = arith.constant 0 : i32
    %c0_i32_0 = arith.constant 0 : i32
    return %c0_i32, %arg1 : i32, i32
  }
  func.func @transform_3(%arg0: i32, %arg1: i32) -> (i32, i32) {
    %c0_i32 = arith.constant 0 : i32
    return %arg0, %arg1 : i32, i32
  }
}

module attributes {stable_mosaic.version = 11 : i64} {
  func.func @_rms_mlp_kernel(%arg0: i32, %arg1: memref<8x32xf32, #tpu.memory_space<vmem>>, %arg2: memref<1x32xf32, #tpu.memory_space<vmem>>, %arg3: memref<32x128xbf16, #tpu.memory_space<vmem>>, %arg4: memref<64x32xbf16, #tpu.memory_space<vmem>>, %arg5: memref<8x32xf32, #tpu.memory_space<vmem>>) attributes {dimension_semantics = [#tpu.dimension_semantics<parallel>], iteration_bounds = array<i64: 2>, scalar_prefetch = 0 : i64, scratch_operands = 0 : i64, tpu.core_type = #tpu.core_type<tc>, window_params = [{transform_indices = @transform_0, window_bounds = array<i64: 8, 32>}, {pipeline_mode = #tpu.pipeline_mode<synchronous>, transform_indices = @transform_1, window_bounds = array<i64: 1, 32>}, {pipeline_mode = #tpu.pipeline_mode<synchronous>, transform_indices = @transform_2, window_bounds = array<i64: 32, 128>}, {pipeline_mode = #tpu.pipeline_mode<synchronous>, transform_indices = @transform_3, window_bounds = array<i64: 64, 32>}, {transform_indices = @transform_4, window_bounds = array<i64: 8, 32>}]} {
    %c0 = arith.constant 0 : index
    %c0_0 = arith.constant 0 : index
    %0 = vector.load %arg1[%c0, %c0_0] : memref<8x32xf32, #tpu.memory_space<vmem>>, vector<8x32xf32>
    %1 = arith.mulf %0, %0 : vector<8x32xf32>
    %cst = arith.constant dense<0.000000e+00> : vector<8xf32>
    %2 = vector.multi_reduction <add>, %1, %cst [1] : vector<8x32xf32> to vector<8xf32>
    %3 = vector.shape_cast %2 : vector<8xf32> to vector<8x1xf32>
    %cst_1 = arith.constant 3.200000e+01 : f32
    %4 = vector.broadcast %cst_1 : f32 to vector<8x1xf32>
    %5 = arith.divf %3, %4 : vector<8x1xf32>
    %cst_2 = arith.constant 9.99999997E-7 : f32
    %6 = vector.broadcast %cst_2 : f32 to vector<8x1xf32>
    %7 = arith.addf %5, %6 : vector<8x1xf32>
    %8 = math.rsqrt %7 : vector<8x1xf32>
    %9 = vector.broadcast %8 : vector<8x1xf32> to vector<8x32xf32>
    %10 = arith.mulf %0, %9 : vector<8x32xf32>
    %c0_3 = arith.constant 0 : index
    %c0_4 = arith.constant 0 : index
    %11 = vector.load %arg2[%c0_3, %c0_4] : memref<1x32xf32, #tpu.memory_space<vmem>>, vector<1x32xf32>
    %cst_5 = arith.constant 1.000000e+00 : f32
    %12 = vector.broadcast %cst_5 : f32 to vector<1x32xf32>
    %13 = arith.addf %12, %11 : vector<1x32xf32>
    %14 = vector.broadcast %13 : vector<1x32xf32> to vector<8x32xf32>
    %15 = arith.mulf %10, %14 : vector<8x32xf32>
    %16 = arith.truncf %15 : vector<8x32xf32> to vector<8x32xbf16>
    %c0_6 = arith.constant 0 : index
    %c0_7 = arith.constant 0 : index
    %17 = vector.load %arg3[%c0_6, %c0_7] : memref<32x128xbf16, #tpu.memory_space<vmem>>, vector<32x128xbf16>
    %cst_8 = arith.constant dense<0.000000e+00> : vector<8x128xf32>
    %18 = tpu.matmul %16, %17, %cst_8 {dimension_numbers = #tpu.dot_dimension_numbers<[1], [0], [0], [1], [0, 0, 1, 1], [], []>} : vector<8x32xbf16>, vector<32x128xbf16>, vector<8x128xf32> -> vector<8x128xf32>
    %19 = vector.extract_strided_slice %18 {offsets = [0, 0], sizes = [8, 64], strides = [1, 1]} : vector<8x128xf32> to vector<8x64xf32>
    %cst_9 = arith.constant 5.000000e-01 : f32
    %20 = vector.broadcast %cst_9 : f32 to vector<8x64xf32>
    %21 = arith.mulf %20, %19 : vector<8x64xf32>
    %cst_10 = arith.constant 4.471500e-02 : f32
    %22 = vector.broadcast %cst_10 : f32 to vector<8x64xf32>
    %23 = arith.mulf %22, %19 : vector<8x64xf32>
    %24 = arith.mulf %23, %19 : vector<8x64xf32>
    %25 = arith.mulf %24, %19 : vector<8x64xf32>
    %26 = arith.addf %19, %25 : vector<8x64xf32>
    %cst_11 = arith.constant 0.797884583 : f32
    %27 = vector.broadcast %cst_11 : f32 to vector<8x64xf32>
    %28 = arith.mulf %27, %26 : vector<8x64xf32>
    %29 = math.tanh %28 : vector<8x64xf32>
    %cst_12 = arith.constant 1.000000e+00 : f32
    %30 = vector.broadcast %cst_12 : f32 to vector<8x64xf32>
    %31 = arith.addf %30, %29 : vector<8x64xf32>
    %32 = arith.mulf %21, %31 : vector<8x64xf32>
    %33 = vector.extract_strided_slice %18 {offsets = [0, 64], sizes = [8, 64], strides = [1, 1]} : vector<8x128xf32> to vector<8x64xf32>
    %34 = arith.mulf %32, %33 : vector<8x64xf32>
    %35 = arith.truncf %34 : vector<8x64xf32> to vector<8x64xbf16>
    %c0_13 = arith.constant 0 : index
    %c0_14 = arith.constant 0 : index
    %36 = vector.load %arg4[%c0_13, %c0_14] : memref<64x32xbf16, #tpu.memory_space<vmem>>, vector<64x32xbf16>
    %cst_15 = arith.constant dense<0.000000e+00> : vector<8x32xf32>
    %37 = tpu.matmul %35, %36, %cst_15 {dimension_numbers = #tpu.dot_dimension_numbers<[1], [0], [0], [1], [0, 0, 1, 1], [], []>} : vector<8x64xbf16>, vector<64x32xbf16>, vector<8x32xf32> -> vector<8x32xf32>
    %38 = arith.addf %0, %37 : vector<8x32xf32>
    %c0_16 = arith.constant 0 : index
    %c0_17 = arith.constant 0 : index
    %39 = vector.load %arg5[%c0_16, %c0_17] : memref<8x32xf32, #tpu.memory_space<vmem>>, vector<8x32xf32>
    tpu.vector_store %arg5[%c0_16, %c0_17], %38 {strides = array<i32>} : memref<8x32xf32, #tpu.memory_space<vmem>>, vector<8x32xf32>,
    return
  }
  func.func @transform_0(%arg0: i32) -> (i32, i32) {
    %c0_i32 = arith.constant 0 : i32
    %c0_i32_0 = arith.constant 0 : i32
    return %arg0, %c0_i32 : i32, i32
  }
  func.func @transform_1(%arg0: i32) -> (i32, i32) {
    %c0_i32 = arith.constant 0 : i32
    %c0_i32_0 = arith.constant 0 : i32
    %c0_i32_1 = arith.constant 0 : i32
    return %c0_i32, %c0_i32_0 : i32, i32
  }
  func.func @transform_2(%arg0: i32) -> (i32, i32) {
    %c0_i32 = arith.constant 0 : i32
    %c0_i32_0 = arith.constant 0 : i32
    %c0_i32_1 = arith.constant 0 : i32
    return %c0_i32, %c0_i32_0 : i32, i32
  }
  func.func @transform_3(%arg0: i32) -> (i32, i32) {
    %c0_i32 = arith.constant 0 : i32
    %c0_i32_0 = arith.constant 0 : i32
    %c0_i32_1 = arith.constant 0 : i32
    return %c0_i32, %c0_i32_0 : i32, i32
  }
  func.func @transform_4(%arg0: i32) -> (i32, i32) {
    %c0_i32 = arith.constant 0 : i32
    %c0_i32_0 = arith.constant 0 : i32
    return %arg0, %c0_i32 : i32, i32
  }
}

module attributes {stable_mosaic.version = 11 : i64} {
  func.func @_fused_attn_kernel(%arg0: i32, %arg1: memref<1x8x128xbf16, #tpu.memory_space<vmem>>, %arg2: memref<1x8x16xf32, #tpu.memory_space<vmem>>, %arg3: memref<1x8x16xf32, #tpu.memory_space<vmem>>, %arg4: memref<64x32xbf16, #tpu.memory_space<vmem>>, %arg5: memref<1x8x32xf32, #tpu.memory_space<vmem>>, %arg6: memref<1x8x32xf32, #tpu.memory_space<vmem>>) attributes {dimension_semantics = [#tpu.dimension_semantics<parallel>], iteration_bounds = array<i64: 2>, scalar_prefetch = 0 : i64, scratch_operands = 0 : i64, tpu.core_type = #tpu.core_type<tc>, window_params = [{transform_indices = @transform_0, window_bounds = array<i64: 1, 8, 128>}, {transform_indices = @transform_1, window_bounds = array<i64: 1, 8, 16>}, {transform_indices = @transform_2, window_bounds = array<i64: 1, 8, 16>}, {pipeline_mode = #tpu.pipeline_mode<synchronous>, transform_indices = @transform_3, window_bounds = array<i64: 64, 32>}, {transform_indices = @transform_4, window_bounds = array<i64: 1, 8, 32>}, {transform_indices = @transform_5, window_bounds = array<i64: 1, 8, 32>}]} {
    %c0 = arith.constant 0 : index
    %c0_0 = arith.constant 0 : index
    %c0_1 = arith.constant 0 : index
    %0 = vector.load %arg1[%c0, %c0_0, %c0_1] : memref<1x8x128xbf16, #tpu.memory_space<vmem>>, vector<1x8x128xbf16>
    %1 = vector.shape_cast %0 : vector<1x8x128xbf16> to vector<8x128xbf16>
    %2 = arith.extf %1 : vector<8x128xbf16> to vector<8x128xf32>
    %c0_2 = arith.constant 0 : index
    %c0_3 = arith.constant 0 : index
    %c0_4 = arith.constant 0 : index
    %3 = vector.load %arg2[%c0_2, %c0_3, %c0_4] : memref<1x8x16xf32, #tpu.memory_space<vmem>>, vector<1x8x16xf32>
    %4 = vector.shape_cast %3 : vector<1x8x16xf32> to vector<8x16xf32>
    %c0_5 = arith.constant 0 : index
    %c0_6 = arith.constant 0 : index
    %c0_7 = arith.constant 0 : index
    %5 = vector.load %arg3[%c0_5, %c0_6, %c0_7] : memref<1x8x16xf32, #tpu.memory_space<vmem>>, vector<1x8x16xf32>
    %6 = vector.shape_cast %5 : vector<1x8x16xf32> to vector<8x16xf32>
    %7 = vector.extract_strided_slice %2 {offsets = [0, 64], sizes = [8, 16], strides = [1, 1]} : vector<8x128xf32> to vector<8x16xf32>
    %8 = vector.extract_strided_slice %2 {offsets = [0, 96], sizes = [8, 16], strides = [1, 1]} : vector<8x128xf32> to vector<8x16xf32>
    %9 = arith.mulf %7, %6 : vector<8x16xf32>
    %10 = arith.truncf %9 : vector<8x16xf32> to vector<8x16xbf16>
    %11 = arith.truncf %8 : vector<8x16xf32> to vector<8x16xbf16>
    %12 = vector.extract_strided_slice %2 {offsets = [0, 0], sizes = [8, 16], strides = [1, 1]} : vector<8x128xf32> to vector<8x16xf32>
    %13 = arith.mulf %12, %4 : vector<8x16xf32>
    %14 = arith.truncf %13 : vector<8x16xf32> to vector<8x16xbf16>
    %cst = arith.constant dense<0.000000e+00> : vector<8x8xf32>
    %15 = tpu.matmul %14, %10, %cst {dimension_numbers = #tpu.dot_dimension_numbers<[1], [1], [0], [0], [0, 0, 1, 0], [], []>} : vector<8x16xbf16>, vector<8x16xbf16>, vector<8x8xf32> -> vector<8x8xf32>
    %cst_8 = arith.constant dense<0xFF800000> : vector<8xf32>
    %16 = vector.multi_reduction <maximumf>, %15, %cst_8 [1] : vector<8x8xf32> to vector<8xf32>
    %17 = vector.shape_cast %16 : vector<8xf32> to vector<8x1xf32>
    %18 = vector.broadcast %17 : vector<8x1xf32> to vector<8x8xf32>
    %19 = arith.subf %15, %18 : vector<8x8xf32>
    %20 = math.exp %19 : vector<8x8xf32>
    %cst_9 = arith.constant dense<0.000000e+00> : vector<8xf32>
    %21 = vector.multi_reduction <add>, %20, %cst_9 [1] : vector<8x8xf32> to vector<8xf32>
    %22 = vector.shape_cast %21 : vector<8xf32> to vector<8x1xf32>
    %23 = tpu.reciprocal %22 {approx = true} : vector<8x1xf32> -> vector<8x1xf32>
    %24 = vector.broadcast %23 : vector<8x1xf32> to vector<8x8xf32>
    %25 = arith.mulf %20, %24 : vector<8x8xf32>
    %26 = arith.truncf %25 : vector<8x8xf32> to vector<8x8xbf16>
    %cst_10 = arith.constant dense<0.000000e+00> : vector<8x16xf32>
    %27 = tpu.matmul %26, %11, %cst_10 {dimension_numbers = #tpu.dot_dimension_numbers<[1], [0], [0], [1], [0, 0, 1, 1], [], []>} : vector<8x8xbf16>, vector<8x16xbf16>, vector<8x16xf32> -> vector<8x16xf32>
    %28 = vector.extract_strided_slice %2 {offsets = [0, 16], sizes = [8, 16], strides = [1, 1]} : vector<8x128xf32> to vector<8x16xf32>
    %29 = arith.mulf %28, %4 : vector<8x16xf32>
    %30 = arith.truncf %29 : vector<8x16xf32> to vector<8x16xbf16>
    %cst_11 = arith.constant dense<0.000000e+00> : vector<8x8xf32>
    %31 = tpu.matmul %30, %10, %cst_11 {dimension_numbers = #tpu.dot_dimension_numbers<[1], [1], [0], [0], [0, 0, 1, 0], [], []>} : vector<8x16xbf16>, vector<8x16xbf16>, vector<8x8xf32> -> vector<8x8xf32>
    %cst_12 = arith.constant dense<0xFF800000> : vector<8xf32>
    %32 = vector.multi_reduction <maximumf>, %31, %cst_12 [1] : vector<8x8xf32> to vector<8xf32>
    %33 = vector.shape_cast %32 : vector<8xf32> to vector<8x1xf32>
    %34 = vector.broadcast %33 : vector<8x1xf32> to vector<8x8xf32>
    %35 = arith.subf %31, %34 : vector<8x8xf32>
    %36 = math.exp %35 : vector<8x8xf32>
    %cst_13 = arith.constant dense<0.000000e+00> : vector<8xf32>
    %37 = vector.multi_reduction <add>, %36, %cst_13 [1] : vector<8x8xf32> to vector<8xf32>
    %38 = vector.shape_cast %37 : vector<8xf32> to vector<8x1xf32>
    %39 = tpu.reciprocal %38 {approx = true} : vector<8x1xf32> -> vector<8x1xf32>
    %40 = vector.broadcast %39 : vector<8x1xf32> to vector<8x8xf32>
    %41 = arith.mulf %36, %40 : vector<8x8xf32>
    %42 = arith.truncf %41 : vector<8x8xf32> to vector<8x8xbf16>
    %cst_14 = arith.constant dense<0.000000e+00> : vector<8x16xf32>
    %43 = tpu.matmul %42, %11, %cst_14 {dimension_numbers = #tpu.dot_dimension_numbers<[1], [0], [0], [1], [0, 0, 1, 1], [], []>} : vector<8x8xbf16>, vector<8x16xbf16>, vector<8x16xf32> -> vector<8x16xf32>
    %44 = vector.extract_strided_slice %2 {offsets = [0, 80], sizes = [8, 16], strides = [1, 1]} : vector<8x128xf32> to vector<8x16xf32>
    %45 = vector.extract_strided_slice %2 {offsets = [0, 112], sizes = [8, 16], strides = [1, 1]} : vector<8x128xf32> to vector<8x16xf32>
    %46 = arith.mulf %44, %6 : vector<8x16xf32>
    %47 = arith.truncf %46 : vector<8x16xf32> to vector<8x16xbf16>
    %48 = arith.truncf %45 : vector<8x16xf32> to vector<8x16xbf16>
    %49 = vector.extract_strided_slice %2 {offsets = [0, 32], sizes = [8, 16], strides = [1, 1]} : vector<8x128xf32> to vector<8x16xf32>
    %50 = arith.mulf %49, %4 : vector<8x16xf32>
    %51 = arith.truncf %50 : vector<8x16xf32> to vector<8x16xbf16>
    %cst_15 = arith.constant dense<0.000000e+00> : vector<8x8xf32>
    %52 = tpu.matmul %51, %47, %cst_15 {dimension_numbers = #tpu.dot_dimension_numbers<[1], [1], [0], [0], [0, 0, 1, 0], [], []>} : vector<8x16xbf16>, vector<8x16xbf16>, vector<8x8xf32> -> vector<8x8xf32>
    %cst_16 = arith.constant dense<0xFF800000> : vector<8xf32>
    %53 = vector.multi_reduction <maximumf>, %52, %cst_16 [1] : vector<8x8xf32> to vector<8xf32>
    %54 = vector.shape_cast %53 : vector<8xf32> to vector<8x1xf32>
    %55 = vector.broadcast %54 : vector<8x1xf32> to vector<8x8xf32>
    %56 = arith.subf %52, %55 : vector<8x8xf32>
    %57 = math.exp %56 : vector<8x8xf32>
    %cst_17 = arith.constant dense<0.000000e+00> : vector<8xf32>
    %58 = vector.multi_reduction <add>, %57, %cst_17 [1] : vector<8x8xf32> to vector<8xf32>
    %59 = vector.shape_cast %58 : vector<8xf32> to vector<8x1xf32>
    %60 = tpu.reciprocal %59 {approx = true} : vector<8x1xf32> -> vector<8x1xf32>
    %61 = vector.broadcast %60 : vector<8x1xf32> to vector<8x8xf32>
    %62 = arith.mulf %57, %61 : vector<8x8xf32>
    %63 = arith.truncf %62 : vector<8x8xf32> to vector<8x8xbf16>
    %cst_18 = arith.constant dense<0.000000e+00> : vector<8x16xf32>
    %64 = tpu.matmul %63, %48, %cst_18 {dimension_numbers = #tpu.dot_dimension_numbers<[1], [0], [0], [1], [0, 0, 1, 1], [], []>} : vector<8x8xbf16>, vector<8x16xbf16>, vector<8x16xf32> -> vector<8x16xf32>
    %65 = vector.extract_strided_slice %2 {offsets = [0, 48], sizes = [8, 16], strides = [1, 1]} : vector<8x128xf32> to vector<8x16xf32>
    %66 = arith.mulf %65, %4 : vector<8x16xf32>
    %67 = arith.truncf %66 : vector<8x16xf32> to vector<8x16xbf16>
    %cst_19 = arith.constant dense<0.000000e+00> : vector<8x8xf32>
    %68 = tpu.matmul %67, %47, %cst_19 {dimension_numbers = #tpu.dot_dimension_numbers<[1], [1], [0], [0], [0, 0, 1, 0], [], []>} : vector<8x16xbf16>, vector<8x16xbf16>, vector<8x8xf32> -> vector<8x8xf32>
    %cst_20 = arith.constant dense<0xFF800000> : vector<8xf32>
    %69 = vector.multi_reduction <maximumf>, %68, %cst_20 [1] : vector<8x8xf32> to vector<8xf32>
    %70 = vector.shape_cast %69 : vector<8xf32> to vector<8x1xf32>
    %71 = vector.broadcast %70 : vector<8x1xf32> to vector<8x8xf32>
    %72 = arith.subf %68, %71 : vector<8x8xf32>
    %73 = math.exp %72 : vector<8x8xf32>
    %cst_21 = arith.constant dense<0.000000e+00> : vector<8xf32>
    %74 = vector.multi_reduction <add>, %73, %cst_21 [1] : vector<8x8xf32> to vector<8xf32>
    %75 = vector.shape_cast %74 : vector<8xf32> to vector<8x1xf32>
    %76 = tpu.reciprocal %75 {approx = true} : vector<8x1xf32> -> vector<8x1xf32>
    %77 = vector.broadcast %76 : vector<8x1xf32> to vector<8x8xf32>
    %78 = arith.mulf %73, %77 : vector<8x8xf32>
    %79 = arith.truncf %78 : vector<8x8xf32> to vector<8x8xbf16>
    %cst_22 = arith.constant dense<0.000000e+00> : vector<8x16xf32>
    %80 = tpu.matmul %79, %48, %cst_22 {dimension_numbers = #tpu.dot_dimension_numbers<[1], [0], [0], [1], [0, 0, 1, 1], [], []>} : vector<8x8xbf16>, vector<8x16xbf16>, vector<8x16xf32> -> vector<8x16xf32>
    %81 = tpu.concatenate %27, %43, %64, %80 in 1 : vector<8x16xf32>, vector<8x16xf32>, vector<8x16xf32>, vector<8x16xf32> -> vector<8x64xf32>
    %82 = arith.truncf %81 : vector<8x64xf32> to vector<8x64xbf16>
    %c0_23 = arith.constant 0 : index
    %c0_24 = arith.constant 0 : index
    %83 = vector.load %arg4[%c0_23, %c0_24] : memref<64x32xbf16, #tpu.memory_space<vmem>>, vector<64x32xbf16>
    %cst_25 = arith.constant dense<0.000000e+00> : vector<8x32xf32>
    %84 = tpu.matmul %82, %83, %cst_25 {dimension_numbers = #tpu.dot_dimension_numbers<[1], [0], [0], [1], [0, 0, 1, 1], [], []>} : vector<8x64xbf16>, vector<64x32xbf16>, vector<8x32xf32> -> vector<8x32xf32>
    %c0_26 = arith.constant 0 : index
    %c0_27 = arith.constant 0 : index
    %c0_28 = arith.constant 0 : index
    %85 = vector.load %arg5[%c0_26, %c0_27, %c0_28] : memref<1x8x32xf32, #tpu.memory_space<vmem>>, vector<1x8x32xf32>
    %86 = vector.shape_cast %85 : vector<1x8x32xf32> to vector<8x32xf32>
    %87 = arith.addf %84, %86 : vector<8x32xf32>
    %c0_29 = arith.constant 0 : index
    %c0_30 = arith.constant 0 : index
    %c0_31 = arith.constant 0 : index
    %88 = vector.load %arg6[%c0_29, %c0_30, %c0_31] : memref<1x8x32xf32, #tpu.memory_space<vmem>>, vector<1x8x32xf32>
    %89 = vector.shape_cast %88 : vector<1x8x32xf32> to vector<8x32xf32>
    %90 = vector.shape_cast %87 : vector<8x32xf32> to vector<1x8x32xf32>
    tpu.vector_store %arg6[%c0_29, %c0_30, %c0_31], %90 {strides = array<i32>} : memref<1x8x32xf32, #tpu.memory_space<vmem>>, vector<1x8x32xf32>,
    return
  }
  func.func @transform_0(%arg0: i32) -> (i32, i32, i32) {
    %c0_i32 = arith.constant 0 : i32
    %c0_i32_0 = arith.constant 0 : i32
    %c0_i32_1 = arith.constant 0 : i32
    return %arg0, %c0_i32, %c0_i32_0 : i32, i32, i32
  }
  func.func @transform_1(%arg0: i32) -> (i32, i32, i32) {
    %c0_i32 = arith.constant 0 : i32
    %c0_i32_0 = arith.constant 0 : i32
    %c0_i32_1 = arith.constant 0 : i32
    return %arg0, %c0_i32, %c0_i32_0 : i32, i32, i32
  }
  func.func @transform_2(%arg0: i32) -> (i32, i32, i32) {
    %c0_i32 = arith.constant 0 : i32
    %c0_i32_0 = arith.constant 0 : i32
    %c0_i32_1 = arith.constant 0 : i32
    return %arg0, %c0_i32, %c0_i32_0 : i32, i32, i32
  }
  func.func @transform_3(%arg0: i32) -> (i32, i32) {
    %c0_i32 = arith.constant 0 : i32
    %c0_i32_0 = arith.constant 0 : i32
    %c0_i32_1 = arith.constant 0 : i32
    return %c0_i32, %c0_i32_0 : i32, i32
  }
  func.func @transform_4(%arg0: i32) -> (i32, i32, i32) {
    %c0_i32 = arith.constant 0 : i32
    %c0_i32_0 = arith.constant 0 : i32
    %c0_i32_1 = arith.constant 0 : i32
    return %arg0, %c0_i32, %c0_i32_0 : i32, i32, i32
  }
  func.func @transform_5(%arg0: i32) -> (i32, i32, i32) {
    %c0_i32 = arith.constant 0 : i32
    %c0_i32_0 = arith.constant 0 : i32
    %c0_i32_1 = arith.constant 0 : i32
    return %arg0, %c0_i32, %c0_i32_0 : i32, i32, i32
  }
}

module attributes {stable_mosaic.version = 11 : i64} {
  func.func @_rms_linear_kernel(%arg0: i32, %arg1: i32, %arg2: memref<8x32xf32, #tpu.memory_space<vmem>>, %arg3: memref<1x32xf32, #tpu.memory_space<vmem>>, %arg4: memref<32x128xbf16, #tpu.memory_space<vmem>>, %arg5: memref<1x128xf32, #tpu.memory_space<vmem>>, %arg6: memref<8x128xf32, #tpu.memory_space<vmem>>, %arg7: memref<8x32xbf16, #tpu.memory_space<vmem>>) attributes {dimension_semantics = [#tpu.dimension_semantics<parallel>, #tpu.dimension_semantics<arbitrary>], iteration_bounds = array<i64: 2, 1>, scalar_prefetch = 0 : i64, scratch_operands = 1 : i64, tpu.core_type = #tpu.core_type<tc>, window_params = [{transform_indices = @transform_0, window_bounds = array<i64: 8, 32>}, {pipeline_mode = #tpu.pipeline_mode<synchronous>, transform_indices = @transform_1, window_bounds = array<i64: 1, 32>}, {transform_indices = @transform_2, window_bounds = array<i64: 32, 128>}, {transform_indices = @transform_3, window_bounds = array<i64: 1, 128>}, {transform_indices = @transform_4, window_bounds = array<i64: 8, 128>}]} {
    %c0_i32 = arith.constant 0 : i32
    %0 = arith.cmpi eq, %arg1, %c0_i32 : i32
    %1 = arith.extui %0 : i1 to i32
    %c0_i32_0 = arith.constant 0 : i32
    %2 = arith.cmpi ne, %1, %c0_i32_0 : i32
    scf.if %2 {
      %c0_8 = arith.constant 0 : index
      %c0_9 = arith.constant 0 : index
      %10 = vector.load %arg2[%c0_8, %c0_9] : memref<8x32xf32, #tpu.memory_space<vmem>>, vector<8x32xf32>
      %11 = arith.mulf %10, %10 : vector<8x32xf32>
      %cst_10 = arith.constant dense<0.000000e+00> : vector<8xf32>
      %12 = vector.multi_reduction <add>, %11, %cst_10 [1] : vector<8x32xf32> to vector<8xf32>
      %13 = vector.shape_cast %12 : vector<8xf32> to vector<8x1xf32>
      %cst_11 = arith.constant 3.200000e+01 : f32
      %14 = vector.broadcast %cst_11 : f32 to vector<8x1xf32>
      %15 = arith.divf %13, %14 : vector<8x1xf32>
      %cst_12 = arith.constant 9.99999997E-7 : f32
      %16 = vector.broadcast %cst_12 : f32 to vector<8x1xf32>
      %17 = arith.addf %15, %16 : vector<8x1xf32>
      %18 = math.rsqrt %17 : vector<8x1xf32>
      %19 = vector.broadcast %18 : vector<8x1xf32> to vector<8x32xf32>
      %20 = arith.mulf %10, %19 : vector<8x32xf32>
      %c0_13 = arith.constant 0 : index
      %c0_14 = arith.constant 0 : index
      %21 = vector.load %arg3[%c0_13, %c0_14] : memref<1x32xf32, #tpu.memory_space<vmem>>, vector<1x32xf32>
      %cst_15 = arith.constant 1.000000e+00 : f32
      %22 = vector.broadcast %cst_15 : f32 to vector<1x32xf32>
      %23 = arith.addf %22, %21 : vector<1x32xf32>
      %24 = vector.broadcast %23 : vector<1x32xf32> to vector<8x32xf32>
      %25 = arith.mulf %20, %24 : vector<8x32xf32>
      %26 = arith.truncf %25 : vector<8x32xf32> to vector<8x32xbf16>
      %c0_16 = arith.constant 0 : index
      %c0_17 = arith.constant 0 : index
      %27 = vector.load %arg7[%c0_16, %c0_17] : memref<8x32xbf16, #tpu.memory_space<vmem>>, vector<8x32xbf16>
      tpu.vector_store %arg7[%c0_16, %c0_17], %26 {strides = array<i32>} : memref<8x32xbf16, #tpu.memory_space<vmem>>, vector<8x32xbf16>,
    } else {
    }
    %c0 = arith.constant 0 : index
    %c0_1 = arith.constant 0 : index
    %3 = vector.load %arg7[%c0, %c0_1] : memref<8x32xbf16, #tpu.memory_space<vmem>>, vector<8x32xbf16>
    %c0_2 = arith.constant 0 : index
    %c0_3 = arith.constant 0 : index
    %4 = vector.load %arg4[%c0_2, %c0_3] : memref<32x128xbf16, #tpu.memory_space<vmem>>, vector<32x128xbf16>
    %cst = arith.constant dense<0.000000e+00> : vector<8x128xf32>
    %5 = tpu.matmul %3, %4, %cst {dimension_numbers = #tpu.dot_dimension_numbers<[1], [0], [0], [1], [0, 0, 1, 1], [], []>} : vector<8x32xbf16>, vector<32x128xbf16>, vector<8x128xf32> -> vector<8x128xf32>
    %c0_4 = arith.constant 0 : index
    %c0_5 = arith.constant 0 : index
    %6 = vector.load %arg5[%c0_4, %c0_5] : memref<1x128xf32, #tpu.memory_space<vmem>>, vector<1x128xf32>
    %7 = vector.broadcast %6 : vector<1x128xf32> to vector<8x128xf32>
    %8 = arith.addf %5, %7 : vector<8x128xf32>
    %c0_6 = arith.constant 0 : index
    %c0_7 = arith.constant 0 : index
    %9 = vector.load %arg6[%c0_6, %c0_7] : memref<8x128xf32, #tpu.memory_space<vmem>>, vector<8x128xf32>
    tpu.vector_store %arg6[%c0_6, %c0_7], %8 {strides = array<i32>} : memref<8x128xf32, #tpu.memory_space<vmem>>, vector<8x128xf32>,
    return
  }
  func.func @transform_0(%arg0: i32, %arg1: i32) -> (i32, i32) {
    %c0_i32 = arith.constant 0 : i32
    %c0_i32_0 = arith.constant 0 : i32
    return %arg0, %c0_i32 : i32, i32
  }
  func.func @transform_1(%arg0: i32, %arg1: i32) -> (i32, i32) {
    %c0_i32 = arith.constant 0 : i32
    %c0_i32_0 = arith.constant 0 : i32
    %c0_i32_1 = arith.constant 0 : i32
    return %c0_i32, %c0_i32_0 : i32, i32
  }
  func.func @transform_2(%arg0: i32, %arg1: i32) -> (i32, i32) {
    %c0_i32 = arith.constant 0 : i32
    %c0_i32_0 = arith.constant 0 : i32
    return %c0_i32, %arg1 : i32, i32
  }
  func.func @transform_3(%arg0: i32, %arg1: i32) -> (i32, i32) {
    %c0_i32 = arith.constant 0 : i32
    %c0_i32_0 = arith.constant 0 : i32
    return %c0_i32, %arg1 : i32, i32
  }
  func.func @transform_4(%arg0: i32, %arg1: i32) -> (i32, i32) {
    %c0_i32 = arith.constant 0 : i32
    return %arg0, %arg1 : i32, i32
  }
}

</mosaic_0001>

<llo_original>
// kernel: paligemma_forward.15
$region0: #{paligemma_forward.15}
  #allocation0 [shape = 'u32[]', space=smem, size = 0x4, offset = 0x4, fixed_abs, tag = 'smem constant byte address 0x4 - core index']
  #allocation1 [shape = 'u32[144,128]{1,0:T(1,128)}', space=vmem, size = 0x12000, scoped, tag = 'internal scratch']
  %s0 = inlined_call_operand.vmem [shape: f32[8,192], index: 0, kind: input, shape index: {}]
  %s1 = inlined_call_operand.vmem [shape: bf16[192,32], index: 1, kind: input, shape index: {}]
  %s2 = inlined_call_operand.vmem [shape: f32[1,32], index: 2, kind: input, shape index: {}]
  %s3 = inlined_call_operand.vmem [shape: f32[8,32], index: 3, kind: output, shape index: {}]
  %s4 = sld [smem:[#allocation0]]
  $region22: #{paligemma_forward.15} parent=0
    _
  %s6 = ssub.s32 1, %s4
  %s7 = scalar_select 0, %s6, %s4
  // Predicated region
  $region2: #{paligemma_forward.15} parent=0 // pred_check
    _
  $region3: #{paligemma_forward.15} parent=0 // pred_check_branch
    %9 = sbr.rel (0) target = $region5
  $region4: #{paligemma_forward.15} parent=0 // pred_region
    _
  $region5: #{paligemma_forward.15} parent=0 // pred_fallthru
    _
  // Predicated region
  $region6: #{paligemma_forward.15} parent=0 // pred_check
    _
  $region7: #{paligemma_forward.15} parent=0 // pred_check_branch
    %11 = sbr.rel (0) target = $region9
  $region8: #{paligemma_forward.15} parent=0 // pred_region
    _
  $region9: #{paligemma_forward.15} parent=0 // pred_fallthru
    _
  // Predicated region
  $region10: #{paligemma_forward.15} parent=0 // pred_check
    _
  $region11: #{paligemma_forward.15} parent=0 // pred_check_branch
    %13 = sbr.rel (0) target = $region13
  $region12: #{paligemma_forward.15} parent=0 // pred_region
    _
  $region13: #{paligemma_forward.15} parent=0 // pred_fallthru
    _
  %v15 = vld [vmem:[%s0] sm:$0xff]
  %v16 = vld [vmem:[%s0 + $0x8] sm:$0xff]
  %v17 = vpack.c.bf16 %v15, %v15
  %v18 = vpack.c.bf16 %v16, %v16
  %v19 = vld [vmem:[%s1] sm:$0xf]
  %v20 = vld [vmem:[%s1 + $0x4] sm:$0xf]
  %v21 = vld [vmem:[%s1 + $0x8] sm:$0xf]
  %v22 = vld [vmem:[%s1 + $0xc] sm:$0xf]
  %v23 = vld [vmem:[%s1 + $0x10] sm:$0xf]
  %v24 = vld [vmem:[%s1 + $0x14] sm:$0xf]
  %v25 = vld [vmem:[%s1 + $0x18] sm:$0xf]
  %v26 = vld [vmem:[%s1 + $0x1c] sm:$0xf]
  %v27 = vld [vmem:[%s1 + $0x20] sm:$0xf]
  %v28 = vld [vmem:[%s1 + $0x24] sm:$0xf]
  %v29 = vld [vmem:[%s1 + $0x28] sm:$0xf]
  %v30 = vld [vmem:[%s1 + $0x2c] sm:$0xf]
  %v31 = vld [vmem:[%s1 + $0x30] sm:$0xf]
  %v32 = vld [vmem:[%s1 + $0x34] sm:$0xf]
  %v33 = vld [vmem:[%s1 + $0x38] sm:$0xf]
  %v34 = vld [vmem:[%s1 + $0x3c] sm:$0xf]
  %v35 = vld [vmem:[%s1 + $0x40] sm:$0xf]
  %v36 = vld [vmem:[%s1 + $0x44] sm:$0xf]
  %v37 = vld [vmem:[%s1 + $0x48] sm:$0xf]
  %v38 = vld [vmem:[%s1 + $0x4c] sm:$0xf]
  %v39 = vld [vmem:[%s1 + $0x50] sm:$0xf]
  %v40 = vld [vmem:[%s1 + $0x54] sm:$0xf]
  %v41 = vld [vmem:[%s1 + $0x58] sm:$0xf]
  %v42 = vld [vmem:[%s1 + $0x5c] sm:$0xf]
  %v43 = vld [vmem:[%s2] sm:$0x1]
  %v45 = vlaneseq
  %v46 = vshrl.u32 %v45, 7
  %v47 = vsub.s32 0, %v46
  %v48 = vrot.slane %v43, %v47
  %v74 = vunpack.c.l.b16 %v19
  %v75 = vunpack.c.l.b16 %v20
  %v76 = vunpack.c.l.b16 %v21
  %v77 = vunpack.c.l.b16 %v22
  %v78 = vunpack.c.l.b16 %v23
  %v79 = vunpack.c.l.b16 %v24
  %v80 = vunpack.c.l.b16 %v25
  %v81 = vunpack.c.l.b16 %v26
  %v82 = vunpack.c.l.b16 %v27
  %v83 = vunpack.c.l.b16 %v28
  %v84 = vunpack.c.l.b16 %v29
  %v85 = vunpack.c.l.b16 %v30
  %v86 = vunpack.c.l.b16 %v31
  %v87 = vunpack.c.l.b16 %v32
  %v88 = vunpack.c.l.b16 %v33
  %v89 = vunpack.c.l.b16 %v34
  %v90 = vunpack.c.l.b16 %v35
  %v91 = vunpack.c.l.b16 %v36
  %v92 = vunpack.c.l.b16 %v37
  %v93 = vunpack.c.l.b16 %v38
  %v94 = vunpack.c.l.b16 %v39
  %v95 = vunpack.c.l.b16 %v40
  %v96 = vunpack.c.l.b16 %v41
  %v97 = vunpack.c.l.b16 %v42
  %v98 = vpack.c.b16 %v75, %v74
  %v99 = vpack.c.b16 %v77, %v76
  %v100 = vpack.c.b16 %v79, %v78
  %v101 = vpack.c.b16 %v81, %v80
  %v102 = vpack.c.b16 %v83, %v82
  %v103 = vpack.c.b16 %v85, %v84
  %v104 = vpack.c.b16 %v87, %v86
  %v105 = vpack.c.b16 %v89, %v88
  %v106 = vpack.c.b16 %v91, %v90
  %v107 = vpack.c.b16 %v93, %v92
  %v108 = vpack.c.b16 %v95, %v94
  %v109 = vpack.c.b16 %v97, %v96
  %vm122 = vcmask 523264
  %v124 = vsel %vm122, %v18, 0
  %126 = vmatprep.subr.bf16.mxu0 0
  %127 = vmatpush1.bf16.msra.mxu0 %v98
  %128 = vmatprep.subr.bf16.mxu0 0
  %129 = vmatpush1.bf16.msra.mxu0 %v99
  %130 = vmatprep.subr.bf16.mxu0 0
  %131 = vmatpush1.bf16.msra.mxu0 %v100
  %132 = vmatprep.subr.bf16.mxu0 0
  %133 = vmatpush1.bf16.msra.mxu0 %v101
  %134 = vmatprep.subr.bf16.mxu0 0
  %135 = vmatpush1.bf16.msra.mxu0 %v102
  %136 = vmatprep.subr.bf16.mxu0 0
  %137 = vmatpush1.bf16.msra.mxu0 %v103
  %138 = vmatprep.subr.bf16.mxu0 0
  %139 = vmatpush1.bf16.msra.mxu0 %v104
  %140 = vmatprep.subr.bf16.mxu0 0
  %141 = vmatpush1.bf16.msra.mxu0 %v105
  %142 = vmatprep.subr.bf16.mxu0 0
  %143 = vmatpush1.bf16.msra.mxu0 %v106
  %144 = vmatprep.subr.bf16.mxu0 0
  %145 = vmatpush1.bf16.msra.mxu0 %v107
  %146 = vmatprep.subr.bf16.mxu0 0
  %147 = vmatpush1.bf16.msra.mxu0 %v108
  %148 = vmatprep.subr.bf16.mxu0 0
  %149 = vmatpush1.bf16.msra.mxu0 %v109
  %150 = vmatprep.subr.bf16.mxu0 0
  %151 = vmatpush1.bf16.msra.mxu0 0
  %152 = vmatprep.subr.bf16.mxu0 0
  %153 = vmatpush1.bf16.msra.mxu0 0
  %154 = vmatprep.subr.bf16.mxu0 0
  %155 = vmatpush1.bf16.msra.mxu0 0
  %156 = vmatprep.subr.bf16.mxu0 0
  %157 = vmatpush1.bf16.msra.mxu0 0
  %158 = vmatprep.mubr.bf16.mxu0 %v124
  %159 = vmatmul.mubr.bf16.gmra.mrb[0].mxu0 %v17
  %v160 = vpop.f32.mrb[0].mxu0
  %v161 = vadd.f32 %v48, %v160
  %v162 = vpop.f32.mrb[0].mxu0
  %v163 = vpop.f32.mrb[0].mxu0
  %v164 = vpop.f32.mrb[0].mxu0
  %165 = vdwg.mxu0
  %vm166 = vcmask 261120
  %167 = vst.msk [vmem:[%s3] sm:$0xff] %vm166, %v161
  // Predicated region
  $region14: #{paligemma_forward.15} parent=0 // pred_check
    _
  $region15: #{paligemma_forward.15} parent=0 // pred_check_branch
    %169 = sbr.rel (0) target = $region17
  $region16: #{paligemma_forward.15} parent=0 // pred_region
    _
  $region17: #{paligemma_forward.15} parent=0 // pred_fallthru
    _
  // Predicated region
  $region18: #{paligemma_forward.15} parent=0 // pred_check
    _
  $region19: #{paligemma_forward.15} parent=0 // pred_check_branch
    %171 = sbr.rel (0) target = $region21
  $region20: #{paligemma_forward.15} parent=0 // pred_region
    _
  $region21: #{paligemma_forward.15} parent=0 // pred_fallthru
    _

// kernel: paligemma_forward.16
$region0: #{paligemma_forward.16}
  #allocation0 [shape = 'u32[]', space=smem, size = 0x4, offset = 0x4, fixed_abs, tag = 'smem constant byte address 0x4 - core index']
  #allocation1 [shape = 'u32[144,128]{1,0:T(1,128)}', space=vmem, size = 0x12000, scoped, tag = 'internal scratch']
  #allocation2 [shape = 'bf16[8,32]{1,0:T(8,128)(2,1)}', space=vmem, size = 0x800, scoped, tag = 'scratch operand']
  %s0 = inlined_call_operand.vmem [shape: f32[8,32], index: 0, kind: input, shape index: {}]
  %s1 = inlined_call_operand.vmem [shape: f32[1,32], index: 1, kind: input, shape index: {}]
  %s2 = inlined_call_operand.vmem [shape: f32[1,32], index: 2, kind: input, shape index: {}]
  %s3 = inlined_call_operand.vmem [shape: bf16[32,96], index: 3, kind: input, shape index: {}]
  %s4 = inlined_call_operand.vmem [shape: f32[1,96], index: 4, kind: input, shape index: {}]
  %s5 = inlined_call_operand.vmem [shape: bf16[8,96], index: 5, kind: output, shape index: {}]
  %s6 = sld [smem:[#allocation0]]
  $region34: #{paligemma_forward.16} parent=0
    _
  %s8 = ssub.s32 1, %s6
  %s9 = scalar_select 0, %s8, %s6
  // Predicated region
  $region2: #{paligemma_forward.16} parent=0 // pred_check
    _
  $region3: #{paligemma_forward.16} parent=0 // pred_check_branch
    %11 = sbr.rel (0) target = $region5
  $region4: #{paligemma_forward.16} parent=0 // pred_region
    _
  $region5: #{paligemma_forward.16} parent=0 // pred_fallthru
    _
  // Predicated region
  $region6: #{paligemma_forward.16} parent=0 // pred_check
    _
  $region7: #{paligemma_forward.16} parent=0 // pred_check_branch
    %13 = sbr.rel (0) target = $region9
  $region8: #{paligemma_forward.16} parent=0 // pred_region
    _
  $region9: #{paligemma_forward.16} parent=0 // pred_fallthru
    _
  // Predicated region
  $region10: #{paligemma_forward.16} parent=0 // pred_check
    _
  $region11: #{paligemma_forward.16} parent=0 // pred_check_branch
    %15 = sbr.rel (0) target = $region13
  $region12: #{paligemma_forward.16} parent=0 // pred_region
    _
  $region13: #{paligemma_forward.16} parent=0 // pred_fallthru
    _
  // Predicated region
  $region14: #{paligemma_forward.16} parent=0 // pred_check
    _
  $region15: #{paligemma_forward.16} parent=0 // pred_check_branch
    %17 = sbr.rel (0) target = $region17
  $region16: #{paligemma_forward.16} parent=0 // pred_region
    _
  $region17: #{paligemma_forward.16} parent=0 // pred_fallthru
    _
  // Predicated region
  $region18: #{paligemma_forward.16} parent=0 // pred_check
    _
  $region19: #{paligemma_forward.16} parent=0 // pred_check_branch
    %19 = sbr.rel (0) target = $region21
  $region20: #{paligemma_forward.16} parent=0 // pred_region
    _
  $region21: #{paligemma_forward.16} parent=0 // pred_fallthru
    _
  %p21 = scmp.eq.s32.totalorder 0, 0
  // Predicated region
  $region22: #{paligemma_forward.16} parent=0 // pred_check
    %p22 = pneg %p21
  $region23: #{paligemma_forward.16} parent=0 // pred_check_branch
    %24 = sbr.rel (%p22) target = $region25
  $region24: #{paligemma_forward.16} parent=0 // pred_region
    %v25 = vld [vmem:[%s0] sm:$0xff]
    %vm26 = vcmask 261120
    %v27 = vsel %vm26, %v25, 0.0
    %28 = vadd.xlane.f32.xlu0 %v27
    %v29 = vpop.xlane.xlu0 %28
    %v30 = vrcp.pop 32.0
    %v31 = vmul.f32 %v29, %v30
    %v32 = vsub.f32 %v25, %v31
    %v33 = vmul.f32 %v32, %v32
    %v34 = vsel %vm26, %v33, 0.0
    %35 = vadd.xlane.f32.xlu0 %v34
    %v36 = vpop.xlane.xlu0 %35
    %v37 = vmul.f32 %v36, %v30
    %v38 = vadd.f32 %v37, 1e-06
    %v39 = vrsqrt.pop %v38
    %v40 = vmul.f32 %v32, %v39
    %v41 = vld [vmem:[%s1] sm:$0x1]
    %v43 = vlaneseq
    %v44 = vshrl.u32 %v43, 7
    %v45 = vsub.s32 0, %v44
    %v46 = vrot.slane %v41, %v45
    %v48 = vmul.f32 %v40, %v46
    %v49 = vld [vmem:[%s2] sm:$0x1]
    %v51 = vlaneseq
    %v52 = vshrl.u32 %v51, 7
    %v53 = vsub.s32 0, %v52
    %v54 = vrot.slane %v49, %v53
    %v56 = vadd.f32 %v48, %v54
    %v57 = vpack.c.bf16 %v56, %v56
    %vm58 = vcmask 257024
    %59 = vst.msk [vmem:[#allocation2] sm:$0xf] %vm58, %v57
  $region25: #{paligemma_forward.16} parent=0 // pred_fallthru
    _
  %v60 = vld [vmem:[#allocation2] sm:$0xf]
  %v61 = vld [vmem:[%s3] sm:$0xf]
  %v62 = vld [vmem:[%s3 + $0x4] sm:$0xf]
  %v63 = vld [vmem:[%s3 + $0x8] sm:$0xf]
  %v64 = vld [vmem:[%s3 + $0xc] sm:$0xf]
  %v65 = vld [vmem:[%s4] sm:$0x1]
  %v67 = vlaneseq
  %v68 = vshrl.u32 %v67, 7
  %v69 = vsub.s32 0, %v68
  %v70 = vrot.slane %v65, %v69
  %v76 = vunpack.c.l.b16 %v61
  %v77 = vunpack.c.l.b16 %v62
  %v78 = vunpack.c.l.b16 %v63
  %v79 = vunpack.c.l.b16 %v64
  %v80 = vpack.c.b16 %v77, %v76
  %v81 = vpack.c.b16 %v79, %v78
  %vm84 = vcmask 261120
  %v86 = vsel %vm84, %v60, 0
  %88 = vmatprep.subr.bf16.mxu0 0
  %89 = vmatpush1.bf16.msra.mxu0 %v80
  %90 = vmatprep.subr.bf16.mxu0 0
  %91 = vmatpush1.bf16.msra.mxu0 %v81
  %92 = vmatprep.subr.bf16.mxu0 0
  %93 = vmatpush1.bf16.msra.mxu0 0
  %94 = vmatprep.subr.bf16.mxu0 0
  %95 = vmatpush1.bf16.msra.mxu0 0
  %96 = vmatprep.subr.bf16.mxu0 0
  %97 = vmatpush1.bf16.msra.mxu0 0
  %98 = vmatprep.subr.bf16.mxu0 0
  %99 = vmatpush1.bf16.msra.mxu0 0
  %100 = vmatprep.subr.bf16.mxu0 0
  %101 = vmatpush1.bf16.msra.mxu0 0
  %102 = vmatprep.subr.bf16.mxu0 0
  %103 = vmatpush1.bf16.msra.mxu0 0
  %104 = vmatprep.subr.bf16.mxu0 0
  %105 = vmatpush1.bf16.msra.mxu0 0
  %106 = vmatprep.subr.bf16.mxu0 0
  %107 = vmatpush1.bf16.msra.mxu0 0
  %108 = vmatprep.subr.bf16.mxu0 0
  %109 = vmatpush1.bf16.msra.mxu0 0
  %110 = vmatprep.subr.bf16.mxu0 0
  %111 = vmatpush1.bf16.msra.mxu0 0
  %112 = vmatprep.subr.bf16.mxu0 0
  %113 = vmatpush1.bf16.msra.mxu0 0
  %114 = vmatprep.subr.bf16.mxu0 0
  %115 = vmatpush1.bf16.msra.mxu0 0
  %116 = vmatprep.subr.bf16.mxu0 0
  %117 = vmatpush1.bf16.msra.mxu0 0
  %118 = vmatprep.subr.bf16.mxu0 0
  %119 = vmatpush1.bf16.msra.mxu0 0
  %120 = vmatprep.mubr.bf16.mxu0 0
  %121 = vmatmul.mubr.bf16.gmra.mrb[0].mxu0 %v86
  %v122 = vpop.f32.mrb[0].mxu0
  %v123 = vadd.f32 %v70, %v122
  %v124 = vpop.f32.mrb[0].mxu0
  %v125 = vpop.f32.mrb[0].mxu0
  %v126 = vpop.f32.mrb[0].mxu0
  %127 = vdwg.mxu0
  %v128 = vpack.c.bf16 %v123, %v123
  %vm129 = vcmask 781312
  %130 = vst.msk [vmem:[%s5] sm:$0xf] %vm129, %v128
  // Predicated region
  $region26: #{paligemma_forward.16} parent=0 // pred_check
    _
  $region27: #{paligemma_forward.16} parent=0 // pred_check_branch
    %132 = sbr.rel (0) target = $region29
  $region28: #{paligemma_forward.16} parent=0 // pred_region
    _
  $region29: #{paligemma_forward.16} parent=0 // pred_fallthru
    _
  // Predicated region
  $region30: #{paligemma_forward.16} parent=0 // pred_check
    _
  $region31: #{paligemma_forward.16} parent=0 // pred_check_branch
    %134 = sbr.rel (0) target = $region33
  $region32: #{paligemma_forward.16} parent=0 // pred_region
    _
  $region33: #{paligemma_forward.16} parent=0 // pred_fallthru
    _

// kernel: paligemma_forward.18
$region0: #{paligemma_forward.18}
  #allocation0 [shape = 'u32[]', space=smem, size = 0x4, offset = 0x4, fixed_abs, tag = 'smem constant byte address 0x4 - core index']
  #allocation1 [shape = 'u32[144,128]{1,0:T(1,128)}', space=vmem, size = 0x12000, scoped, tag = 'internal scratch']
  %s0 = inlined_call_operand.vmem [shape: f32[8,32], index: 0, kind: input, shape index: {}]
  %s1 = inlined_call_operand.vmem [shape: f32[1,32], index: 1, kind: input, shape index: {}]
  %s2 = inlined_call_operand.vmem [shape: f32[1,32], index: 2, kind: input, shape index: {}]
  %s3 = inlined_call_operand.vmem [shape: bf16[32,64], index: 3, kind: input, shape index: {}]
  %s4 = inlined_call_operand.vmem [shape: f32[1,64], index: 4, kind: input, shape index: {}]
  %s5 = inlined_call_operand.vmem [shape: bf16[64,32], index: 5, kind: input, shape index: {}]
  %s6 = inlined_call_operand.vmem [shape: f32[1,32], index: 6, kind: input, shape index: {}]
  %s7 = inlined_call_operand.vmem [shape: f32[8,32], index: 7, kind: output, shape index: {}]
  %s8 = sld [smem:[#allocation0]]
  $region38: #{paligemma_forward.18} parent=0
    _
  %s10 = ssub.s32 1, %s8
  %s11 = scalar_select 0, %s10, %s8
  // Predicated region
  $region2: #{paligemma_forward.18} parent=0 // pred_check
    _
  $region3: #{paligemma_forward.18} parent=0 // pred_check_branch
    %13 = sbr.rel (0) target = $region5
  $region4: #{paligemma_forward.18} parent=0 // pred_region
    _
  $region5: #{paligemma_forward.18} parent=0 // pred_fallthru
    _
  // Predicated region
  $region6: #{paligemma_forward.18} parent=0 // pred_check
    _
  $region7: #{paligemma_forward.18} parent=0 // pred_check_branch
    %15 = sbr.rel (0) target = $region9
  $region8: #{paligemma_forward.18} parent=0 // pred_region
    _
  $region9: #{paligemma_forward.18} parent=0 // pred_fallthru
    _
  // Predicated region
  $region10: #{paligemma_forward.18} parent=0 // pred_check
    _
  $region11: #{paligemma_forward.18} parent=0 // pred_check_branch
    %17 = sbr.rel (0) target = $region13
  $region12: #{paligemma_forward.18} parent=0 // pred_region
    _
  $region13: #{paligemma_forward.18} parent=0 // pred_fallthru
    _
  // Predicated region
  $region14: #{paligemma_forward.18} parent=0 // pred_check
    _
  $region15: #{paligemma_forward.18} parent=0 // pred_check_branch
    %19 = sbr.rel (0) target = $region17
  $region16: #{paligemma_forward.18} parent=0 // pred_region
    _
  $region17: #{paligemma_forward.18} parent=0 // pred_fallthru
    _
  // Predicated region
  $region18: #{paligemma_forward.18} parent=0 // pred_check
    _
  $region19: #{paligemma_forward.18} parent=0 // pred_check_branch
    %21 = sbr.rel (0) target = $region21
  $region20: #{paligemma_forward.18} parent=0 // pred_region
    _
  $region21: #{paligemma_forward.18} parent=0 // pred_fallthru
    _
  // Predicated region
  $region22: #{paligemma_forward.18} parent=0 // pred_check
    _
  $region23: #{paligemma_forward.18} parent=0 // pred_check_branch
    %23 = sbr.rel (0) target = $region25
  $region24: #{paligemma_forward.18} parent=0 // pred_region
    _
  $region25: #{paligemma_forward.18} parent=0 // pred_fallthru
    _
  // Predicated region
  $region26: #{paligemma_forward.18} parent=0 // pred_check
    _
  $region27: #{paligemma_forward.18} parent=0 // pred_check_branch
    %25 = sbr.rel (0) target = $region29
  $region28: #{paligemma_forward.18} parent=0 // pred_region
    _
  $region29: #{paligemma_forward.18} parent=0 // pred_fallthru
    _
  %v27 = vld [vmem:[%s0] sm:$0xff]
  %vm28 = vcmask 261120
  %v29 = vsel %vm28, %v27, 0.0
  %30 = vadd.xlane.f32.xlu0 %v29
  %v31 = vpop.xlane.xlu0 %30
  %v32 = vrcp.pop 32.0
  %v33 = vmul.f32 %v31, %v32
  %v34 = vsub.f32 %v27, %v33
  %v35 = vmul.f32 %v34, %v34
  %v36 = vsel %vm28, %v35, 0.0
  %37 = vadd.xlane.f32.xlu0 %v36
  %v38 = vpop.xlane.xlu0 %37
  %v39 = vmul.f32 %v38, %v32
  %v40 = vadd.f32 %v39, 1e-06
  %v41 = vrsqrt.pop %v40
  %v42 = vmul.f32 %v34, %v41
  %v43 = vld [vmem:[%s1] sm:$0x1]
  %v45 = vlaneseq
  %v46 = vshrl.u32 %v45, 7
  %v47 = vsub.s32 0, %v46
  %v48 = vrot.slane %v43, %v47
  %v50 = vmul.f32 %v42, %v48
  %v51 = vld [vmem:[%s2] sm:$0x1]
  %v53 = vlaneseq
  %v54 = vshrl.u32 %v53, 7
  %v55 = vsub.s32 0, %v54
  %v56 = vrot.slane %v51, %v55
  %v58 = vadd.f32 %v50, %v56
  %v59 = vpack.c.bf16 %v58, %v58
  %v60 = vld [vmem:[%s3] sm:$0xf]
  %v61 = vld [vmem:[%s3 + $0x4] sm:$0xf]
  %v62 = vld [vmem:[%s3 + $0x8] sm:$0xf]
  %v63 = vld [vmem:[%s3 + $0xc] sm:$0xf]
  %v64 = vld [vmem:[%s4] sm:$0x1]
  %v66 = vlaneseq
  %v67 = vshrl.u32 %v66, 7
  %v68 = vsub.s32 0, %v67
  %v69 = vrot.slane %v64, %v68
  %v75 = vunpack.c.l.b16 %v60
  %v76 = vunpack.c.l.b16 %v61
  %v77 = vunpack.c.l.b16 %v62
  %v78 = vunpack.c.l.b16 %v63
  %v79 = vpack.c.b16 %v76, %v75
  %v80 = vpack.c.b16 %v78, %v77
  %v84 = vsel %vm28, %v59, 0
  %86 = vmatprep.subr.bf16.mxu0 0
  %87 = vmatpush1.bf16.msra.mxu0 %v79
  %88 = vmatprep.subr.bf16.mxu0 0
  %89 = vmatpush1.bf16.msra.mxu0 %v80
  %90 = vmatprep.subr.bf16.mxu0 0
  %91 = vmatpush1.bf16.msra.mxu0 0
  %92 = vmatprep.subr.bf16.mxu0 0
  %93 = vmatpush1.bf16.msra.mxu0 0
  %94 = vmatprep.subr.bf16.mxu0 0
  %95 = vmatpush1.bf16.msra.mxu0 0
  %96 = vmatprep.subr.bf16.mxu0 0
  %97 = vmatpush1.bf16.msra.mxu0 0
  %98 = vmatprep.subr.bf16.mxu0 0
  %99 = vmatpush1.bf16.msra.mxu0 0
  %100 = vmatprep.subr.bf16.mxu0 0
  %101 = vmatpush1.bf16.msra.mxu0 0
  %102 = vmatprep.subr.bf16.mxu0 0
  %103 = vmatpush1.bf16.msra.mxu0 0
  %104 = vmatprep.subr.bf16.mxu0 0
  %105 = vmatpush1.bf16.msra.mxu0 0
  %106 = vmatprep.subr.bf16.mxu0 0
  %107 = vmatpush1.bf16.msra.mxu0 0
  %108 = vmatprep.subr.bf16.mxu0 0
  %109 = vmatpush1.bf16.msra.mxu0 0
  %110 = vmatprep.subr.bf16.mxu0 0
  %111 = vmatpush1.bf16.msra.mxu0 0
  %112 = vmatprep.subr.bf16.mxu0 0
  %113 = vmatpush1.bf16.msra.mxu0 0
  %114 = vmatprep.subr.bf16.mxu0 0
  %115 = vmatpush1.bf16.msra.mxu0 0
  %116 = vmatprep.subr.bf16.mxu0 0
  %117 = vmatpush1.bf16.msra.mxu0 0
  %118 = vmatprep.mubr.bf16.mxu0 0
  %119 = vmatmul.mubr.bf16.gmra.mrb[0].mxu0 %v84
  %v120 = vpop.f32.mrb[0].mxu0
  %v121 = vadd.f32 %v69, %v120
  %v122 = vpop.f32.mrb[0].mxu0
  %v123 = vpop.f32.mrb[0].mxu0
  %v124 = vpop.f32.mrb[0].mxu0
  %125 = vdwg.mxu0
  %v126 = vmul.f32 %v121, 0.5
  %v127 = vmul.f32 %v121, 0.044715
  %v128 = vmul.f32 %v127, %v121
  %v129 = vmul.f32 %v128, %v121
  %v130 = vadd.f32 %v121, %v129
  %v131 = vmul.f32 %v130, 0.7978846
  %v132 = vtanh.pop %v131
  %v133 = vadd.f32 %v132, 1.0
  %v134 = vmul.f32 %v126, %v133
  %v135 = vpack.c.bf16 %v134, %v134
  %v136 = vld [vmem:[%s6] sm:$0x1]
  %v138 = vlaneseq
  %v139 = vshrl.u32 %v138, 7
  %v140 = vsub.s32 0, %v139
  %v141 = vrot.slane %v136, %v140
  %v143 = vadd.f32 %v27, %v141
  %v144 = vld [vmem:[%s5] sm:$0xf]
  %v145 = vld [vmem:[%s5 + $0x4] sm:$0xf]
  %v146 = vld [vmem:[%s5 + $0x8] sm:$0xf]
  %v147 = vld [vmem:[%s5 + $0xc] sm:$0xf]
  %v148 = vld [vmem:[%s5 + $0x10] sm:$0xf]
  %v149 = vld [vmem:[%s5 + $0x14] sm:$0xf]
  %v150 = vld [vmem:[%s5 + $0x18] sm:$0xf]
  %v151 = vld [vmem:[%s5 + $0x1c] sm:$0xf]
  %v160 = vunpack.c.l.b16 %v144
  %v161 = vunpack.c.l.b16 %v145
  %v162 = vunpack.c.l.b16 %v146
  %v163 = vunpack.c.l.b16 %v147
  %v164 = vunpack.c.l.b16 %v148
  %v165 = vunpack.c.l.b16 %v149
  %v166 = vunpack.c.l.b16 %v150
  %v167 = vunpack.c.l.b16 %v151
  %v168 = vpack.c.b16 %v161, %v160
  %v169 = vpack.c.b16 %v163, %v162
  %v170 = vpack.c.b16 %v165, %v164
  %v171 = vpack.c.b16 %v167, %v166
  %vm176 = vcmask 523264
  %v178 = vsel %vm176, %v135, 0
  %180 = vmatprep.subr.bf16.mxu0 0
  %181 = vmatpush1.bf16.msra.mxu0 %v168
  %182 = vmatprep.subr.bf16.mxu0 0
  %183 = vmatpush1.bf16.msra.mxu0 %v169
  %184 = vmatprep.subr.bf16.mxu0 0
  %185 = vmatpush1.bf16.msra.mxu0 %v170
  %186 = vmatprep.subr.bf16.mxu0 0
  %187 = vmatpush1.bf16.msra.mxu0 %v171
  %188 = vmatprep.subr.bf16.mxu0 0
  %189 = vmatpush1.bf16.msra.mxu0 0
  %190 = vmatprep.subr.bf16.mxu0 0
  %191 = vmatpush1.bf16.msra.mxu0 0
  %192 = vmatprep.subr.bf16.mxu0 0
  %193 = vmatpush1.bf16.msra.mxu0 0
  %194 = vmatprep.subr.bf16.mxu0 0
  %195 = vmatpush1.bf16.msra.mxu0 0
  %196 = vmatprep.subr.bf16.mxu0 0
  %197 = vmatpush1.bf16.msra.mxu0 0
  %198 = vmatprep.subr.bf16.mxu0 0
  %199 = vmatpush1.bf16.msra.mxu0 0
  %200 = vmatprep.subr.bf16.mxu0 0
  %201 = vmatpush1.bf16.msra.mxu0 0
  %202 = vmatprep.subr.bf16.mxu0 0
  %203 = vmatpush1.bf16.msra.mxu0 0
  %204 = vmatprep.subr.bf16.mxu0 0
  %205 = vmatpush1.bf16.msra.mxu0 0
  %206 = vmatprep.subr.bf16.mxu0 0
  %207 = vmatpush1.bf16.msra.mxu0 0
  %208 = vmatprep.subr.bf16.mxu0 0
  %209 = vmatpush1.bf16.msra.mxu0 0
  %210 = vmatprep.subr.bf16.mxu0 0
  %211 = vmatpush1.bf16.msra.mxu0 0
  %212 = vmatprep.mubr.bf16.mxu0 0
  %213 = vmatmul.mubr.bf16.gmra.mrb[0].mxu0 %v178
  %v214 = vpop.f32.mrb[0].mxu0
  %v215 = vadd.f32 0.0, %v214
  %v216 = vpop.f32.mrb[0].mxu0
  %v217 = vpop.f32.mrb[0].mxu0
  %v218 = vpop.f32.mrb[0].mxu0
  %219 = vdwg.mxu0
  %v220 = vadd.f32 %v143, %v215
  %221 = vst.msk [vmem:[%s7] sm:$0xff] %vm28, %v220
  // Predicated region
  $region30: #{paligemma_forward.18} parent=0 // pred_check
    _
  $region31: #{paligemma_forward.18} parent=0 // pred_check_branch
    %223 = sbr.rel (0) target = $region33
  $region32: #{paligemma_forward.18} parent=0 // pred_region
    _
  $region33: #{paligemma_forward.18} parent=0 // pred_fallthru
    _
  // Predicated region
  $region34: #{paligemma_forward.18} parent=0 // pred_check
    _
  $region35: #{paligemma_forward.18} parent=0 // pred_check_branch
    %225 = sbr.rel (0) target = $region37
  $region36: #{paligemma_forward.18} parent=0 // pred_region
    _
  $region37: #{paligemma_forward.18} parent=0 // pred_fallthru
    _

// kernel: paligemma_forward.17
$region0: #{paligemma_forward.17}
  #allocation0 [shape = 'u32[]', space=smem, size = 0x4, offset = 0x4, fixed_abs, tag = 'smem constant byte address 0x4 - core index']
  #allocation1 [shape = 'u32[144,128]{1,0:T(1,128)}', space=vmem, size = 0x12000, scoped, tag = 'internal scratch']
  %s0 = inlined_call_operand.vmem [shape: bf16[2,4,96], index: 0, kind: input, shape index: {}]
  %s1 = inlined_call_operand.vmem [shape: bf16[32,32], index: 1, kind: input, shape index: {}]
  %s2 = inlined_call_operand.vmem [shape: f32[1,32], index: 2, kind: input, shape index: {}]
  %s3 = inlined_call_operand.vmem [shape: f32[2,4,32], index: 3, kind: input, shape index: {}]
  %s4 = inlined_call_operand.vmem [shape: f32[2,4,32], index: 4, kind: output, shape index: {}]
  %s5 = sld [smem:[#allocation0]]
  $region49: #{paligemma_forward.17} parent=0
    _
  %s7 = ssub.s32 1, %s5
  %s8 = scalar_select 0, %s7, %s5
  loop: start=0, step=1, limit=4
  $region2: #{paligemma_forward.17} parent=0 // loop_pre_header
    _
  $region3: #{paligemma_forward.17} parent=0 // loop_header
    %s10 = sphi 0, %s14
    %p11 = scmp.ge.s32.totalorder %s10, 4
    %s20 = sphi 0, %s22
    %s23 = sphi 0, %s20
    %s24 = sphi 0, %s23
    %s40 = sphi 0, %s24
    %s44 = sphi 0, %s44
    %s46 = sphi 0, %s44
    %s47 = sphi 0, %s46
    %s61 = sphi 0, %s47
    %s65 = sphi 0, %s65
    %s67 = sphi 0, %s65
    %s68 = sphi 0, %s67
    %s82 = sphi 0, %s68
    %s88 = sphi 0, %s90
    %s91 = sphi 0, %s88
    %s92 = sphi 0, %s91
    %s108 = sphi 0, %s92
    %s114 = sphi 0, %s116
    %s117 = sphi 0, %s114
    %s118 = sphi 0, %s117
    %s134 = sphi 0, %s118
  $region4: #{paligemma_forward.17} parent=0 // loop_header_branch
    %13 = sbr.rel (%p11) target = $region8
  $region5: #{paligemma_forward.17} parent=0 // loop_body
    %s15 = ssub.s32 %s10, 1
    %s16 = ssub.s32 %s10, 2
    %s17 = sadd.s32 %s10, 1
    %s18 = ssub.s32 %s10, %s17
    %p19 = scmp.eq.s32.totalorder %s18, 0
    %s21 = sadd.s32 %s20, 1
    %s22 = scalar_select %p19, %s20, %s21
    %p25 = pneg %p19
    %p26 = scmp.eq.s32.totalorder %s10, 1
    %p27 = por %p25, %p26
    %p28 = scmp.ne.s32.totalorder %s20, %s23
    %p29 = scmp.eq.s32.totalorder %s10, 0
    %p30 = por %p28, %p29
    %p31 = scmp.ne.s32.totalorder %s20, %s23
    %p32 = scmp.eq.s32.totalorder %s15, 1
    %p33 = por %p31, %p32
    %p34 = scmp.ne.s32.totalorder %s23, %s24
    %p35 = scmp.eq.s32.totalorder %s15, 0
    %p36 = por %p34, %p35
    %p37 = scmp.ne.s32.totalorder %s23, %s24
    %p38 = scmp.eq.s32.totalorder %s16, 1
    %p39 = por %p37, %p38
    %p41 = scmp.ne.s32.totalorder %s24, %s40
    %p42 = scmp.eq.s32.totalorder %s16, 0
    %p43 = por %p41, %p42
    %s45 = sadd.s32 %s44, 1
    %p48 = scmp.eq.s32.totalorder %s10, 1
    %p49 = scmp.ne.s32.totalorder %s44, %s46
    %p50 = scmp.eq.s32.totalorder %s10, 0
    %p51 = por %p49, %p50
    %p52 = scmp.ne.s32.totalorder %s44, %s46
    %p53 = scmp.eq.s32.totalorder %s15, 1
    %p54 = por %p52, %p53
    %p55 = scmp.ne.s32.totalorder %s46, %s47
    %p56 = scmp.eq.s32.totalorder %s15, 0
    %p57 = por %p55, %p56
    %p58 = scmp.ne.s32.totalorder %s46, %s47
    %p59 = scmp.eq.s32.totalorder %s16, 1
    %p60 = por %p58, %p59
    %p62 = scmp.ne.s32.totalorder %s47, %s61
    %p63 = scmp.eq.s32.totalorder %s16, 0
    %p64 = por %p62, %p63
    %s66 = sadd.s32 %s65, 1
    %p69 = scmp.eq.s32.totalorder %s10, 1
    %p70 = scmp.ne.s32.totalorder %s65, %s67
    %p71 = scmp.eq.s32.totalorder %s10, 0
    %p72 = por %p70, %p71
    %p73 = scmp.ne.s32.totalorder %s65, %s67
    %p74 = scmp.eq.s32.totalorder %s15, 1
    %p75 = por %p73, %p74
    %p76 = scmp.ne.s32.totalorder %s67, %s68
    %p77 = scmp.eq.s32.totalorder %s15, 0
    %p78 = por %p76, %p77
    %p79 = scmp.ne.s32.totalorder %s67, %s68
    %p80 = scmp.eq.s32.totalorder %s16, 1
    %p81 = por %p79, %p80
    %p83 = scmp.ne.s32.totalorder %s68, %s82
    %p84 = scmp.eq.s32.totalorder %s16, 0
    %p85 = por %p83, %p84
    %s86 = ssub.s32 %s10, %s17
    %p87 = scmp.eq.s32.totalorder %s86, 0
    %s89 = sadd.s32 %s88, 1
    %s90 = scalar_select %p87, %s88, %s89
    %p93 = pneg %p87
    %p94 = scmp.eq.s32.totalorder %s10, 1
    %p95 = por %p93, %p94
    %p96 = scmp.ne.s32.totalorder %s88, %s91
    %p97 = scmp.eq.s32.totalorder %s10, 0
    %p98 = por %p96, %p97
    %p99 = scmp.ne.s32.totalorder %s88, %s91
    %p100 = scmp.eq.s32.totalorder %s15, 1
    %p101 = por %p99, %p100
    %p102 = scmp.ne.s32.totalorder %s91, %s92
    %p103 = scmp.eq.s32.totalorder %s15, 0
    %p104 = por %p102, %p103
    %p105 = scmp.ne.s32.totalorder %s91, %s92
    %p106 = scmp.eq.s32.totalorder %s16, 1
    %p107 = por %p105, %p106
    %p109 = scmp.ne.s32.totalorder %s92, %s108
    %p110 = scmp.eq.s32.totalorder %s16, 0
    %p111 = por %p109, %p110
    %s112 = ssub.s32 %s10, %s17
    %p113 = scmp.eq.s32.totalorder %s112, 0
    %s115 = sadd.s32 %s114, 1
    %s116 = scalar_select %p113, %s114, %s115
    %p119 = pneg %p113
    %p120 = scmp.eq.s32.totalorder %s10, 1
    %p121 = por %p119, %p120
    %p122 = scmp.ne.s32.totalorder %s114, %s117
    %p123 = scmp.eq.s32.totalorder %s10, 0
    %p124 = por %p122, %p123
    %p125 = scmp.ne.s32.totalorder %s114, %s117
    %p126 = scmp.eq.s32.totalorder %s15, 1
    %p127 = por %p125, %p126
    %p128 = scmp.ne.s32.totalorder %s117, %s118
    %p129 = scmp.eq.s32.totalorder %s15, 0
    %p130 = por %p128, %p129
    %p131 = scmp.ne.s32.totalorder %s117, %s118
    %p132 = scmp.eq.s32.totalorder %s16, 1
    %p133 = por %p131, %p132
    %p135 = scmp.ne.s32.totalorder %s118, %s134
    %p136 = scmp.eq.s32.totalorder %s16, 0
    %p137 = por %p135, %p136
    %p138 = scmp.le.s32.totalorder 1, %s10
    %p139 = scmp.lt.s32.totalorder %s10, 3
    %p140 = pnand %p138, %p139
    %p141 = pneg %p140
    // Predicated region
    $region9: #{paligemma_forward.17} parent=5 // pred_check
      _
    $region10: #{paligemma_forward.17} parent=5 // pred_check_branch
      %143 = sbr.rel (%p140) target = $region12
    $region11: #{paligemma_forward.17} parent=5 // pred_region
      %s144 = ssub.s32 %s10, 1
      // Predicated region
      $region13: #{paligemma_forward.17} parent=11 // pred_check
        %p145 = pneg %p57
      $region14: #{paligemma_forward.17} parent=11 // pred_check_branch
        %147 = sbr.rel (%p145) target = $region16
      $region15: #{paligemma_forward.17} parent=11 // pred_region
        _
      $region16: #{paligemma_forward.17} parent=11 // pred_fallthru
        _
      // Predicated region
      $region17: #{paligemma_forward.17} parent=11 // pred_check
        %p148 = pneg %p78
      $region18: #{paligemma_forward.17} parent=11 // pred_check_branch
        %150 = sbr.rel (%p148) target = $region20
      $region19: #{paligemma_forward.17} parent=11 // pred_region
        _
      $region20: #{paligemma_forward.17} parent=11 // pred_fallthru
        _
    $region12: #{paligemma_forward.17} parent=5 // pred_fallthru
      _
    %p151 = scmp.lt.s32.totalorder %s10, 2
    // Predicated region
    $region21: #{paligemma_forward.17} parent=5 // pred_check
      %p152 = pneg %p151
    $region22: #{paligemma_forward.17} parent=5 // pred_check_branch
      %154 = sbr.rel (%p152) target = $region24
    $region23: #{paligemma_forward.17} parent=5 // pred_region
      // Predicated region
      $region25: #{paligemma_forward.17} parent=23 // pred_check
        %p155 = pneg %p30
      $region26: #{paligemma_forward.17} parent=23 // pred_check_branch
        %157 = sbr.rel (%p155) target = $region28
      $region27: #{paligemma_forward.17} parent=23 // pred_region
        %p158 = scmp.lt.s32.totalorder %s10, 1
        %s159 = scalar_select %p158, %s10, 1
        %s160 = smul.addr %s159, 2
        %s161 = scalar_lea.vmem %s0, %s160
      $region28: #{paligemma_forward.17} parent=23 // pred_fallthru
        _
      // Predicated region
      $region29: #{paligemma_forward.17} parent=23 // pred_check
        %p162 = pneg %p98
      $region30: #{paligemma_forward.17} parent=23 // pred_check_branch
        %164 = sbr.rel (%p162) target = $region32
      $region31: #{paligemma_forward.17} parent=23 // pred_region
        %p165 = scmp.lt.s32.totalorder %s10, 1
        %s166 = scalar_select %p165, %s10, 1
        %s167 = smul.addr %s166, 4
        %s168 = scalar_lea.vmem %s3, %s167
      $region32: #{paligemma_forward.17} parent=23 // pred_fallthru
        _
    $region24: #{paligemma_forward.17} parent=5 // pred_fallthru
      _
    %p169 = scmp.le.s32.totalorder 1, %s10
    %p170 = scmp.lt.s32.totalorder %s10, 3
    %p171 = pnand %p169, %p170
    %p172 = pneg %p171
    // Predicated region
    $region33: #{paligemma_forward.17} parent=5 // pred_check
      _
    $region34: #{paligemma_forward.17} parent=5 // pred_check_branch
      %174 = sbr.rel (%p171) target = $region36
    $region35: #{paligemma_forward.17} parent=5 // pred_region
      %s175 = ssub.s32 %s10, 1
      %p176 = scmp.lt.s32.totalorder %s15, 1
      %s177 = scalar_select %p176, %s15, 1
      %s178 = smul.addr %s177, 2
      %s179 = scalar_lea.vmem %s0, %s178
      %p180 = pneg %p36
      %p181 = pneg %p33
      %p182 = pneg %p57
      %p183 = pneg %p54
      %p184 = pneg %p78
      %p185 = pneg %p75
      %p186 = scmp.lt.s32.totalorder %s15, 1
      %s187 = scalar_select %p186, %s15, 1
      %s188 = smul.addr %s187, 4
      %s189 = scalar_lea.vmem %s3, %s188
      %p190 = pneg %p104
      %p191 = pneg %p101
      %p192 = pneg %p130
      %p193 = pneg %p127
      %p194 = scmp.lt.s32.totalorder %s15, 1
      %s195 = scalar_select %p194, %s15, 1
      %s196 = smul.addr %s195, 4
      %s197 = scalar_lea.vmem %s4, %s196
      %p198 = scmp.lt.s32.totalorder %s15, 1
      %s199 = scalar_select %p198, %s15, 1
      %s200 = smul.addr %s199, 2
      %s201 = scalar_lea.vmem %s0, %s200
      %p202 = scmp.lt.s32.totalorder %s15, 1
      %s203 = scalar_select %p202, %s15, 1
      %s204 = smul.addr %s203, 4
      %s205 = scalar_lea.vmem %s3, %s204
      %p206 = scmp.lt.s32.totalorder %s15, 1
      %s207 = scalar_select %p206, %s15, 1
      %s208 = smul.addr %s207, 4
      %s209 = scalar_lea.vmem %s4, %s208
      %v211 = vld [vmem:[%s201] sm:$0x3]
      %v212 = vunpack.c.l.bf16 %v211
      %v213 = vpack.c.bf16 %v212, %v212
      %v214 = vmul.f32 %v212, 0.35355338
      %v215 = vpack.c.bf16 %v214, %v214
      %217 = vrot.lane.b32.xlu0 %v213, 96
      %v218 = vpop.permute.xlu0 %217
      %vm219 = vcmask 64512
      %v221 = vsel %vm219, %v215, 0
      %v224 = vsel %vm219, %v218, 0
      %226 = vmatprep.subr.bf16.mxu0 0
      %227 = vmatpush1.bf16.xpose.msra.mxu0 %v224
      %228 = vmatprep.subr.bf16.mxu0 0
      %229 = vmatpush1.bf16.xpose.msra.mxu0 0
      %230 = vmatprep.subr.bf16.mxu0 0
      %231 = vmatpush1.bf16.xpose.msra.mxu0 0
      %232 = vmatprep.subr.bf16.mxu0 0
      %233 = vmatpush1.bf16.xpose.msra.mxu0 0
      %234 = vmatprep.subr.bf16.mxu0 0
      %235 = vmatpush1.bf16.xpose.msra.mxu0 0
      %236 = vmatprep.subr.bf16.mxu0 0
      %237 = vmatpush1.bf16.xpose.msra.mxu0 0
      %238 = vmatprep.subr.bf16.mxu0 0
      %239 = vmatpush1.bf16.xpose.msra.mxu0 0
      %240 = vmatprep.subr.bf16.mxu0 0
      %241 = vmatpush1.bf16.xpose.msra.mxu0 0
      %242 = vmatprep.subr.bf16.mxu0 0
      %243 = vmatpush1.bf16.xpose.msra.mxu0 0
      %244 = vmatprep.subr.bf16.mxu0 0
      %245 = vmatpush1.bf16.xpose.msra.mxu0 0
      %246 = vmatprep.subr.bf16.mxu0 0
      %247 = vmatpush1.bf16.xpose.msra.mxu0 0
      %248 = vmatprep.subr.bf16.mxu0 0
      %249 = vmatpush1.bf16.xpose.msra.mxu0 0
      %250 = vmatprep.subr.bf16.mxu0 0
      %251 = vmatpush1.bf16.xpose.msra.mxu0 0
      %252 = vmatprep.subr.bf16.mxu0 0
      %253 = vmatpush1.bf16.xpose.msra.mxu0 0
      %254 = vmatprep.subr.bf16.mxu0 0
      %255 = vmatpush1.bf16.xpose.msra.mxu0 0
      %256 = vmatprep.subr.bf16.mxu0 0
      %257 = vmatpush1.bf16.xpose.msra.mxu0 0
      %258 = vmatprep.mubr.bf16.mxu0 0
      %259 = vmatmul.mubr.bf16.gmra.mrb[0].mxu0 %v221
      %v260 = vpop.f32.mrb[0].mxu0
      %v261 = vadd.f32 0.0, %v260
      %v262 = vpop.f32.mrb[0].mxu0
      %v263 = vpop.f32.mrb[0].mxu0
      %v264 = vpop.f32.mrb[0].mxu0
      %265 = vdwg.mxu0
      %vm266 = vcmask 27648
      %v267 = vsel %vm266, %v261, -inf
      %268 = vmax.xlane.f32.xlu0 %v267
      %v269 = vpop.xlane.xlu0 %268
      %v270 = vsub.f32 %v261, %v269
      %v271 = vmul.f32 %v270, 1.442695
      %v272 = vpow.pop %v271
      %v273 = vsel %vm266, %v272, 0.0
      %274 = vadd.xlane.f32.xlu0 %v273
      %v275 = vpop.xlane.xlu0 %274
      %v276 = vrcp.pop %v275
      %v277 = vmul.f32 %v272, %v276
      %v278 = vpack.c.bf16 %v277, %v277
      %279 = vrot.lane.b32.xlu0 %v213, 64
      %v280 = vpop.permute.xlu0 %279
      %vm281 = vcmask 31744
      %v283 = vsel %vm281, %v278, 0
      %vm285 = vcmask 1041408
      %v287 = vsel %vm285, %v280, 0
      %289 = vmatprep.subr.bf16.mxu0 0
      %290 = vmatpush1.bf16.msra.mxu0 %v287
      %291 = vmatprep.subr.bf16.mxu0 0
      %292 = vmatpush1.bf16.msra.mxu0 0
      %293 = vmatprep.subr.bf16.mxu0 0
      %294 = vmatpush1.bf16.msra.mxu0 0
      %295 = vmatprep.subr.bf16.mxu0 0
      %296 = vmatpush1.bf16.msra.mxu0 0
      %297 = vmatprep.subr.bf16.mxu0 0
      %298 = vmatpush1.bf16.msra.mxu0 0
      %299 = vmatprep.subr.bf16.mxu0 0
      %300 = vmatpush1.bf16.msra.mxu0 0
      %301 = vmatprep.subr.bf16.mxu0 0
      %302 = vmatpush1.bf16.msra.mxu0 0
      %303 = vmatprep.subr.bf16.mxu0 0
      %304 = vmatpush1.bf16.msra.mxu0 0
      %305 = vmatprep.subr.bf16.mxu0 0
      %306 = vmatpush1.bf16.msra.mxu0 0
      %307 = vmatprep.subr.bf16.mxu0 0
      %308 = vmatpush1.bf16.msra.mxu0 0
      %309 = vmatprep.subr.bf16.mxu0 0
      %310 = vmatpush1.bf16.msra.mxu0 0
      %311 = vmatprep.subr.bf16.mxu0 0
      %312 = vmatpush1.bf16.msra.mxu0 0
      %313 = vmatprep.subr.bf16.mxu0 0
      %314 = vmatpush1.bf16.msra.mxu0 0
      %315 = vmatprep.subr.bf16.mxu0 0
      %316 = vmatpush1.bf16.msra.mxu0 0
      %317 = vmatprep.subr.bf16.mxu0 0
      %318 = vmatpush1.bf16.msra.mxu0 0
      %319 = vmatprep.subr.bf16.mxu0 0
      %320 = vmatpush1.bf16.msra.mxu0 0
      %321 = vmatprep.mubr.bf16.mxu0 0
      %322 = vmatmul.mubr.bf16.gmra.mrb[0].mxu0 %v283
      %v323 = vpop.f32.mrb[0].mxu0
      %v324 = vadd.f32 0.0, %v323
      %v325 = vpop.f32.mrb[0].mxu0
      %v326 = vpop.f32.mrb[0].mxu0
      %v327 = vpop.f32.mrb[0].mxu0
      %328 = vdwg.mxu0
      %330 = vrot.lane.b32.xlu0 %v215, 120
      %v331 = vpop.permute.xlu0 %330
      %332 = vrot.lane.b32.xlu0 %v213, 88
      %v333 = vpop.permute.xlu0 %332
      %v335 = vsel %vm219, %v331, 0
      %v338 = vsel %vm219, %v333, 0
      %340 = vmatprep.subr.bf16.mxu0 0
      %341 = vmatpush1.bf16.xpose.msra.mxu0 %v338
      %342 = vmatprep.subr.bf16.mxu0 0
      %343 = vmatpush1.bf16.xpose.msra.mxu0 0
      %344 = vmatprep.subr.bf16.mxu0 0
      %345 = vmatpush1.bf16.xpose.msra.mxu0 0
      %346 = vmatprep.subr.bf16.mxu0 0
      %347 = vmatpush1.bf16.xpose.msra.mxu0 0
      %348 = vmatprep.subr.bf16.mxu0 0
      %349 = vmatpush1.bf16.xpose.msra.mxu0 0
      %350 = vmatprep.subr.bf16.mxu0 0
      %351 = vmatpush1.bf16.xpose.msra.mxu0 0
      %352 = vmatprep.subr.bf16.mxu0 0
      %353 = vmatpush1.bf16.xpose.msra.mxu0 0
      %354 = vmatprep.subr.bf16.mxu0 0
      %355 = vmatpush1.bf16.xpose.msra.mxu0 0
      %356 = vmatprep.subr.bf16.mxu0 0
      %357 = vmatpush1.bf16.xpose.msra.mxu0 0
      %358 = vmatprep.subr.bf16.mxu0 0
      %359 = vmatpush1.bf16.xpose.msra.mxu0 0
      %360 = vmatprep.subr.bf16.mxu0 0
      %361 = vmatpush1.bf16.xpose.msra.mxu0 0
      %362 = vmatprep.subr.bf16.mxu0 0
      %363 = vmatpush1.bf16.xpose.msra.mxu0 0
      %364 = vmatprep.subr.bf16.mxu0 0
      %365 = vmatpush1.bf16.xpose.msra.mxu0 0
      %366 = vmatprep.subr.bf16.mxu0 0
      %367 = vmatpush1.bf16.xpose.msra.mxu0 0
      %368 = vmatprep.subr.bf16.mxu0 0
      %369 = vmatpush1.bf16.xpose.msra.mxu0 0
      %370 = vmatprep.subr.bf16.mxu0 0
      %371 = vmatpush1.bf16.xpose.msra.mxu0 0
      %372 = vmatprep.mubr.bf16.mxu0 0
      %373 = vmatmul.mubr.bf16.gmra.mrb[0].mxu0 %v335
      %v374 = vpop.f32.mrb[0].mxu0
      %v375 = vadd.f32 0.0, %v374
      %v376 = vpop.f32.mrb[0].mxu0
      %v377 = vpop.f32.mrb[0].mxu0
      %v378 = vpop.f32.mrb[0].mxu0
      %379 = vdwg.mxu0
      %v380 = vsel %vm266, %v375, -inf
      %381 = vmax.xlane.f32.xlu0 %v380
      %v382 = vpop.xlane.xlu0 %381
      %v383 = vsub.f32 %v375, %v382
      %v384 = vmul.f32 %v383, 1.442695
      %v385 = vpow.pop %v384
      %v386 = vsel %vm266, %v385, 0.0
      %387 = vadd.xlane.f32.xlu0 %v386
      %v388 = vpop.xlane.xlu0 %387
      %v389 = vrcp.pop %v388
      %v390 = vmul.f32 %v385, %v389
      %v391 = vpack.c.bf16 %v390, %v390
      %392 = vrot.lane.b32.xlu0 %v213, 56
      %v393 = vpop.permute.xlu0 %392
      %v395 = vsel %vm281, %v391, 0
      %v398 = vsel %vm285, %v393, 0
      %400 = vmatprep.subr.bf16.mxu0 0
      %401 = vmatpush1.bf16.msra.mxu0 %v398
      %402 = vmatprep.subr.bf16.mxu0 0
      %403 = vmatpush1.bf16.msra.mxu0 0
      %404 = vmatprep.subr.bf16.mxu0 0
      %405 = vmatpush1.bf16.msra.mxu0 0
      %406 = vmatprep.subr.bf16.mxu0 0
      %407 = vmatpush1.bf16.msra.mxu0 0
      %408 = vmatprep.subr.bf16.mxu0 0
      %409 = vmatpush1.bf16.msra.mxu0 0
      %410 = vmatprep.subr.bf16.mxu0 0
      %411 = vmatpush1.bf16.msra.mxu0 0
      %412 = vmatprep.subr.bf16.mxu0 0
      %413 = vmatpush1.bf16.msra.mxu0 0
      %414 = vmatprep.subr.bf16.mxu0 0
      %415 = vmatpush1.bf16.msra.mxu0 0
      %416 = vmatprep.subr.bf16.mxu0 0
      %417 = vmatpush1.bf16.msra.mxu0 0
      %418 = vmatprep.subr.bf16.mxu0 0
      %419 = vmatpush1.bf16.msra.mxu0 0
      %420 = vmatprep.subr.bf16.mxu0 0
      %421 = vmatpush1.bf16.msra.mxu0 0
      %422 = vmatprep.subr.bf16.mxu0 0
      %423 = vmatpush1.bf16.msra.mxu0 0
      %424 = vmatprep.subr.bf16.mxu0 0
      %425 = vmatpush1.bf16.msra.mxu0 0
      %426 = vmatprep.subr.bf16.mxu0 0
      %427 = vmatpush1.bf16.msra.mxu0 0
      %428 = vmatprep.subr.bf16.mxu0 0
      %429 = vmatpush1.bf16.msra.mxu0 0
      %430 = vmatprep.subr.bf16.mxu0 0
      %431 = vmatpush1.bf16.msra.mxu0 0
      %432 = vmatprep.mubr.bf16.mxu0 0
      %433 = vmatmul.mubr.bf16.gmra.mrb[0].mxu0 %v395
      %v434 = vpop.f32.mrb[0].mxu0
      %v435 = vadd.f32 0.0, %v434
      %v436 = vpop.f32.mrb[0].mxu0
      %v437 = vpop.f32.mrb[0].mxu0
      %v438 = vpop.f32.mrb[0].mxu0
      %439 = vdwg.mxu0
      %440 = vrot.lane.b32.xlu0 %v215, 112
      %v441 = vpop.permute.xlu0 %440
      %442 = vrot.lane.b32.xlu0 %v213, 80
      %v443 = vpop.permute.xlu0 %442
      %v445 = vsel %vm219, %v441, 0
      %v448 = vsel %vm219, %v443, 0
      %450 = vmatprep.subr.bf16.mxu0 0
      %451 = vmatpush1.bf16.xpose.msra.mxu0 %v448
      %452 = vmatprep.subr.bf16.mxu0 0
      %453 = vmatpush1.bf16.xpose.msra.mxu0 0
      %454 = vmatprep.subr.bf16.mxu0 0
      %455 = vmatpush1.bf16.xpose.msra.mxu0 0
      %456 = vmatprep.subr.bf16.mxu0 0
      %457 = vmatpush1.bf16.xpose.msra.mxu0 0
      %458 = vmatprep.subr.bf16.mxu0 0
      %459 = vmatpush1.bf16.xpose.msra.mxu0 0
      %460 = vmatprep.subr.bf16.mxu0 0
      %461 = vmatpush1.bf16.xpose.msra.mxu0 0
      %462 = vmatprep.subr.bf16.mxu0 0
      %463 = vmatpush1.bf16.xpose.msra.mxu0 0
      %464 = vmatprep.subr.bf16.mxu0 0
      %465 = vmatpush1.bf16.xpose.msra.mxu0 0
      %466 = vmatprep.subr.bf16.mxu0 0
      %467 = vmatpush1.bf16.xpose.msra.mxu0 0
      %468 = vmatprep.subr.bf16.mxu0 0
      %469 = vmatpush1.bf16.xpose.msra.mxu0 0
      %470 = vmatprep.subr.bf16.mxu0 0
      %471 = vmatpush1.bf16.xpose.msra.mxu0 0
      %472 = vmatprep.subr.bf16.mxu0 0
      %473 = vmatpush1.bf16.xpose.msra.mxu0 0
      %474 = vmatprep.subr.bf16.mxu0 0
      %475 = vmatpush1.bf16.xpose.msra.mxu0 0
      %476 = vmatprep.subr.bf16.mxu0 0
      %477 = vmatpush1.bf16.xpose.msra.mxu0 0
      %478 = vmatprep.subr.bf16.mxu0 0
      %479 = vmatpush1.bf16.xpose.msra.mxu0 0
      %480 = vmatprep.subr.bf16.mxu0 0
      %481 = vmatpush1.bf16.xpose.msra.mxu0 0
      %482 = vmatprep.mubr.bf16.mxu0 0
      %483 = vmatmul.mubr.bf16.gmra.mrb[0].mxu0 %v445
      %v484 = vpop.f32.mrb[0].mxu0
      %v485 = vadd.f32 0.0, %v484
      %v486 = vpop.f32.mrb[0].mxu0
      %v487 = vpop.f32.mrb[0].mxu0
      %v488 = vpop.f32.mrb[0].mxu0
      %489 = vdwg.mxu0
      %v490 = vsel %vm266, %v485, -inf
      %491 = vmax.xlane.f32.xlu0 %v490
      %v492 = vpop.xlane.xlu0 %491
      %v493 = vsub.f32 %v485, %v492
      %v494 = vmul.f32 %v493, 1.442695
      %v495 = vpow.pop %v494
      %v496 = vsel %vm266, %v495, 0.0
      %497 = vadd.xlane.f32.xlu0 %v496
      %v498 = vpop.xlane.xlu0 %497
      %v499 = vrcp.pop %v498
      %v500 = vmul.f32 %v495, %v499
      %v501 = vpack.c.bf16 %v500, %v500
      %502 = vrot.lane.b32.xlu0 %v213, 48
      %v503 = vpop.permute.xlu0 %502
      %v505 = vsel %vm281, %v501, 0
      %v508 = vsel %vm285, %v503, 0
      %510 = vmatprep.subr.bf16.mxu0 0
      %511 = vmatpush1.bf16.msra.mxu0 %v508
      %512 = vmatprep.subr.bf16.mxu0 0
      %513 = vmatpush1.bf16.msra.mxu0 0
      %514 = vmatprep.subr.bf16.mxu0 0
      %515 = vmatpush1.bf16.msra.mxu0 0
      %516 = vmatprep.subr.bf16.mxu0 0
      %517 = vmatpush1.bf16.msra.mxu0 0
      %518 = vmatprep.subr.bf16.mxu0 0
      %519 = vmatpush1.bf16.msra.mxu0 0
      %520 = vmatprep.subr.bf16.mxu0 0
      %521 = vmatpush1.bf16.msra.mxu0 0
      %522 = vmatprep.subr.bf16.mxu0 0
      %523 = vmatpush1.bf16.msra.mxu0 0
      %524 = vmatprep.subr.bf16.mxu0 0
      %525 = vmatpush1.bf16.msra.mxu0 0
      %526 = vmatprep.subr.bf16.mxu0 0
      %527 = vmatpush1.bf16.msra.mxu0 0
      %528 = vmatprep.subr.bf16.mxu0 0
      %529 = vmatpush1.bf16.msra.mxu0 0
      %530 = vmatprep.subr.bf16.mxu0 0
      %531 = vmatpush1.bf16.msra.mxu0 0
      %532 = vmatprep.subr.bf16.mxu0 0
      %533 = vmatpush1.bf16.msra.mxu0 0
      %534 = vmatprep.subr.bf16.mxu0 0
      %535 = vmatpush1.bf16.msra.mxu0 0
      %536 = vmatprep.subr.bf16.mxu0 0
      %537 = vmatpush1.bf16.msra.mxu0 0
      %538 = vmatprep.subr.bf16.mxu0 0
      %539 = vmatpush1.bf16.msra.mxu0 0
      %540 = vmatprep.subr.bf16.mxu0 0
      %541 = vmatpush1.bf16.msra.mxu0 0
      %542 = vmatprep.mubr.bf16.mxu0 0
      %543 = vmatmul.mubr.bf16.gmra.mrb[0].mxu0 %v505
      %v544 = vpop.f32.mrb[0].mxu0
      %v545 = vadd.f32 0.0, %v544
      %v546 = vpop.f32.mrb[0].mxu0
      %v547 = vpop.f32.mrb[0].mxu0
      %v548 = vpop.f32.mrb[0].mxu0
      %549 = vdwg.mxu0
      %550 = vrot.lane.b32.xlu0 %v215, 104
      %v551 = vpop.permute.xlu0 %550
      %552 = vrot.lane.b32.xlu0 %v213, 72
      %v553 = vpop.permute.xlu0 %552
      %v555 = vsel %vm219, %v551, 0
      %v558 = vsel %vm219, %v553, 0
      %560 = vmatprep.subr.bf16.mxu0 0
      %561 = vmatpush1.bf16.xpose.msra.mxu0 %v558
      %562 = vmatprep.subr.bf16.mxu0 0
      %563 = vmatpush1.bf16.xpose.msra.mxu0 0
      %564 = vmatprep.subr.bf16.mxu0 0
      %565 = vmatpush1.bf16.xpose.msra.mxu0 0
      %566 = vmatprep.subr.bf16.mxu0 0
      %567 = vmatpush1.bf16.xpose.msra.mxu0 0
      %568 = vmatprep.subr.bf16.mxu0 0
      %569 = vmatpush1.bf16.xpose.msra.mxu0 0
      %570 = vmatprep.subr.bf16.mxu0 0
      %571 = vmatpush1.bf16.xpose.msra.mxu0 0
      %572 = vmatprep.subr.bf16.mxu0 0
      %573 = vmatpush1.bf16.xpose.msra.mxu0 0
      %574 = vmatprep.subr.bf16.mxu0 0
      %575 = vmatpush1.bf16.xpose.msra.mxu0 0
      %576 = vmatprep.subr.bf16.mxu0 0
      %577 = vmatpush1.bf16.xpose.msra.mxu0 0
      %578 = vmatprep.subr.bf16.mxu0 0
      %579 = vmatpush1.bf16.xpose.msra.mxu0 0
      %580 = vmatprep.subr.bf16.mxu0 0
      %581 = vmatpush1.bf16.xpose.msra.mxu0 0
      %582 = vmatprep.subr.bf16.mxu0 0
      %583 = vmatpush1.bf16.xpose.msra.mxu0 0
      %584 = vmatprep.subr.bf16.mxu0 0
      %585 = vmatpush1.bf16.xpose.msra.mxu0 0
      %586 = vmatprep.subr.bf16.mxu0 0
      %587 = vmatpush1.bf16.xpose.msra.mxu0 0
      %588 = vmatprep.subr.bf16.mxu0 0
      %589 = vmatpush1.bf16.xpose.msra.mxu0 0
      %590 = vmatprep.subr.bf16.mxu0 0
      %591 = vmatpush1.bf16.xpose.msra.mxu0 0
      %592 = vmatprep.mubr.bf16.mxu0 0
      %593 = vmatmul.mubr.bf16.gmra.mrb[0].mxu0 %v555
      %v594 = vpop.f32.mrb[0].mxu0
      %v595 = vadd.f32 0.0, %v594
      %v596 = vpop.f32.mrb[0].mxu0
      %v597 = vpop.f32.mrb[0].mxu0
      %v598 = vpop.f32.mrb[0].mxu0
      %599 = vdwg.mxu0
      %v600 = vsel %vm266, %v595, -inf
      %601 = vmax.xlane.f32.xlu0 %v600
      %v602 = vpop.xlane.xlu0 %601
      %v603 = vsub.f32 %v595, %v602
      %v604 = vmul.f32 %v603, 1.442695
      %v605 = vpow.pop %v604
      %v606 = vsel %vm266, %v605, 0.0
      %607 = vadd.xlane.f32.xlu0 %v606
      %v608 = vpop.xlane.xlu0 %607
      %v609 = vrcp.pop %v608
      %v610 = vmul.f32 %v605, %v609
      %v611 = vpack.c.bf16 %v610, %v610
      %612 = vrot.lane.b32.xlu0 %v213, 40
      %v613 = vpop.permute.xlu0 %612
      %v615 = vsel %vm281, %v611, 0
      %v618 = vsel %vm285, %v613, 0
      %620 = vmatprep.subr.bf16.mxu0 0
      %621 = vmatpush1.bf16.msra.mxu0 %v618
      %622 = vmatprep.subr.bf16.mxu0 0
      %623 = vmatpush1.bf16.msra.mxu0 0
      %624 = vmatprep.subr.bf16.mxu0 0
      %625 = vmatpush1.bf16.msra.mxu0 0
      %626 = vmatprep.subr.bf16.mxu0 0
      %627 = vmatpush1.bf16.msra.mxu0 0
      %628 = vmatprep.subr.bf16.mxu0 0
      %629 = vmatpush1.bf16.msra.mxu0 0
      %630 = vmatprep.subr.bf16.mxu0 0
      %631 = vmatpush1.bf16.msra.mxu0 0
      %632 = vmatprep.subr.bf16.mxu0 0
      %633 = vmatpush1.bf16.msra.mxu0 0
      %634 = vmatprep.subr.bf16.mxu0 0
      %635 = vmatpush1.bf16.msra.mxu0 0
      %636 = vmatprep.subr.bf16.mxu0 0
      %637 = vmatpush1.bf16.msra.mxu0 0
      %638 = vmatprep.subr.bf16.mxu0 0
      %639 = vmatpush1.bf16.msra.mxu0 0
      %640 = vmatprep.subr.bf16.mxu0 0
      %641 = vmatpush1.bf16.msra.mxu0 0
      %642 = vmatprep.subr.bf16.mxu0 0
      %643 = vmatpush1.bf16.msra.mxu0 0
      %644 = vmatprep.subr.bf16.mxu0 0
      %645 = vmatpush1.bf16.msra.mxu0 0
      %646 = vmatprep.subr.bf16.mxu0 0
      %647 = vmatpush1.bf16.msra.mxu0 0
      %648 = vmatprep.subr.bf16.mxu0 0
      %649 = vmatpush1.bf16.msra.mxu0 0
      %650 = vmatprep.subr.bf16.mxu0 0
      %651 = vmatpush1.bf16.msra.mxu0 0
      %652 = vmatprep.mubr.bf16.mxu0 0
      %653 = vmatmul.mubr.bf16.gmra.mrb[0].mxu0 %v615
      %v654 = vpop.f32.mrb[0].mxu0
      %v655 = vadd.f32 0.0, %v654
      %v656 = vpop.f32.mrb[0].mxu0
      %v657 = vpop.f32.mrb[0].mxu0
      %v658 = vpop.f32.mrb[0].mxu0
      %659 = vdwg.mxu0
      %661 = vrot.lane.b32.xlu0 %v435, 8
      %v662 = vpop.permute.xlu0 %661
      %665 = vrot.lane.b32.xlu0 %v545, 16
      %v666 = vpop.permute.xlu0 %665
      %669 = vrot.lane.b32.xlu0 %v655, 24
      %v670 = vpop.permute.xlu0 %669
      %v672 = vsel %vm219, %v324, %v662
      %vm673 = vcmask 130048
      %v674 = vsel %vm673, %v672, %v666
      %vm675 = vcmask 195584
      %v676 = vsel %vm675, %v674, %v670
      %v677 = vpack.c.bf16 %v676, %v676
      %v678 = vld [vmem:[%s1] sm:$0xf]
      %v679 = vld [vmem:[%s1 + $0x4] sm:$0xf]
      %v680 = vld [vmem:[%s1 + $0x8] sm:$0xf]
      %v681 = vld [vmem:[%s1 + $0xc] sm:$0xf]
      %v682 = vld [vmem:[%s2] sm:$0x1]
      %v684 = vlaneseq
      %v685 = vshrl.u32 %v684, 7
      %v686 = vsub.s32 0, %v685
      %v687 = vrot.slane %v682, %v686
      %v693 = vunpack.c.l.b16 %v678
      %v694 = vunpack.c.l.b16 %v679
      %v695 = vunpack.c.l.b16 %v680
      %v696 = vunpack.c.l.b16 %v681
      %v697 = vpack.c.b16 %v694, %v693
      %v698 = vpack.c.b16 %v696, %v695
      %vm701 = vcmask 261120
      %v703 = vsel %vm701, %v677, 0
      %705 = vmatprep.subr.bf16.mxu0 0
      %706 = vmatpush1.bf16.msra.mxu0 %v697
      %707 = vmatprep.subr.bf16.mxu0 0
      %708 = vmatpush1.bf16.msra.mxu0 %v698
      %709 = vmatprep.subr.bf16.mxu0 0
      %710 = vmatpush1.bf16.msra.mxu0 0
      %711 = vmatprep.subr.bf16.mxu0 0
      %712 = vmatpush1.bf16.msra.mxu0 0
      %713 = vmatprep.subr.bf16.mxu0 0
      %714 = vmatpush1.bf16.msra.mxu0 0
      %715 = vmatprep.subr.bf16.mxu0 0
      %716 = vmatpush1.bf16.msra.mxu0 0
      %717 = vmatprep.subr.bf16.mxu0 0
      %718 = vmatpush1.bf16.msra.mxu0 0
      %719 = vmatprep.subr.bf16.mxu0 0
      %720 = vmatpush1.bf16.msra.mxu0 0
      %721 = vmatprep.subr.bf16.mxu0 0
      %722 = vmatpush1.bf16.msra.mxu0 0
      %723 = vmatprep.subr.bf16.mxu0 0
      %724 = vmatpush1.bf16.msra.mxu0 0
      %725 = vmatprep.subr.bf16.mxu0 0
      %726 = vmatpush1.bf16.msra.mxu0 0
      %727 = vmatprep.subr.bf16.mxu0 0
      %728 = vmatpush1.bf16.msra.mxu0 0
      %729 = vmatprep.subr.bf16.mxu0 0
      %730 = vmatpush1.bf16.msra.mxu0 0
      %731 = vmatprep.subr.bf16.mxu0 0
      %732 = vmatpush1.bf16.msra.mxu0 0
      %733 = vmatprep.subr.bf16.mxu0 0
      %734 = vmatpush1.bf16.msra.mxu0 0
      %735 = vmatprep.subr.bf16.mxu0 0
      %736 = vmatpush1.bf16.msra.mxu0 0
      %737 = vmatprep.mubr.bf16.mxu0 0
      %738 = vmatmul.mubr.bf16.gmra.mrb[0].mxu0 %v703
      %v739 = vpop.f32.mrb[0].mxu0
      %v740 = vadd.f32 %v687, %v739
      %v741 = vpop.f32.mrb[0].mxu0
      %v742 = vpop.f32.mrb[0].mxu0
      %v743 = vpop.f32.mrb[0].mxu0
      %744 = vdwg.mxu0
      %v745 = vld [vmem:[%s205] sm:$0xf]
      %v746 = vadd.f32 %v740, %v745
      %vm747 = vcmask 257024
      %748 = vst.msk [vmem:[%s209] sm:$0xf] %vm747, %v746
      %p749 = scmp.lt.s32.totalorder %s15, 1
      %s750 = scalar_select %p749, %s15, 1
      %s751 = smul.addr %s750, 4
      %s752 = scalar_lea.vmem %s4, %s751
      // Predicated region
      $region37: #{paligemma_forward.17} parent=35 // pred_check
        %p753 = pneg %p127
      $region38: #{paligemma_forward.17} parent=35 // pred_check_branch
        %755 = sbr.rel (%p753) target = $region40
      $region39: #{paligemma_forward.17} parent=35 // pred_region
        _
      $region40: #{paligemma_forward.17} parent=35 // pred_fallthru
        _
    $region36: #{paligemma_forward.17} parent=5 // pred_fallthru
      _
    %p756 = scmp.le.s32.totalorder 2, %s10
    // Predicated region
    $region41: #{paligemma_forward.17} parent=5 // pred_check
      %p757 = pneg %p756
    $region42: #{paligemma_forward.17} parent=5 // pred_check_branch
      %759 = sbr.rel (%p757) target = $region44
    $region43: #{paligemma_forward.17} parent=5 // pred_region
      %s760 = ssub.s32 %s10, 2
      // Predicated region
      $region45: #{paligemma_forward.17} parent=43 // pred_check
        %p761 = pneg %p133
      $region46: #{paligemma_forward.17} parent=43 // pred_check_branch
        %763 = sbr.rel (%p761) target = $region48
      $region47: #{paligemma_forward.17} parent=43 // pred_region
        %p764 = scmp.lt.s32.totalorder %s16, 1
        %s765 = scalar_select %p764, %s16, 1
        %s766 = smul.addr %s765, 4
        %s767 = scalar_lea.vmem %s4, %s766
      $region48: #{paligemma_forward.17} parent=43 // pred_fallthru
        _
    $region44: #{paligemma_forward.17} parent=5 // pred_fallthru
      _
  $region6: #{paligemma_forward.17} parent=0 // loop_footer
    %s14 = sadd.s32 1, %s10
  $region7: #{paligemma_forward.17} parent=0 // loop_footer_branch
    %9 = sbr.rel target = $region3
  $region8: #{paligemma_forward.17} parent=0 // loop_exit
    _

// kernel: paligemma_forward.22
$region0: #{paligemma_forward.22}
  #allocation0 [shape = 'u32[]', space=smem, size = 0x4, offset = 0x4, fixed_abs, tag = 'smem constant byte address 0x4 - core index']
  #allocation1 [shape = 'u32[144,128]{1,0:T(1,128)}', space=vmem, size = 0x12000, scoped, tag = 'internal scratch']
  #allocation2 [shape = 'bf16[8,32]{1,0:T(8,128)(2,1)}', space=vmem, size = 0x800, scoped, tag = 'scratch operand']
  %s0 = inlined_call_operand.vmem [shape: f32[8,32], index: 0, kind: input, shape index: {}]
  %s1 = inlined_call_operand.vmem [shape: f32[1,32], index: 1, kind: input, shape index: {}]
  %s2 = inlined_call_operand.vmem [shape: f32[1,32], index: 2, kind: input, shape index: {}]
  %s3 = inlined_call_operand.vmem [shape: bf16[32,32], index: 3, kind: input, shape index: {}]
  %s4 = inlined_call_operand.vmem [shape: f32[1,32], index: 4, kind: input, shape index: {}]
  %s5 = inlined_call_operand.vmem [shape: f32[8,32], index: 5, kind: output, shape index: {}]
  %s6 = sld [smem:[#allocation0]]
  $region34: #{paligemma_forward.22} parent=0
    _
  %s8 = ssub.s32 1, %s6
  %s9 = scalar_select 0, %s8, %s6
  // Predicated region
  $region2: #{paligemma_forward.22} parent=0 // pred_check
    _
  $region3: #{paligemma_forward.22} parent=0 // pred_check_branch
    %11 = sbr.rel (0) target = $region5
  $region4: #{paligemma_forward.22} parent=0 // pred_region
    _
  $region5: #{paligemma_forward.22} parent=0 // pred_fallthru
    _
  // Predicated region
  $region6: #{paligemma_forward.22} parent=0 // pred_check
    _
  $region7: #{paligemma_forward.22} parent=0 // pred_check_branch
    %13 = sbr.rel (0) target = $region9
  $region8: #{paligemma_forward.22} parent=0 // pred_region
    _
  $region9: #{paligemma_forward.22} parent=0 // pred_fallthru
    _
  // Predicated region
  $region10: #{paligemma_forward.22} parent=0 // pred_check
    _
  $region11: #{paligemma_forward.22} parent=0 // pred_check_branch
    %15 = sbr.rel (0) target = $region13
  $region12: #{paligemma_forward.22} parent=0 // pred_region
    _
  $region13: #{paligemma_forward.22} parent=0 // pred_fallthru
    _
  // Predicated region
  $region14: #{paligemma_forward.22} parent=0 // pred_check
    _
  $region15: #{paligemma_forward.22} parent=0 // pred_check_branch
    %17 = sbr.rel (0) target = $region17
  $region16: #{paligemma_forward.22} parent=0 // pred_region
    _
  $region17: #{paligemma_forward.22} parent=0 // pred_fallthru
    _
  // Predicated region
  $region18: #{paligemma_forward.22} parent=0 // pred_check
    _
  $region19: #{paligemma_forward.22} parent=0 // pred_check_branch
    %19 = sbr.rel (0) target = $region21
  $region20: #{paligemma_forward.22} parent=0 // pred_region
    _
  $region21: #{paligemma_forward.22} parent=0 // pred_fallthru
    _
  %p21 = scmp.eq.s32.totalorder 0, 0
  // Predicated region
  $region22: #{paligemma_forward.22} parent=0 // pred_check
    %p22 = pneg %p21
  $region23: #{paligemma_forward.22} parent=0 // pred_check_branch
    %24 = sbr.rel (%p22) target = $region25
  $region24: #{paligemma_forward.22} parent=0 // pred_region
    %v25 = vld [vmem:[%s0] sm:$0xff]
    %vm26 = vcmask 261120
    %v27 = vsel %vm26, %v25, 0.0
    %28 = vadd.xlane.f32.xlu0 %v27
    %v29 = vpop.xlane.xlu0 %28
    %v30 = vrcp.pop 32.0
    %v31 = vmul.f32 %v29, %v30
    %v32 = vsub.f32 %v25, %v31
    %v33 = vmul.f32 %v32, %v32
    %v34 = vsel %vm26, %v33, 0.0
    %35 = vadd.xlane.f32.xlu0 %v34
    %v36 = vpop.xlane.xlu0 %35
    %v37 = vmul.f32 %v36, %v30
    %v38 = vadd.f32 %v37, 1e-06
    %v39 = vrsqrt.pop %v38
    %v40 = vmul.f32 %v32, %v39
    %v41 = vld [vmem:[%s1] sm:$0x1]
    %v43 = vlaneseq
    %v44 = vshrl.u32 %v43, 7
    %v45 = vsub.s32 0, %v44
    %v46 = vrot.slane %v41, %v45
    %v48 = vmul.f32 %v40, %v46
    %v49 = vld [vmem:[%s2] sm:$0x1]
    %v51 = vlaneseq
    %v52 = vshrl.u32 %v51, 7
    %v53 = vsub.s32 0, %v52
    %v54 = vrot.slane %v49, %v53
    %v56 = vadd.f32 %v48, %v54
    %v57 = vpack.c.bf16 %v56, %v56
    %vm58 = vcmask 257024
    %59 = vst.msk [vmem:[#allocation2] sm:$0xf] %vm58, %v57
  $region25: #{paligemma_forward.22} parent=0 // pred_fallthru
    _
  %v60 = vld [vmem:[#allocation2] sm:$0xf]
  %v61 = vld [vmem:[%s3] sm:$0xf]
  %v62 = vld [vmem:[%s3 + $0x4] sm:$0xf]
  %v63 = vld [vmem:[%s3 + $0x8] sm:$0xf]
  %v64 = vld [vmem:[%s3 + $0xc] sm:$0xf]
  %v65 = vld [vmem:[%s4] sm:$0x1]
  %v67 = vlaneseq
  %v68 = vshrl.u32 %v67, 7
  %v69 = vsub.s32 0, %v68
  %v70 = vrot.slane %v65, %v69
  %v76 = vunpack.c.l.b16 %v61
  %v77 = vunpack.c.l.b16 %v62
  %v78 = vunpack.c.l.b16 %v63
  %v79 = vunpack.c.l.b16 %v64
  %v80 = vpack.c.b16 %v77, %v76
  %v81 = vpack.c.b16 %v79, %v78
  %vm84 = vcmask 261120
  %v86 = vsel %vm84, %v60, 0
  %88 = vmatprep.subr.bf16.mxu0 0
  %89 = vmatpush1.bf16.msra.mxu0 %v80
  %90 = vmatprep.subr.bf16.mxu0 0
  %91 = vmatpush1.bf16.msra.mxu0 %v81
  %92 = vmatprep.subr.bf16.mxu0 0
  %93 = vmatpush1.bf16.msra.mxu0 0
  %94 = vmatprep.subr.bf16.mxu0 0
  %95 = vmatpush1.bf16.msra.mxu0 0
  %96 = vmatprep.subr.bf16.mxu0 0
  %97 = vmatpush1.bf16.msra.mxu0 0
  %98 = vmatprep.subr.bf16.mxu0 0
  %99 = vmatpush1.bf16.msra.mxu0 0
  %100 = vmatprep.subr.bf16.mxu0 0
  %101 = vmatpush1.bf16.msra.mxu0 0
  %102 = vmatprep.subr.bf16.mxu0 0
  %103 = vmatpush1.bf16.msra.mxu0 0
  %104 = vmatprep.subr.bf16.mxu0 0
  %105 = vmatpush1.bf16.msra.mxu0 0
  %106 = vmatprep.subr.bf16.mxu0 0
  %107 = vmatpush1.bf16.msra.mxu0 0
  %108 = vmatprep.subr.bf16.mxu0 0
  %109 = vmatpush1.bf16.msra.mxu0 0
  %110 = vmatprep.subr.bf16.mxu0 0
  %111 = vmatpush1.bf16.msra.mxu0 0
  %112 = vmatprep.subr.bf16.mxu0 0
  %113 = vmatpush1.bf16.msra.mxu0 0
  %114 = vmatprep.subr.bf16.mxu0 0
  %115 = vmatpush1.bf16.msra.mxu0 0
  %116 = vmatprep.subr.bf16.mxu0 0
  %117 = vmatpush1.bf16.msra.mxu0 0
  %118 = vmatprep.subr.bf16.mxu0 0
  %119 = vmatpush1.bf16.msra.mxu0 0
  %120 = vmatprep.mubr.bf16.mxu0 0
  %121 = vmatmul.mubr.bf16.gmra.mrb[0].mxu0 %v86
  %v122 = vpop.f32.mrb[0].mxu0
  %v123 = vadd.f32 %v70, %v122
  %v124 = vpop.f32.mrb[0].mxu0
  %v125 = vpop.f32.mrb[0].mxu0
  %v126 = vpop.f32.mrb[0].mxu0
  %127 = vdwg.mxu0
  %128 = vst.msk [vmem:[%s5] sm:$0xff] %vm84, %v123
  // Predicated region
  $region26: #{paligemma_forward.22} parent=0 // pred_check
    _
  $region27: #{paligemma_forward.22} parent=0 // pred_check_branch
    %130 = sbr.rel (0) target = $region29
  $region28: #{paligemma_forward.22} parent=0 // pred_region
    _
  $region29: #{paligemma_forward.22} parent=0 // pred_fallthru
    _
  // Predicated region
  $region30: #{paligemma_forward.22} parent=0 // pred_check
    _
  $region31: #{paligemma_forward.22} parent=0 // pred_check_branch
    %132 = sbr.rel (0) target = $region33
  $region32: #{paligemma_forward.22} parent=0 // pred_region
    _
  $region33: #{paligemma_forward.22} parent=0 // pred_fallthru
    _

// kernel: paligemma_forward.25
$region0: #{paligemma_forward.25}
  #allocation0 [shape = 'u32[]', space=smem, size = 0x4, offset = 0x4, fixed_abs, tag = 'smem constant byte address 0x4 - core index']
  #allocation1 [shape = 'u32[144,128]{1,0:T(1,128)}', space=vmem, size = 0x12000, scoped, tag = 'internal scratch']
  %s0 = inlined_call_operand.vmem [shape: f32[16,32], index: 0, kind: input, shape index: {}]
  %s1 = inlined_call_operand.vmem [shape: f32[1,32], index: 1, kind: input, shape index: {}]
  %s2 = inlined_call_operand.vmem [shape: bf16[32,128], index: 2, kind: input, shape index: {}]
  %s3 = inlined_call_operand.vmem [shape: bf16[64,32], index: 3, kind: input, shape index: {}]
  %s4 = inlined_call_operand.vmem [shape: f32[16,32], index: 4, kind: output, shape index: {}]
  %s5 = sld [smem:[#allocation0]]
  $region49: #{paligemma_forward.25} parent=0
    _
  %s7 = ssub.s32 1, %s5
  %s8 = scalar_select 0, %s7, %s5
  loop: start=0, step=1, limit=4
  $region2: #{paligemma_forward.25} parent=0 // loop_pre_header
    _
  $region3: #{paligemma_forward.25} parent=0 // loop_header
    %s10 = sphi 0, %s14
    %p11 = scmp.ge.s32.totalorder %s10, 4
    %s20 = sphi 0, %s22
    %s23 = sphi 0, %s20
    %s24 = sphi 0, %s23
    %s40 = sphi 0, %s24
    %s44 = sphi 0, %s44
    %s46 = sphi 0, %s44
    %s47 = sphi 0, %s46
    %s61 = sphi 0, %s47
    %s65 = sphi 0, %s65
    %s67 = sphi 0, %s65
    %s68 = sphi 0, %s67
    %s82 = sphi 0, %s68
    %s86 = sphi 0, %s86
    %s88 = sphi 0, %s86
    %s89 = sphi 0, %s88
    %s103 = sphi 0, %s89
    %s109 = sphi 0, %s111
    %s112 = sphi 0, %s109
    %s113 = sphi 0, %s112
    %s129 = sphi 0, %s113
  $region4: #{paligemma_forward.25} parent=0 // loop_header_branch
    %13 = sbr.rel (%p11) target = $region8
  $region5: #{paligemma_forward.25} parent=0 // loop_body
    %s15 = ssub.s32 %s10, 1
    %s16 = ssub.s32 %s10, 2
    %s17 = sadd.s32 %s10, 1
    %s18 = ssub.s32 %s10, %s17
    %p19 = scmp.eq.s32.totalorder %s18, 0
    %s21 = sadd.s32 %s20, 1
    %s22 = scalar_select %p19, %s20, %s21
    %p25 = pneg %p19
    %p26 = scmp.eq.s32.totalorder %s10, 1
    %p27 = por %p25, %p26
    %p28 = scmp.ne.s32.totalorder %s20, %s23
    %p29 = scmp.eq.s32.totalorder %s10, 0
    %p30 = por %p28, %p29
    %p31 = scmp.ne.s32.totalorder %s20, %s23
    %p32 = scmp.eq.s32.totalorder %s15, 1
    %p33 = por %p31, %p32
    %p34 = scmp.ne.s32.totalorder %s23, %s24
    %p35 = scmp.eq.s32.totalorder %s15, 0
    %p36 = por %p34, %p35
    %p37 = scmp.ne.s32.totalorder %s23, %s24
    %p38 = scmp.eq.s32.totalorder %s16, 1
    %p39 = por %p37, %p38
    %p41 = scmp.ne.s32.totalorder %s24, %s40
    %p42 = scmp.eq.s32.totalorder %s16, 0
    %p43 = por %p41, %p42
    %s45 = sadd.s32 %s44, 1
    %p48 = scmp.eq.s32.totalorder %s10, 1
    %p49 = scmp.ne.s32.totalorder %s44, %s46
    %p50 = scmp.eq.s32.totalorder %s10, 0
    %p51 = por %p49, %p50
    %p52 = scmp.ne.s32.totalorder %s44, %s46
    %p53 = scmp.eq.s32.totalorder %s15, 1
    %p54 = por %p52, %p53
    %p55 = scmp.ne.s32.totalorder %s46, %s47
    %p56 = scmp.eq.s32.totalorder %s15, 0
    %p57 = por %p55, %p56
    %p58 = scmp.ne.s32.totalorder %s46, %s47
    %p59 = scmp.eq.s32.totalorder %s16, 1
    %p60 = por %p58, %p59
    %p62 = scmp.ne.s32.totalorder %s47, %s61
    %p63 = scmp.eq.s32.totalorder %s16, 0
    %p64 = por %p62, %p63
    %s66 = sadd.s32 %s65, 1
    %p69 = scmp.eq.s32.totalorder %s10, 1
    %p70 = scmp.ne.s32.totalorder %s65, %s67
    %p71 = scmp.eq.s32.totalorder %s10, 0
    %p72 = por %p70, %p71
    %p73 = scmp.ne.s32.totalorder %s65, %s67
    %p74 = scmp.eq.s32.totalorder %s15, 1
    %p75 = por %p73, %p74
    %p76 = scmp.ne.s32.totalorder %s67, %s68
    %p77 = scmp.eq.s32.totalorder %s15, 0
    %p78 = por %p76, %p77
    %p79 = scmp.ne.s32.totalorder %s67, %s68
    %p80 = scmp.eq.s32.totalorder %s16, 1
    %p81 = por %p79, %p80
    %p83 = scmp.ne.s32.totalorder %s68, %s82
    %p84 = scmp.eq.s32.totalorder %s16, 0
    %p85 = por %p83, %p84
    %s87 = sadd.s32 %s86, 1
    %p90 = scmp.eq.s32.totalorder %s10, 1
    %p91 = scmp.ne.s32.totalorder %s86, %s88
    %p92 = scmp.eq.s32.totalorder %s10, 0
    %p93 = por %p91, %p92
    %p94 = scmp.ne.s32.totalorder %s86, %s88
    %p95 = scmp.eq.s32.totalorder %s15, 1
    %p96 = por %p94, %p95
    %p97 = scmp.ne.s32.totalorder %s88, %s89
    %p98 = scmp.eq.s32.totalorder %s15, 0
    %p99 = por %p97, %p98
    %p100 = scmp.ne.s32.totalorder %s88, %s89
    %p101 = scmp.eq.s32.totalorder %s16, 1
    %p102 = por %p100, %p101
    %p104 = scmp.ne.s32.totalorder %s89, %s103
    %p105 = scmp.eq.s32.totalorder %s16, 0
    %p106 = por %p104, %p105
    %s107 = ssub.s32 %s10, %s17
    %p108 = scmp.eq.s32.totalorder %s107, 0
    %s110 = sadd.s32 %s109, 1
    %s111 = scalar_select %p108, %s109, %s110
    %p114 = pneg %p108
    %p115 = scmp.eq.s32.totalorder %s10, 1
    %p116 = por %p114, %p115
    %p117 = scmp.ne.s32.totalorder %s109, %s112
    %p118 = scmp.eq.s32.totalorder %s10, 0
    %p119 = por %p117, %p118
    %p120 = scmp.ne.s32.totalorder %s109, %s112
    %p121 = scmp.eq.s32.totalorder %s15, 1
    %p122 = por %p120, %p121
    %p123 = scmp.ne.s32.totalorder %s112, %s113
    %p124 = scmp.eq.s32.totalorder %s15, 0
    %p125 = por %p123, %p124
    %p126 = scmp.ne.s32.totalorder %s112, %s113
    %p127 = scmp.eq.s32.totalorder %s16, 1
    %p128 = por %p126, %p127
    %p130 = scmp.ne.s32.totalorder %s113, %s129
    %p131 = scmp.eq.s32.totalorder %s16, 0
    %p132 = por %p130, %p131
    %p133 = scmp.le.s32.totalorder 1, %s10
    %p134 = scmp.lt.s32.totalorder %s10, 3
    %p135 = pnand %p133, %p134
    %p136 = pneg %p135
    // Predicated region
    $region9: #{paligemma_forward.25} parent=5 // pred_check
      _
    $region10: #{paligemma_forward.25} parent=5 // pred_check_branch
      %138 = sbr.rel (%p135) target = $region12
    $region11: #{paligemma_forward.25} parent=5 // pred_region
      %s139 = ssub.s32 %s10, 1
      // Predicated region
      $region13: #{paligemma_forward.25} parent=11 // pred_check
        %p140 = pneg %p57
      $region14: #{paligemma_forward.25} parent=11 // pred_check_branch
        %142 = sbr.rel (%p140) target = $region16
      $region15: #{paligemma_forward.25} parent=11 // pred_region
        _
      $region16: #{paligemma_forward.25} parent=11 // pred_fallthru
        _
      // Predicated region
      $region17: #{paligemma_forward.25} parent=11 // pred_check
        %p143 = pneg %p78
      $region18: #{paligemma_forward.25} parent=11 // pred_check_branch
        %145 = sbr.rel (%p143) target = $region20
      $region19: #{paligemma_forward.25} parent=11 // pred_region
        _
      $region20: #{paligemma_forward.25} parent=11 // pred_fallthru
        _
      // Predicated region
      $region21: #{paligemma_forward.25} parent=11 // pred_check
        %p146 = pneg %p99
      $region22: #{paligemma_forward.25} parent=11 // pred_check_branch
        %148 = sbr.rel (%p146) target = $region24
      $region23: #{paligemma_forward.25} parent=11 // pred_region
        _
      $region24: #{paligemma_forward.25} parent=11 // pred_fallthru
        _
    $region12: #{paligemma_forward.25} parent=5 // pred_fallthru
      _
    %p149 = scmp.lt.s32.totalorder %s10, 2
    // Predicated region
    $region25: #{paligemma_forward.25} parent=5 // pred_check
      %p150 = pneg %p149
    $region26: #{paligemma_forward.25} parent=5 // pred_check_branch
      %152 = sbr.rel (%p150) target = $region28
    $region27: #{paligemma_forward.25} parent=5 // pred_region
      // Predicated region
      $region29: #{paligemma_forward.25} parent=27 // pred_check
        %p153 = pneg %p30
      $region30: #{paligemma_forward.25} parent=27 // pred_check_branch
        %155 = sbr.rel (%p153) target = $region32
      $region31: #{paligemma_forward.25} parent=27 // pred_region
        %p156 = scmp.lt.s32.totalorder %s10, 1
        %s157 = scalar_select %p156, %s10, 1
        %s158 = smul.addr %s157, 8
        %s159 = scalar_lea.vmem %s0, %s158
      $region32: #{paligemma_forward.25} parent=27 // pred_fallthru
        _
    $region28: #{paligemma_forward.25} parent=5 // pred_fallthru
      _
    %p160 = scmp.le.s32.totalorder 1, %s10
    %p161 = scmp.lt.s32.totalorder %s10, 3
    %p162 = pnand %p160, %p161
    %p163 = pneg %p162
    // Predicated region
    $region33: #{paligemma_forward.25} parent=5 // pred_check
      _
    $region34: #{paligemma_forward.25} parent=5 // pred_check_branch
      %165 = sbr.rel (%p162) target = $region36
    $region35: #{paligemma_forward.25} parent=5 // pred_region
      %s166 = ssub.s32 %s10, 1
      %p167 = scmp.lt.s32.totalorder %s15, 1
      %s168 = scalar_select %p167, %s15, 1
      %s169 = smul.addr %s168, 8
      %s170 = scalar_lea.vmem %s0, %s169
      %p171 = pneg %p36
      %p172 = pneg %p33
      %p173 = pneg %p57
      %p174 = pneg %p54
      %p175 = pneg %p78
      %p176 = pneg %p75
      %p177 = pneg %p99
      %p178 = pneg %p96
      %p179 = pneg %p125
      %p180 = pneg %p122
      %p181 = scmp.lt.s32.totalorder %s15, 1
      %s182 = scalar_select %p181, %s15, 1
      %s183 = smul.addr %s182, 8
      %s184 = scalar_lea.vmem %s4, %s183
      %p185 = scmp.lt.s32.totalorder %s15, 1
      %s186 = scalar_select %p185, %s15, 1
      %s187 = smul.addr %s186, 8
      %s188 = scalar_lea.vmem %s0, %s187
      %p189 = scmp.lt.s32.totalorder %s15, 1
      %s190 = scalar_select %p189, %s15, 1
      %s191 = smul.addr %s190, 8
      %s192 = scalar_lea.vmem %s4, %s191
      %v194 = vld [vmem:[%s188] sm:$0xff]
      %v195 = vmul.f32 %v194, %v194
      %vm196 = vcmask 261120
      %v197 = vsel %vm196, %v195, 0.0
      %198 = vadd.xlane.f32.xlu0 %v197
      %v199 = vpop.xlane.xlu0 %198
      %v200 = vrcp.pop 32.0
      %v201 = vmul.f32 %v199, %v200
      %v202 = vadd.f32 %v201, 1e-06
      %v203 = vrsqrt.pop %v202
      %v204 = vmul.f32 %v194, %v203
      %v205 = vld [vmem:[%s1] sm:$0x1]
      %v206 = vadd.f32 %v205, 1.0
      %v208 = vlaneseq
      %v209 = vshrl.u32 %v208, 7
      %v210 = vsub.s32 0, %v209
      %v211 = vrot.slane %v206, %v210
      %v213 = vmul.f32 %v204, %v211
      %v214 = vpack.c.bf16 %v213, %v213
      %v215 = vld [vmem:[%s2] sm:$0xf]
      %v216 = vld [vmem:[%s2 + $0x4] sm:$0xf]
      %v217 = vld [vmem:[%s2 + $0x8] sm:$0xf]
      %v218 = vld [vmem:[%s2 + $0xc] sm:$0xf]
      %v223 = vunpack.c.l.b16 %v215
      %v224 = vunpack.c.l.b16 %v216
      %v225 = vunpack.c.l.b16 %v217
      %v226 = vunpack.c.l.b16 %v218
      %v227 = vpack.c.b16 %v224, %v223
      %v228 = vpack.c.b16 %v226, %v225
      %v232 = vsel %vm196, %v214, 0
      %234 = vmatprep.subr.bf16.mxu0 0
      %235 = vmatpush1.bf16.msra.mxu0 %v227
      %236 = vmatprep.subr.bf16.mxu0 0
      %237 = vmatpush1.bf16.msra.mxu0 %v228
      %238 = vmatprep.subr.bf16.mxu0 0
      %239 = vmatpush1.bf16.msra.mxu0 0
      %240 = vmatprep.subr.bf16.mxu0 0
      %241 = vmatpush1.bf16.msra.mxu0 0
      %242 = vmatprep.subr.bf16.mxu0 0
      %243 = vmatpush1.bf16.msra.mxu0 0
      %244 = vmatprep.subr.bf16.mxu0 0
      %245 = vmatpush1.bf16.msra.mxu0 0
      %246 = vmatprep.subr.bf16.mxu0 0
      %247 = vmatpush1.bf16.msra.mxu0 0
      %248 = vmatprep.subr.bf16.mxu0 0
      %249 = vmatpush1.bf16.msra.mxu0 0
      %250 = vmatprep.subr.bf16.mxu0 0
      %251 = vmatpush1.bf16.msra.mxu0 0
      %252 = vmatprep.subr.bf16.mxu0 0
      %253 = vmatpush1.bf16.msra.mxu0 0
      %254 = vmatprep.subr.bf16.mxu0 0
      %255 = vmatpush1.bf16.msra.mxu0 0
      %256 = vmatprep.subr.bf16.mxu0 0
      %257 = vmatpush1.bf16.msra.mxu0 0
      %258 = vmatprep.subr.bf16.mxu0 0
      %259 = vmatpush1.bf16.msra.mxu0 0
      %260 = vmatprep.subr.bf16.mxu0 0
      %261 = vmatpush1.bf16.msra.mxu0 0
      %262 = vmatprep.subr.bf16.mxu0 0
      %263 = vmatpush1.bf16.msra.mxu0 0
      %264 = vmatprep.subr.bf16.mxu0 0
      %265 = vmatpush1.bf16.msra.mxu0 0
      %266 = vmatprep.mubr.bf16.mxu0 0
      %267 = vmatmul.mubr.bf16.gmra.mrb[0].mxu0 %v232
      %v268 = vpop.f32.mrb[0].mxu0
      %v269 = vadd.f32 0.0, %v268
      %v270 = vpop.f32.mrb[0].mxu0
      %v271 = vpop.f32.mrb[0].mxu0
      %v272 = vpop.f32.mrb[0].mxu0
      %273 = vdwg.mxu0
      %v274 = vmul.f32 %v269, 0.5
      %v275 = vmul.f32 %v269, 0.044715
      %v276 = vmul.f32 %v275, %v269
      %v277 = vmul.f32 %v276, %v269
      %v278 = vadd.f32 %v269, %v277
      %v279 = vmul.f32 %v278, 0.7978846
      %v280 = vtanh.pop %v279
      %v281 = vadd.f32 %v280, 1.0
      %v282 = vmul.f32 %v274, %v281
      %284 = vrot.lane.b32.xlu0 %v269, 64
      %v285 = vpop.permute.xlu0 %284
      %v287 = vmul.f32 %v282, %v285
      %v288 = vpack.c.bf16 %v287, %v287
      %v289 = vld [vmem:[%s3] sm:$0xf]
      %v290 = vld [vmem:[%s3 + $0x4] sm:$0xf]
      %v291 = vld [vmem:[%s3 + $0x8] sm:$0xf]
      %v292 = vld [vmem:[%s3 + $0xc] sm:$0xf]
      %v293 = vld [vmem:[%s3 + $0x10] sm:$0xf]
      %v294 = vld [vmem:[%s3 + $0x14] sm:$0xf]
      %v295 = vld [vmem:[%s3 + $0x18] sm:$0xf]
      %v296 = vld [vmem:[%s3 + $0x1c] sm:$0xf]
      %v305 = vunpack.c.l.b16 %v289
      %v306 = vunpack.c.l.b16 %v290
      %v307 = vunpack.c.l.b16 %v291
      %v308 = vunpack.c.l.b16 %v292
      %v309 = vunpack.c.l.b16 %v293
      %v310 = vunpack.c.l.b16 %v294
      %v311 = vunpack.c.l.b16 %v295
      %v312 = vunpack.c.l.b16 %v296
      %v313 = vpack.c.b16 %v306, %v305
      %v314 = vpack.c.b16 %v308, %v307
      %v315 = vpack.c.b16 %v310, %v309
      %v316 = vpack.c.b16 %v312, %v311
      %vm321 = vcmask 523264
      %v323 = vsel %vm321, %v288, 0
      %325 = vmatprep.subr.bf16.mxu0 0
      %326 = vmatpush1.bf16.msra.mxu0 %v313
      %327 = vmatprep.subr.bf16.mxu0 0
      %328 = vmatpush1.bf16.msra.mxu0 %v314
      %329 = vmatprep.subr.bf16.mxu0 0
      %330 = vmatpush1.bf16.msra.mxu0 %v315
      %331 = vmatprep.subr.bf16.mxu0 0
      %332 = vmatpush1.bf16.msra.mxu0 %v316
      %333 = vmatprep.subr.bf16.mxu0 0
      %334 = vmatpush1.bf16.msra.mxu0 0
      %335 = vmatprep.subr.bf16.mxu0 0
      %336 = vmatpush1.bf16.msra.mxu0 0
      %337 = vmatprep.subr.bf16.mxu0 0
      %338 = vmatpush1.bf16.msra.mxu0 0
      %339 = vmatprep.subr.bf16.mxu0 0
      %340 = vmatpush1.bf16.msra.mxu0 0
      %341 = vmatprep.subr.bf16.mxu0 0
      %342 = vmatpush1.bf16.msra.mxu0 0
      %343 = vmatprep.subr.bf16.mxu0 0
      %344 = vmatpush1.bf16.msra.mxu0 0
      %345 = vmatprep.subr.bf16.mxu0 0
      %346 = vmatpush1.bf16.msra.mxu0 0
      %347 = vmatprep.subr.bf16.mxu0 0
      %348 = vmatpush1.bf16.msra.mxu0 0
      %349 = vmatprep.subr.bf16.mxu0 0
      %350 = vmatpush1.bf16.msra.mxu0 0
      %351 = vmatprep.subr.bf16.mxu0 0
      %352 = vmatpush1.bf16.msra.mxu0 0
      %353 = vmatprep.subr.bf16.mxu0 0
      %354 = vmatpush1.bf16.msra.mxu0 0
      %355 = vmatprep.subr.bf16.mxu0 0
      %356 = vmatpush1.bf16.msra.mxu0 0
      %357 = vmatprep.mubr.bf16.mxu0 0
      %358 = vmatmul.mubr.bf16.gmra.mrb[0].mxu0 %v323
      %v359 = vpop.f32.mrb[0].mxu0
      %v360 = vadd.f32 0.0, %v359
      %v361 = vpop.f32.mrb[0].mxu0
      %v362 = vpop.f32.mrb[0].mxu0
      %v363 = vpop.f32.mrb[0].mxu0
      %364 = vdwg.mxu0
      %v365 = vadd.f32 %v194, %v360
      %366 = vst.msk [vmem:[%s192] sm:$0xff] %vm196, %v365
      %p367 = scmp.lt.s32.totalorder %s15, 1
      %s368 = scalar_select %p367, %s15, 1
      %s369 = smul.addr %s368, 8
      %s370 = scalar_lea.vmem %s4, %s369
      // Predicated region
      $region37: #{paligemma_forward.25} parent=35 // pred_check
        %p371 = pneg %p122
      $region38: #{paligemma_forward.25} parent=35 // pred_check_branch
        %373 = sbr.rel (%p371) target = $region40
      $region39: #{paligemma_forward.25} parent=35 // pred_region
        _
      $region40: #{paligemma_forward.25} parent=35 // pred_fallthru
        _
    $region36: #{paligemma_forward.25} parent=5 // pred_fallthru
      _
    %p374 = scmp.le.s32.totalorder 2, %s10
    // Predicated region
    $region41: #{paligemma_forward.25} parent=5 // pred_check
      %p375 = pneg %p374
    $region42: #{paligemma_forward.25} parent=5 // pred_check_branch
      %377 = sbr.rel (%p375) target = $region44
    $region43: #{paligemma_forward.25} parent=5 // pred_region
      %s378 = ssub.s32 %s10, 2
      // Predicated region
      $region45: #{paligemma_forward.25} parent=43 // pred_check
        %p379 = pneg %p128
      $region46: #{paligemma_forward.25} parent=43 // pred_check_branch
        %381 = sbr.rel (%p379) target = $region48
      $region47: #{paligemma_forward.25} parent=43 // pred_region
        %p382 = scmp.lt.s32.totalorder %s16, 1
        %s383 = scalar_select %p382, %s16, 1
        %s384 = smul.addr %s383, 8
        %s385 = scalar_lea.vmem %s4, %s384
      $region48: #{paligemma_forward.25} parent=43 // pred_fallthru
        _
    $region44: #{paligemma_forward.25} parent=5 // pred_fallthru
      _
  $region6: #{paligemma_forward.25} parent=0 // loop_footer
    %s14 = sadd.s32 1, %s10
  $region7: #{paligemma_forward.25} parent=0 // loop_footer_branch
    %9 = sbr.rel target = $region3
  $region8: #{paligemma_forward.25} parent=0 // loop_exit
    _

// kernel: paligemma_forward.23
$region0: #{paligemma_forward.23}
  #allocation0 [shape = 'u32[]', space=smem, size = 0x4, offset = 0x4, fixed_abs, tag = 'smem constant byte address 0x4 - core index']
  #allocation1 [shape = 'u32[144,128]{1,0:T(1,128)}', space=vmem, size = 0x12000, scoped, tag = 'internal scratch']
  #allocation2 [shape = 'bf16[8,32]{1,0:T(8,128)(2,1)}', space=vmem, size = 0x800, scoped, tag = 'scratch operand']
  %s0 = inlined_call_operand.vmem [shape: f32[16,32], index: 0, kind: input, shape index: {}]
  %s1 = inlined_call_operand.vmem [shape: f32[1,32], index: 1, kind: input, shape index: {}]
  %s2 = inlined_call_operand.vmem [shape: bf16[32,128], index: 2, kind: input, shape index: {}]
  %s3 = inlined_call_operand.vmem [shape: bf16[16,128], index: 3, kind: output, shape index: {}]
  %s4 = sld [smem:[#allocation0]]
  $region49: #{paligemma_forward.23} parent=0
    _
  %s6 = ssub.s32 1, %s4
  %s7 = scalar_select 0, %s6, %s4
  loop: start=0, step=1, limit=4
  $region2: #{paligemma_forward.23} parent=0 // loop_pre_header
    _
  $region3: #{paligemma_forward.23} parent=0 // loop_header
    %s9 = sphi 0, %s13
    %p10 = scmp.ge.s32.totalorder %s9, 4
    %s16 = sphi 0, %s28
    %s17 = sphi 0, %s24
    %s18 = sphi 0, %s16
    %s19 = sphi 0, %s17
    %s20 = sphi 0, %s18
    %s21 = sphi 0, %s19
    %s31 = sphi 0, %s33
    %s34 = sphi 0, %s31
    %s35 = sphi 0, %s34
    %s51 = sphi 0, %s35
    %s55 = sphi 0, %s55
    %s57 = sphi 0, %s55
    %s58 = sphi 0, %s57
    %s72 = sphi 0, %s58
    %s78 = sphi 0, %s80
    %s81 = sphi 0, %s78
    %s82 = sphi 0, %s81
    %s98 = sphi 0, %s82
    %s106 = sphi 0, %s108
    %s109 = sphi 0, %s106
    %s110 = sphi 0, %s109
    %s126 = sphi 0, %s110
  $region4: #{paligemma_forward.23} parent=0 // loop_header_branch
    %12 = sbr.rel (%p10) target = $region8
  $region5: #{paligemma_forward.23} parent=0 // loop_body
    %s14 = ssub.s32 %s9, 1
    %s15 = ssub.s32 %s9, 2
    %s22 = sadd.s32 1, %s17
    %p23 = scmp.ge.s32.totalorder %s22, 1
    %s24 = scalar_select %p23, 0, %s22
    %s25 = sadd.s32 1, %s16
    %s26 = scalar_select %p23, %s25, %s16
    %p27 = scmp.ge.s32.totalorder %s26, 2
    %s28 = scalar_select %p27, 0, %s26
    %s29 = ssub.s32 %s16, %s28
    %p30 = scmp.eq.s32.totalorder %s29, 0
    %s32 = sadd.s32 %s31, 1
    %s33 = scalar_select %p30, %s31, %s32
    %p36 = pneg %p30
    %p37 = scmp.eq.s32.totalorder %s9, 1
    %p38 = por %p36, %p37
    %p39 = scmp.ne.s32.totalorder %s31, %s34
    %p40 = scmp.eq.s32.totalorder %s9, 0
    %p41 = por %p39, %p40
    %p42 = scmp.ne.s32.totalorder %s31, %s34
    %p43 = scmp.eq.s32.totalorder %s14, 1
    %p44 = por %p42, %p43
    %p45 = scmp.ne.s32.totalorder %s34, %s35
    %p46 = scmp.eq.s32.totalorder %s14, 0
    %p47 = por %p45, %p46
    %p48 = scmp.ne.s32.totalorder %s34, %s35
    %p49 = scmp.eq.s32.totalorder %s15, 1
    %p50 = por %p48, %p49
    %p52 = scmp.ne.s32.totalorder %s35, %s51
    %p53 = scmp.eq.s32.totalorder %s15, 0
    %p54 = por %p52, %p53
    %s56 = sadd.s32 %s55, 1
    %p59 = scmp.eq.s32.totalorder %s9, 1
    %p60 = scmp.ne.s32.totalorder %s55, %s57
    %p61 = scmp.eq.s32.totalorder %s9, 0
    %p62 = por %p60, %p61
    %p63 = scmp.ne.s32.totalorder %s55, %s57
    %p64 = scmp.eq.s32.totalorder %s14, 1
    %p65 = por %p63, %p64
    %p66 = scmp.ne.s32.totalorder %s57, %s58
    %p67 = scmp.eq.s32.totalorder %s14, 0
    %p68 = por %p66, %p67
    %p69 = scmp.ne.s32.totalorder %s57, %s58
    %p70 = scmp.eq.s32.totalorder %s15, 1
    %p71 = por %p69, %p70
    %p73 = scmp.ne.s32.totalorder %s58, %s72
    %p74 = scmp.eq.s32.totalorder %s15, 0
    %p75 = por %p73, %p74
    %s76 = ssub.s32 %s17, %s24
    %p77 = scmp.eq.s32.totalorder %s76, 0
    %s79 = sadd.s32 %s78, 1
    %s80 = scalar_select %p77, %s78, %s79
    %p83 = pneg %p77
    %p84 = scmp.eq.s32.totalorder %s9, 1
    %p85 = por %p83, %p84
    %p86 = scmp.ne.s32.totalorder %s78, %s81
    %p87 = scmp.eq.s32.totalorder %s9, 0
    %p88 = por %p86, %p87
    %p89 = scmp.ne.s32.totalorder %s78, %s81
    %p90 = scmp.eq.s32.totalorder %s14, 1
    %p91 = por %p89, %p90
    %p92 = scmp.ne.s32.totalorder %s81, %s82
    %p93 = scmp.eq.s32.totalorder %s14, 0
    %p94 = por %p92, %p93
    %p95 = scmp.ne.s32.totalorder %s81, %s82
    %p96 = scmp.eq.s32.totalorder %s15, 1
    %p97 = por %p95, %p96
    %p99 = scmp.ne.s32.totalorder %s82, %s98
    %p100 = scmp.eq.s32.totalorder %s15, 0
    %p101 = por %p99, %p100
    %s102 = ssub.s32 %s16, %s28
    %s103 = ssub.s32 %s17, %s24
    %s104 = sor.u32 %s102, %s103
    %p105 = scmp.eq.s32.totalorder %s104, 0
    %s107 = sadd.s32 %s106, 1
    %s108 = scalar_select %p105, %s106, %s107
    %p111 = pneg %p105
    %p112 = scmp.eq.s32.totalorder %s9, 1
    %p113 = por %p111, %p112
    %p114 = scmp.ne.s32.totalorder %s106, %s109
    %p115 = scmp.eq.s32.totalorder %s9, 0
    %p116 = por %p114, %p115
    %p117 = scmp.ne.s32.totalorder %s106, %s109
    %p118 = scmp.eq.s32.totalorder %s14, 1
    %p119 = por %p117, %p118
    %p120 = scmp.ne.s32.totalorder %s109, %s110
    %p121 = scmp.eq.s32.totalorder %s14, 0
    %p122 = por %p120, %p121
    %p123 = scmp.ne.s32.totalorder %s109, %s110
    %p124 = scmp.eq.s32.totalorder %s15, 1
    %p125 = por %p123, %p124
    %p127 = scmp.ne.s32.totalorder %s110, %s126
    %p128 = scmp.eq.s32.totalorder %s15, 0
    %p129 = por %p127, %p128
    %p130 = scmp.le.s32.totalorder 1, %s9
    %p131 = scmp.lt.s32.totalorder %s9, 3
    %p132 = pnand %p130, %p131
    %p133 = pneg %p132
    // Predicated region
    $region9: #{paligemma_forward.23} parent=5 // pred_check
      _
    $region10: #{paligemma_forward.23} parent=5 // pred_check_branch
      %135 = sbr.rel (%p132) target = $region12
    $region11: #{paligemma_forward.23} parent=5 // pred_region
      %s136 = ssub.s32 %s9, 1
      // Predicated region
      $region13: #{paligemma_forward.23} parent=11 // pred_check
        %p137 = pneg %p68
      $region14: #{paligemma_forward.23} parent=11 // pred_check_branch
        %139 = sbr.rel (%p137) target = $region16
      $region15: #{paligemma_forward.23} parent=11 // pred_region
        _
      $region16: #{paligemma_forward.23} parent=11 // pred_fallthru
        _
      // Predicated region
      $region17: #{paligemma_forward.23} parent=11 // pred_check
        %p140 = pneg %p94
      $region18: #{paligemma_forward.23} parent=11 // pred_check_branch
        %142 = sbr.rel (%p140) target = $region20
      $region19: #{paligemma_forward.23} parent=11 // pred_region
        %p143 = scmp.lt.s32.totalorder %s19, 0
        %s144 = scalar_select %p143, %s19, 0
        %s145 = smul.addr %s144, 4
        %s146 = scalar_lea.vmem %s2, %s145
      $region20: #{paligemma_forward.23} parent=11 // pred_fallthru
        _
    $region12: #{paligemma_forward.23} parent=5 // pred_fallthru
      _
    %p147 = scmp.lt.s32.totalorder %s9, 2
    // Predicated region
    $region21: #{paligemma_forward.23} parent=5 // pred_check
      %p148 = pneg %p147
    $region22: #{paligemma_forward.23} parent=5 // pred_check_branch
      %150 = sbr.rel (%p148) target = $region24
    $region23: #{paligemma_forward.23} parent=5 // pred_region
      // Predicated region
      $region25: #{paligemma_forward.23} parent=23 // pred_check
        %p151 = pneg %p41
      $region26: #{paligemma_forward.23} parent=23 // pred_check_branch
        %153 = sbr.rel (%p151) target = $region28
      $region27: #{paligemma_forward.23} parent=23 // pred_region
        %p154 = scmp.lt.s32.totalorder %s16, 1
        %s155 = scalar_select %p154, %s16, 1
        %s156 = smul.addr %s155, 8
        %s157 = scalar_lea.vmem %s0, %s156
      $region28: #{paligemma_forward.23} parent=23 // pred_fallthru
        _
    $region24: #{paligemma_forward.23} parent=5 // pred_fallthru
      _
    %p158 = scmp.le.s32.totalorder 1, %s9
    %p159 = scmp.lt.s32.totalorder %s9, 3
    %p160 = pnand %p158, %p159
    %p161 = pneg %p160
    // Predicated region
    $region29: #{paligemma_forward.23} parent=5 // pred_check
      _
    $region30: #{paligemma_forward.23} parent=5 // pred_check_branch
      %163 = sbr.rel (%p160) target = $region32
    $region31: #{paligemma_forward.23} parent=5 // pred_region
      %s164 = ssub.s32 %s9, 1
      %p165 = scmp.lt.s32.totalorder %s18, 1
      %s166 = scalar_select %p165, %s18, 1
      %s167 = smul.addr %s166, 8
      %s168 = scalar_lea.vmem %s0, %s167
      %p169 = pneg %p47
      %p170 = pneg %p44
      %p171 = pneg %p68
      %p172 = pneg %p65
      %p173 = scmp.lt.s32.totalorder %s19, 0
      %s174 = scalar_select %p173, %s19, 0
      %s175 = smul.addr %s174, 4
      %s176 = scalar_lea.vmem %s2, %s175
      %p177 = pneg %p94
      %p178 = pneg %p91
      %p179 = pneg %p122
      %p180 = pneg %p119
      %p181 = scmp.lt.s32.totalorder %s18, 1
      %s182 = scalar_select %p181, %s18, 1
      %p183 = scmp.lt.s32.totalorder %s19, 0
      %s184 = scalar_select %p183, %s19, 0
      %s185 = sadd.s32 %s184, %s182
      %s186 = smul.addr %s185, 4
      %s187 = scalar_lea.vmem %s3, %s186
      %p188 = scmp.lt.s32.totalorder %s18, 1
      %s189 = scalar_select %p188, %s18, 1
      %s190 = smul.addr %s189, 8
      %s191 = scalar_lea.vmem %s0, %s190
      %p192 = scmp.lt.s32.totalorder %s19, 0
      %s193 = scalar_select %p192, %s19, 0
      %s194 = smul.addr %s193, 4
      %s195 = scalar_lea.vmem %s2, %s194
      %p196 = scmp.lt.s32.totalorder %s18, 1
      %s197 = scalar_select %p196, %s18, 1
      %p198 = scmp.lt.s32.totalorder %s19, 0
      %s199 = scalar_select %p198, %s19, 0
      %s200 = sadd.s32 %s199, %s197
      %s201 = smul.addr %s200, 4
      %s202 = scalar_lea.vmem %s3, %s201
      %p204 = scmp.eq.s32.totalorder %s19, 0
      // Predicated region
      $region33: #{paligemma_forward.23} parent=31 // pred_check
        %p205 = pneg %p204
      $region34: #{paligemma_forward.23} parent=31 // pred_check_branch
        %207 = sbr.rel (%p205) target = $region36
      $region35: #{paligemma_forward.23} parent=31 // pred_region
        %v208 = vld [vmem:[%s191] sm:$0xff]
        %v209 = vmul.f32 %v208, %v208
        %vm210 = vcmask 261120
        %v211 = vsel %vm210, %v209, 0.0
        %212 = vadd.xlane.f32.xlu0 %v211
        %v213 = vpop.xlane.xlu0 %212
        %v214 = vrcp.pop 32.0
        %v215 = vmul.f32 %v213, %v214
        %v216 = vadd.f32 %v215, 1e-06
        %v217 = vrsqrt.pop %v216
        %v218 = vmul.f32 %v208, %v217
        %v219 = vld [vmem:[%s1] sm:$0x1]
        %v220 = vadd.f32 %v219, 1.0
        %v222 = vlaneseq
        %v223 = vshrl.u32 %v222, 7
        %v224 = vsub.s32 0, %v223
        %v225 = vrot.slane %v220, %v224
        %v227 = vmul.f32 %v218, %v225
        %v228 = vpack.c.bf16 %v227, %v227
        %vm229 = vcmask 257024
        %230 = vst.msk [vmem:[#allocation2] sm:$0xf] %vm229, %v228
      $region36: #{paligemma_forward.23} parent=31 // pred_fallthru
        _
      %v231 = vld [vmem:[#allocation2] sm:$0xf]
      %v232 = vld [vmem:[%s195] sm:$0xf]
      %v233 = vld [vmem:[%s195 + $0x4] sm:$0xf]
      %v234 = vld [vmem:[%s195 + $0x8] sm:$0xf]
      %v235 = vld [vmem:[%s195 + $0xc] sm:$0xf]
      %v240 = vunpack.c.l.b16 %v232
      %v241 = vunpack.c.l.b16 %v233
      %v242 = vunpack.c.l.b16 %v234
      %v243 = vunpack.c.l.b16 %v235
      %v244 = vpack.c.b16 %v241, %v240
      %v245 = vpack.c.b16 %v243, %v242
      %vm248 = vcmask 261120
      %v250 = vsel %vm248, %v231, 0
      %252 = vmatprep.subr.bf16.mxu0 0
      %253 = vmatpush1.bf16.msra.mxu0 %v244
      %254 = vmatprep.subr.bf16.mxu0 0
      %255 = vmatpush1.bf16.msra.mxu0 %v245
      %256 = vmatprep.subr.bf16.mxu0 0
      %257 = vmatpush1.bf16.msra.mxu0 0
      %258 = vmatprep.subr.bf16.mxu0 0
      %259 = vmatpush1.bf16.msra.mxu0 0
      %260 = vmatprep.subr.bf16.mxu0 0
      %261 = vmatpush1.bf16.msra.mxu0 0
      %262 = vmatprep.subr.bf16.mxu0 0
      %263 = vmatpush1.bf16.msra.mxu0 0
      %264 = vmatprep.subr.bf16.mxu0 0
      %265 = vmatpush1.bf16.msra.mxu0 0
      %266 = vmatprep.subr.bf16.mxu0 0
      %267 = vmatpush1.bf16.msra.mxu0 0
      %268 = vmatprep.subr.bf16.mxu0 0
      %269 = vmatpush1.bf16.msra.mxu0 0
      %270 = vmatprep.subr.bf16.mxu0 0
      %271 = vmatpush1.bf16.msra.mxu0 0
      %272 = vmatprep.subr.bf16.mxu0 0
      %273 = vmatpush1.bf16.msra.mxu0 0
      %274 = vmatprep.subr.bf16.mxu0 0
      %275 = vmatpush1.bf16.msra.mxu0 0
      %276 = vmatprep.subr.bf16.mxu0 0
      %277 = vmatpush1.bf16.msra.mxu0 0
      %278 = vmatprep.subr.bf16.mxu0 0
      %279 = vmatpush1.bf16.msra.mxu0 0
      %280 = vmatprep.subr.bf16.mxu0 0
      %281 = vmatpush1.bf16.msra.mxu0 0
      %282 = vmatprep.subr.bf16.mxu0 0
      %283 = vmatpush1.bf16.msra.mxu0 0
      %284 = vmatprep.mubr.bf16.mxu0 0
      %285 = vmatmul.mubr.bf16.gmra.mrb[0].mxu0 %v250
      %v286 = vpop.f32.mrb[0].mxu0
      %v287 = vadd.f32 0.0, %v286
      %v288 = vpop.f32.mrb[0].mxu0
      %v289 = vpop.f32.mrb[0].mxu0
      %v290 = vpop.f32.mrb[0].mxu0
      %291 = vdwg.mxu0
      %v292 = vpack.c.bf16 %v287, %v287
      %293 = vst [vmem:[%s202] sm:$0xf] %v292
      %p294 = scmp.lt.s32.totalorder %s18, 1
      %s295 = scalar_select %p294, %s18, 1
      %p296 = scmp.lt.s32.totalorder %s19, 0
      %s297 = scalar_select %p296, %s19, 0
      %s298 = sadd.s32 %s297, %s295
      %s299 = smul.addr %s298, 4
      %s300 = scalar_lea.vmem %s3, %s299
      // Predicated region
      $region37: #{paligemma_forward.23} parent=31 // pred_check
        %p301 = pneg %p119
      $region38: #{paligemma_forward.23} parent=31 // pred_check_branch
        %303 = sbr.rel (%p301) target = $region40
      $region39: #{paligemma_forward.23} parent=31 // pred_region
        _
      $region40: #{paligemma_forward.23} parent=31 // pred_fallthru
        _
    $region32: #{paligemma_forward.23} parent=5 // pred_fallthru
      _
    %p304 = scmp.le.s32.totalorder 2, %s9
    // Predicated region
    $region41: #{paligemma_forward.23} parent=5 // pred_check
      %p305 = pneg %p304
    $region42: #{paligemma_forward.23} parent=5 // pred_check_branch
      %307 = sbr.rel (%p305) target = $region44
    $region43: #{paligemma_forward.23} parent=5 // pred_region
      %s308 = ssub.s32 %s9, 2
      // Predicated region
      $region45: #{paligemma_forward.23} parent=43 // pred_check
        %p309 = pneg %p125
      $region46: #{paligemma_forward.23} parent=43 // pred_check_branch
        %311 = sbr.rel (%p309) target = $region48
      $region47: #{paligemma_forward.23} parent=43 // pred_region
        %p312 = scmp.lt.s32.totalorder %s20, 1
        %s313 = scalar_select %p312, %s20, 1
        %p314 = scmp.lt.s32.totalorder %s21, 0
        %s315 = scalar_select %p314, %s21, 0
        %s316 = sadd.s32 %s315, %s313
        %s317 = smul.addr %s316, 4
        %s318 = scalar_lea.vmem %s3, %s317
      $region48: #{paligemma_forward.23} parent=43 // pred_fallthru
        _
    $region44: #{paligemma_forward.23} parent=5 // pred_fallthru
      _
  $region6: #{paligemma_forward.23} parent=0 // loop_footer
    %s13 = sadd.s32 1, %s9
  $region7: #{paligemma_forward.23} parent=0 // loop_footer_branch
    %8 = sbr.rel target = $region3
  $region8: #{paligemma_forward.23} parent=0 // loop_exit
    _

// kernel: paligemma_forward.29
$region0: #{paligemma_forward.29}
  #allocation0 [shape = 'u32[]', space=smem, size = 0x4, offset = 0x4, fixed_abs, tag = 'smem constant byte address 0x4 - core index']
  #allocation1 [shape = 'u32[144,128]{1,0:T(1,128)}', space=vmem, size = 0x12000, scoped, tag = 'internal scratch']
  #allocation2 [shape = 'bf16[8,32]{1,0:T(8,128)(2,1)}', space=vmem, size = 0x800, scoped, tag = 'scratch operand']
  %s0 = inlined_call_operand.vmem [shape: f32[16,32], index: 0, kind: input, shape index: {}]
  %s1 = inlined_call_operand.vmem [shape: f32[1,32], index: 1, kind: input, shape index: {}]
  %s2 = inlined_call_operand.vmem [shape: bf16[32,128], index: 2, kind: input, shape index: {}]
  %s3 = inlined_call_operand.vmem [shape: f32[1,128], index: 3, kind: input, shape index: {}]
  %s4 = inlined_call_operand.hbm [shape: f32[16,128], index: 4, kind: output, shape index: {}]
  %s5 = sld [smem:[#allocation0]]
  $region53: #{paligemma_forward.29} parent=0
    _
  %s7 = ssub.s32 1, %s5
  %s8 = scalar_select 0, %s7, %s5
  $region1: #{paligemma_forward.29} parent=0
    #allocation3 [shape = 'u8[8192]{0}', space=vmem, size = 0x2000, scoped, tag = 'output window, operand 0']
    #allocation4 [shape = 's32[2]{0}', space=sflag, size = 0x8, scoped, tag = 'scoped memory for paligemma_forward.29']
    %9 = vsyncpa [#allocation4], 0
    %s10 = scalar_lea.sflag [#allocation4], 1
    %11 = vsyncpa %s10, 0
    loop: start=0, step=1, limit=4
    $region2: #{paligemma_forward.29} parent=1 // loop_pre_header
      _
    $region3: #{paligemma_forward.29} parent=1 // loop_header
      %s13 = sphi 0, %s17
      %p14 = scmp.ge.s32.totalorder %s13, 4
      %s20 = sphi 0, %s32
      %s21 = sphi 0, %s28
      %s22 = sphi 0, %s20
      %s23 = sphi 0, %s21
      %s24 = sphi 0, %s22
      %s25 = sphi 0, %s23
      %s35 = sphi 0, %s37
      %s38 = sphi 0, %s35
      %s39 = sphi 0, %s38
      %s55 = sphi 0, %s39
      %s59 = sphi 0, %s59
      %s61 = sphi 0, %s59
      %s62 = sphi 0, %s61
      %s76 = sphi 0, %s62
      %s82 = sphi 0, %s84
      %s85 = sphi 0, %s82
      %s86 = sphi 0, %s85
      %s102 = sphi 0, %s86
      %s108 = sphi 0, %s110
      %s111 = sphi 0, %s108
      %s112 = sphi 0, %s111
      %s128 = sphi 0, %s112
      %s136 = sphi 0, %s138
      %s139 = sphi 0, %s136
      %s140 = sphi 0, %s139
      %s156 = sphi 0, %s140
    $region4: #{paligemma_forward.29} parent=1 // loop_header_branch
      %16 = sbr.rel (%p14) target = $region8
    $region5: #{paligemma_forward.29} parent=1 // loop_body
      %s18 = ssub.s32 %s13, 1
      %s19 = ssub.s32 %s13, 2
      %s26 = sadd.s32 1, %s21
      %p27 = scmp.ge.s32.totalorder %s26, 1
      %s28 = scalar_select %p27, 0, %s26
      %s29 = sadd.s32 1, %s20
      %s30 = scalar_select %p27, %s29, %s20
      %p31 = scmp.ge.s32.totalorder %s30, 2
      %s32 = scalar_select %p31, 0, %s30
      %s33 = ssub.s32 %s20, %s32
      %p34 = scmp.eq.s32.totalorder %s33, 0
      %s36 = sadd.s32 %s35, 1
      %s37 = scalar_select %p34, %s35, %s36
      %p40 = pneg %p34
      %p41 = scmp.eq.s32.totalorder %s13, 1
      %p42 = por %p40, %p41
      %p43 = scmp.ne.s32.totalorder %s35, %s38
      %p44 = scmp.eq.s32.totalorder %s13, 0
      %p45 = por %p43, %p44
      %p46 = scmp.ne.s32.totalorder %s35, %s38
      %p47 = scmp.eq.s32.totalorder %s18, 1
      %p48 = por %p46, %p47
      %p49 = scmp.ne.s32.totalorder %s38, %s39
      %p50 = scmp.eq.s32.totalorder %s18, 0
      %p51 = por %p49, %p50
      %p52 = scmp.ne.s32.totalorder %s38, %s39
      %p53 = scmp.eq.s32.totalorder %s19, 1
      %p54 = por %p52, %p53
      %p56 = scmp.ne.s32.totalorder %s39, %s55
      %p57 = scmp.eq.s32.totalorder %s19, 0
      %p58 = por %p56, %p57
      %s60 = sadd.s32 %s59, 1
      %p63 = scmp.eq.s32.totalorder %s13, 1
      %p64 = scmp.ne.s32.totalorder %s59, %s61
      %p65 = scmp.eq.s32.totalorder %s13, 0
      %p66 = por %p64, %p65
      %p67 = scmp.ne.s32.totalorder %s59, %s61
      %p68 = scmp.eq.s32.totalorder %s18, 1
      %p69 = por %p67, %p68
      %p70 = scmp.ne.s32.totalorder %s61, %s62
      %p71 = scmp.eq.s32.totalorder %s18, 0
      %p72 = por %p70, %p71
      %p73 = scmp.ne.s32.totalorder %s61, %s62
      %p74 = scmp.eq.s32.totalorder %s19, 1
      %p75 = por %p73, %p74
      %p77 = scmp.ne.s32.totalorder %s62, %s76
      %p78 = scmp.eq.s32.totalorder %s19, 0
      %p79 = por %p77, %p78
      %s80 = ssub.s32 %s21, %s28
      %p81 = scmp.eq.s32.totalorder %s80, 0
      %s83 = sadd.s32 %s82, 1
      %s84 = scalar_select %p81, %s82, %s83
      %p87 = pneg %p81
      %p88 = scmp.eq.s32.totalorder %s13, 1
      %p89 = por %p87, %p88
      %p90 = scmp.ne.s32.totalorder %s82, %s85
      %p91 = scmp.eq.s32.totalorder %s13, 0
      %p92 = por %p90, %p91
      %p93 = scmp.ne.s32.totalorder %s82, %s85
      %p94 = scmp.eq.s32.totalorder %s18, 1
      %p95 = por %p93, %p94
      %p96 = scmp.ne.s32.totalorder %s85, %s86
      %p97 = scmp.eq.s32.totalorder %s18, 0
      %p98 = por %p96, %p97
      %p99 = scmp.ne.s32.totalorder %s85, %s86
      %p100 = scmp.eq.s32.totalorder %s19, 1
      %p101 = por %p99, %p100
      %p103 = scmp.ne.s32.totalorder %s86, %s102
      %p104 = scmp.eq.s32.totalorder %s19, 0
      %p105 = por %p103, %p104
      %s106 = ssub.s32 %s21, %s28
      %p107 = scmp.eq.s32.totalorder %s106, 0
      %s109 = sadd.s32 %s108, 1
      %s110 = scalar_select %p107, %s108, %s109
      %p113 = pneg %p107
      %p114 = scmp.eq.s32.totalorder %s13, 1
      %p115 = por %p113, %p114
      %p116 = scmp.ne.s32.totalorder %s108, %s111
      %p117 = scmp.eq.s32.totalorder %s13, 0
      %p118 = por %p116, %p117
      %p119 = scmp.ne.s32.totalorder %s108, %s111
      %p120 = scmp.eq.s32.totalorder %s18, 1
      %p121 = por %p119, %p120
      %p122 = scmp.ne.s32.totalorder %s111, %s112
      %p123 = scmp.eq.s32.totalorder %s18, 0
      %p124 = por %p122, %p123
      %p125 = scmp.ne.s32.totalorder %s111, %s112
      %p126 = scmp.eq.s32.totalorder %s19, 1
      %p127 = por %p125, %p126
      %p129 = scmp.ne.s32.totalorder %s112, %s128
      %p130 = scmp.eq.s32.totalorder %s19, 0
      %p131 = por %p129, %p130
      %s132 = ssub.s32 %s20, %s32
      %s133 = ssub.s32 %s21, %s28
      %s134 = sor.u32 %s132, %s133
      %p135 = scmp.eq.s32.totalorder %s134, 0
      %s137 = sadd.s32 %s136, 1
      %s138 = scalar_select %p135, %s136, %s137
      %p141 = pneg %p135
      %p142 = scmp.eq.s32.totalorder %s13, 1
      %p143 = por %p141, %p142
      %p144 = scmp.ne.s32.totalorder %s136, %s139
      %p145 = scmp.eq.s32.totalorder %s13, 0
      %p146 = por %p144, %p145
      %p147 = scmp.ne.s32.totalorder %s136, %s139
      %p148 = scmp.eq.s32.totalorder %s18, 1
      %p149 = por %p147, %p148
      %p150 = scmp.ne.s32.totalorder %s139, %s140
      %p151 = scmp.eq.s32.totalorder %s18, 0
      %p152 = por %p150, %p151
      %p153 = scmp.ne.s32.totalorder %s139, %s140
      %p154 = scmp.eq.s32.totalorder %s19, 1
      %p155 = por %p153, %p154
      %p157 = scmp.ne.s32.totalorder %s140, %s156
      %p158 = scmp.eq.s32.totalorder %s19, 0
      %p159 = por %p157, %p158
      %p160 = scmp.le.s32.totalorder 1, %s13
      %p161 = scmp.lt.s32.totalorder %s13, 3
      %p162 = pnand %p160, %p161
      %p163 = pneg %p162
      // Predicated region
      $region9: #{paligemma_forward.29} parent=5 // pred_check
        _
      $region10: #{paligemma_forward.29} parent=5 // pred_check_branch
        %165 = sbr.rel (%p162) target = $region12
      $region11: #{paligemma_forward.29} parent=5 // pred_region
        %s166 = ssub.s32 %s13, 1
        // Predicated region
        $region13: #{paligemma_forward.29} parent=11 // pred_check
          %p167 = pneg %p72
        $region14: #{paligemma_forward.29} parent=11 // pred_check_branch
          %169 = sbr.rel (%p167) target = $region16
        $region15: #{paligemma_forward.29} parent=11 // pred_region
          _
        $region16: #{paligemma_forward.29} parent=11 // pred_fallthru
          _
        // Predicated region
        $region17: #{paligemma_forward.29} parent=11 // pred_check
          %p170 = pneg %p98
        $region18: #{paligemma_forward.29} parent=11 // pred_check_branch
          %172 = sbr.rel (%p170) target = $region20
        $region19: #{paligemma_forward.29} parent=11 // pred_region
          %p173 = scmp.lt.s32.totalorder %s23, 0
          %s174 = scalar_select %p173, %s23, 0
          %s175 = smul.addr %s174, 4
          %s176 = scalar_lea.vmem %s2, %s175
        $region20: #{paligemma_forward.29} parent=11 // pred_fallthru
          _
        // Predicated region
        $region21: #{paligemma_forward.29} parent=11 // pred_check
          %p177 = pneg %p124
        $region22: #{paligemma_forward.29} parent=11 // pred_check_branch
          %179 = sbr.rel (%p177) target = $region24
        $region23: #{paligemma_forward.29} parent=11 // pred_region
          %p180 = scmp.lt.s32.totalorder %s23, 0
          %s181 = scalar_select %p180, %s23, 0
          %s182 = scalar_lea.vmem %s3, %s181
        $region24: #{paligemma_forward.29} parent=11 // pred_fallthru
          _
      $region12: #{paligemma_forward.29} parent=5 // pred_fallthru
        _
      %p183 = scmp.lt.s32.totalorder %s13, 2
      // Predicated region
      $region25: #{paligemma_forward.29} parent=5 // pred_check
        %p184 = pneg %p183
      $region26: #{paligemma_forward.29} parent=5 // pred_check_branch
        %186 = sbr.rel (%p184) target = $region28
      $region27: #{paligemma_forward.29} parent=5 // pred_region
        // Predicated region
        $region29: #{paligemma_forward.29} parent=27 // pred_check
          %p187 = pneg %p45
        $region30: #{paligemma_forward.29} parent=27 // pred_check_branch
          %189 = sbr.rel (%p187) target = $region32
        $region31: #{paligemma_forward.29} parent=27 // pred_region
          %p190 = scmp.lt.s32.totalorder %s20, 1
          %s191 = scalar_select %p190, %s20, 1
          %s192 = smul.addr %s191, 8
          %s193 = scalar_lea.vmem %s0, %s192
        $region32: #{paligemma_forward.29} parent=27 // pred_fallthru
          _
      $region28: #{paligemma_forward.29} parent=5 // pred_fallthru
        _
      %p194 = scmp.le.s32.totalorder 1, %s13
      %p195 = scmp.lt.s32.totalorder %s13, 3
      %p196 = pnand %p194, %p195
      %p197 = pneg %p196
      // Predicated region
      $region33: #{paligemma_forward.29} parent=5 // pred_check
        _
      $region34: #{paligemma_forward.29} parent=5 // pred_check_branch
        %199 = sbr.rel (%p196) target = $region36
      $region35: #{paligemma_forward.29} parent=5 // pred_region
        %s200 = ssub.s32 %s13, 1
        %p201 = scmp.lt.s32.totalorder %s22, 1
        %s202 = scalar_select %p201, %s22, 1
        %s203 = smul.addr %s202, 8
        %s204 = scalar_lea.vmem %s0, %s203
        %p205 = pneg %p51
        %p206 = pneg %p48
        %p207 = pneg %p72
        %p208 = pneg %p69
        %p209 = scmp.lt.s32.totalorder %s23, 0
        %s210 = scalar_select %p209, %s23, 0
        %s211 = smul.addr %s210, 4
        %s212 = scalar_lea.vmem %s2, %s211
        %p213 = pneg %p98
        %p214 = pneg %p95
        %p215 = scmp.lt.s32.totalorder %s23, 0
        %s216 = scalar_select %p215, %s23, 0
        %s217 = scalar_lea.vmem %s3, %s216
        %p218 = pneg %p124
        %p219 = pneg %p121
        %p220 = pneg %p152
        %p221 = pneg %p149
        %s222 = sand.u32 %s139, 1
        %s223 = scalar_lea.sflag [#allocation4], %s222
        %s224 = sand.u32 %s139, 1
        %s225 = smul.addr %s224, 8
        %s226 = scalar_lea.vmem [#allocation3], %s225
        %p227 = scmp.lt.s32.totalorder %s22, 1
        %s228 = scalar_select %p227, %s22, 1
        %s229 = smul.addr %s228, 8
        %s230 = scalar_lea.vmem %s0, %s229
        %p231 = scmp.lt.s32.totalorder %s23, 0
        %s232 = scalar_select %p231, %s23, 0
        %s233 = smul.addr %s232, 4
        %s234 = scalar_lea.vmem %s2, %s233
        %p235 = scmp.lt.s32.totalorder %s23, 0
        %s236 = scalar_select %p235, %s23, 0
        %s237 = scalar_lea.vmem %s3, %s236
        %p239 = scmp.eq.s32.totalorder %s23, 0
        // Predicated region
        $region37: #{paligemma_forward.29} parent=35 // pred_check
          %p240 = pneg %p239
        $region38: #{paligemma_forward.29} parent=35 // pred_check_branch
          %242 = sbr.rel (%p240) target = $region40
        $region39: #{paligemma_forward.29} parent=35 // pred_region
          %v243 = vld [vmem:[%s230] sm:$0xff]
          %v244 = vmul.f32 %v243, %v243
          %vm245 = vcmask 261120
          %v246 = vsel %vm245, %v244, 0.0
          %247 = vadd.xlane.f32.xlu0 %v246
          %v248 = vpop.xlane.xlu0 %247
          %v249 = vrcp.pop 32.0
          %v250 = vmul.f32 %v248, %v249
          %v251 = vadd.f32 %v250, 1e-06
          %v252 = vrsqrt.pop %v251
          %v253 = vmul.f32 %v243, %v252
          %v254 = vld [vmem:[%s1] sm:$0x1]
          %v255 = vadd.f32 %v254, 1.0
          %v257 = vlaneseq
          %v258 = vshrl.u32 %v257, 7
          %v259 = vsub.s32 0, %v258
          %v260 = vrot.slane %v255, %v259
          %v262 = vmul.f32 %v253, %v260
          %v263 = vpack.c.bf16 %v262, %v262
          %vm264 = vcmask 257024
          %265 = vst.msk [vmem:[#allocation2] sm:$0xf] %vm264, %v263
        $region40: #{paligemma_forward.29} parent=35 // pred_fallthru
          _
        %v266 = vld [vmem:[#allocation2] sm:$0xf]
        %v267 = vld [vmem:[%s234] sm:$0xf]
        %v268 = vld [vmem:[%s234 + $0x4] sm:$0xf]
        %v269 = vld [vmem:[%s234 + $0x8] sm:$0xf]
        %v270 = vld [vmem:[%s234 + $0xc] sm:$0xf]
        %v271 = vld [vmem:[%s237] sm:$0x1]
        %v273 = vlaneseq
        %v274 = vshrl.u32 %v273, 7
        %v275 = vsub.s32 0, %v274
        %v276 = vrot.slane %v271, %v275
        %v282 = vunpack.c.l.b16 %v267
        %v283 = vunpack.c.l.b16 %v268
        %v284 = vunpack.c.l.b16 %v269
        %v285 = vunpack.c.l.b16 %v270
        %v286 = vpack.c.b16 %v283, %v282
        %v287 = vpack.c.b16 %v285, %v284
        %vm290 = vcmask 261120
        %v292 = vsel %vm290, %v266, 0
        %294 = vmatprep.subr.bf16.mxu0 0
        %295 = vmatpush1.bf16.msra.mxu0 %v286
        %296 = vmatprep.subr.bf16.mxu0 0
        %297 = vmatpush1.bf16.msra.mxu0 %v287
        %298 = vmatprep.subr.bf16.mxu0 0
        %299 = vmatpush1.bf16.msra.mxu0 0
        %300 = vmatprep.subr.bf16.mxu0 0
        %301 = vmatpush1.bf16.msra.mxu0 0
        %302 = vmatprep.subr.bf16.mxu0 0
        %303 = vmatpush1.bf16.msra.mxu0 0
        %304 = vmatprep.subr.bf16.mxu0 0
        %305 = vmatpush1.bf16.msra.mxu0 0
        %306 = vmatprep.subr.bf16.mxu0 0
        %307 = vmatpush1.bf16.msra.mxu0 0
        %308 = vmatprep.subr.bf16.mxu0 0
        %309 = vmatpush1.bf16.msra.mxu0 0
        %310 = vmatprep.subr.bf16.mxu0 0
        %311 = vmatpush1.bf16.msra.mxu0 0
        %312 = vmatprep.subr.bf16.mxu0 0
        %313 = vmatpush1.bf16.msra.mxu0 0
        %314 = vmatprep.subr.bf16.mxu0 0
        %315 = vmatpush1.bf16.msra.mxu0 0
        %316 = vmatprep.subr.bf16.mxu0 0
        %317 = vmatpush1.bf16.msra.mxu0 0
        %318 = vmatprep.subr.bf16.mxu0 0
        %319 = vmatpush1.bf16.msra.mxu0 0
        %320 = vmatprep.subr.bf16.mxu0 0
        %321 = vmatpush1.bf16.msra.mxu0 0
        %322 = vmatprep.subr.bf16.mxu0 0
        %323 = vmatpush1.bf16.msra.mxu0 0
        %324 = vmatprep.subr.bf16.mxu0 0
        %325 = vmatpush1.bf16.msra.mxu0 0
        %326 = vmatprep.mubr.bf16.mxu0 0
        %327 = vmatmul.mubr.bf16.gmra.mrb[0].mxu0 %v292
        %v328 = vpop.f32.mrb[0].mxu0
        %v329 = vadd.f32 %v276, %v328
        %v330 = vpop.f32.mrb[0].mxu0
        %v331 = vpop.f32.mrb[0].mxu0
        %v332 = vpop.f32.mrb[0].mxu0
        %333 = vdwg.mxu0
        %334 = vst [vmem:[%s226] sm:$0xff] %v329
        %s335 = sand.u32 %s139, 1
        %s336 = scalar_lea.sflag [#allocation4], %s335
        %s337 = sand.u32 %s139, 1
        %s338 = smul.addr %s337, 8
        %s339 = scalar_lea.vmem [#allocation3], %s338
        // Predicated region
        $region41: #{paligemma_forward.29} parent=35 // pred_check
          %p340 = pneg %p149
        $region42: #{paligemma_forward.29} parent=35 // pred_check_branch
          %342 = sbr.rel (%p340) target = $region44
        $region43: #{paligemma_forward.29} parent=35 // pred_region
          %s344 = ssub.s32 128, 128
          %345 = vsyncadd %s336, %s344
          %s346 = sadd.s32 %s23, %s22
          %s347 = smul.addr %s346, 128
          %s348 = scalar_lea.hbm %s4, %s347
          %s350 = sshll.u32 %s339, 4
          %s351 = int_to_ptr.vmem [resolvable:$true] %s350
          %353 = dma.vmem_to_hbm [thread:$0]  %s351, 128, %s348, %s336
        $region44: #{paligemma_forward.29} parent=35 // pred_fallthru
          _
      $region36: #{paligemma_forward.29} parent=5 // pred_fallthru
        _
      %p354 = scmp.le.s32.totalorder 2, %s13
      // Predicated region
      $region45: #{paligemma_forward.29} parent=5 // pred_check
        %p355 = pneg %p354
      $region46: #{paligemma_forward.29} parent=5 // pred_check_branch
        %357 = sbr.rel (%p355) target = $region48
      $region47: #{paligemma_forward.29} parent=5 // pred_region
        %s358 = ssub.s32 %s13, 2
        // Predicated region
        $region49: #{paligemma_forward.29} parent=47 // pred_check
          %p359 = pneg %p155
        $region50: #{paligemma_forward.29} parent=47 // pred_check_branch
          %361 = sbr.rel (%p359) target = $region52
        $region51: #{paligemma_forward.29} parent=47 // pred_region
          %s362 = sand.u32 %s140, 1
          %s363 = scalar_lea.sflag [#allocation4], %s362
          %s364 = sand.u32 %s140, 1
          %s365 = smul.addr %s364, 8
          %s366 = scalar_lea.vmem [#allocation3], %s365
          %367 = dma.done %s363, 128
        $region52: #{paligemma_forward.29} parent=47 // pred_fallthru
          _
      $region48: #{paligemma_forward.29} parent=5 // pred_fallthru
        _
    $region6: #{paligemma_forward.29} parent=1 // loop_footer
      %s17 = sadd.s32 1, %s13
    $region7: #{paligemma_forward.29} parent=1 // loop_footer_branch
      %12 = sbr.rel target = $region3
    $region8: #{paligemma_forward.29} parent=1 // loop_exit
      _
    %368 = vsyncpa [#allocation4], 1
    %s369 = scalar_lea.sflag [#allocation4], 1
    %370 = vsyncpa %s369, 1

// kernel: paligemma_forward.24
$region0: #{paligemma_forward.24}
  #allocation0 [shape = 'u32[]', space=smem, size = 0x4, offset = 0x4, fixed_abs, tag = 'smem constant byte address 0x4 - core index']
  #allocation1 [shape = 'u32[144,128]{1,0:T(1,128)}', space=vmem, size = 0x12000, scoped, tag = 'internal scratch']
  %s0 = inlined_call_operand.vmem [shape: bf16[2,8,128], index: 0, kind: input, shape index: {}]
  %s1 = inlined_call_operand.vmem [shape: f32[2,8,16], index: 1, kind: input, shape index: {}]
  %s2 = inlined_call_operand.vmem [shape: f32[2,8,16], index: 2, kind: input, shape index: {}]
  %s3 = inlined_call_operand.vmem [shape: bf16[64,32], index: 3, kind: input, shape index: {}]
  %s4 = inlined_call_operand.vmem [shape: f32[2,8,32], index: 4, kind: input, shape index: {}]
  %s5 = inlined_call_operand.vmem [shape: f32[2,8,32], index: 5, kind: output, shape index: {}]
  %s6 = sld [smem:[#allocation0]]
  $region53: #{paligemma_forward.24} parent=0
    _
  %s8 = ssub.s32 1, %s6
  %s9 = scalar_select 0, %s8, %s6
  loop: start=0, step=1, limit=4
  $region2: #{paligemma_forward.24} parent=0 // loop_pre_header
    _
  $region3: #{paligemma_forward.24} parent=0 // loop_header
    %s11 = sphi 0, %s15
    %p12 = scmp.ge.s32.totalorder %s11, 4
    %s21 = sphi 0, %s23
    %s24 = sphi 0, %s21
    %s25 = sphi 0, %s24
    %s41 = sphi 0, %s25
    %s47 = sphi 0, %s49
    %s50 = sphi 0, %s47
    %s51 = sphi 0, %s50
    %s67 = sphi 0, %s51
    %s73 = sphi 0, %s75
    %s76 = sphi 0, %s73
    %s77 = sphi 0, %s76
    %s93 = sphi 0, %s77
    %s97 = sphi 0, %s97
    %s99 = sphi 0, %s97
    %s100 = sphi 0, %s99
    %s114 = sphi 0, %s100
    %s120 = sphi 0, %s122
    %s123 = sphi 0, %s120
    %s124 = sphi 0, %s123
    %s140 = sphi 0, %s124
    %s146 = sphi 0, %s148
    %s149 = sphi 0, %s146
    %s150 = sphi 0, %s149
    %s166 = sphi 0, %s150
  $region4: #{paligemma_forward.24} parent=0 // loop_header_branch
    %14 = sbr.rel (%p12) target = $region8
  $region5: #{paligemma_forward.24} parent=0 // loop_body
    %s16 = ssub.s32 %s11, 1
    %s17 = ssub.s32 %s11, 2
    %s18 = sadd.s32 %s11, 1
    %s19 = ssub.s32 %s11, %s18
    %p20 = scmp.eq.s32.totalorder %s19, 0
    %s22 = sadd.s32 %s21, 1
    %s23 = scalar_select %p20, %s21, %s22
    %p26 = pneg %p20
    %p27 = scmp.eq.s32.totalorder %s11, 1
    %p28 = por %p26, %p27
    %p29 = scmp.ne.s32.totalorder %s21, %s24
    %p30 = scmp.eq.s32.totalorder %s11, 0
    %p31 = por %p29, %p30
    %p32 = scmp.ne.s32.totalorder %s21, %s24
    %p33 = scmp.eq.s32.totalorder %s16, 1
    %p34 = por %p32, %p33
    %p35 = scmp.ne.s32.totalorder %s24, %s25
    %p36 = scmp.eq.s32.totalorder %s16, 0
    %p37 = por %p35, %p36
    %p38 = scmp.ne.s32.totalorder %s24, %s25
    %p39 = scmp.eq.s32.totalorder %s17, 1
    %p40 = por %p38, %p39
    %p42 = scmp.ne.s32.totalorder %s25, %s41
    %p43 = scmp.eq.s32.totalorder %s17, 0
    %p44 = por %p42, %p43
    %s45 = ssub.s32 %s11, %s18
    %p46 = scmp.eq.s32.totalorder %s45, 0
    %s48 = sadd.s32 %s47, 1
    %s49 = scalar_select %p46, %s47, %s48
    %p52 = pneg %p46
    %p53 = scmp.eq.s32.totalorder %s11, 1
    %p54 = por %p52, %p53
    %p55 = scmp.ne.s32.totalorder %s47, %s50
    %p56 = scmp.eq.s32.totalorder %s11, 0
    %p57 = por %p55, %p56
    %p58 = scmp.ne.s32.totalorder %s47, %s50
    %p59 = scmp.eq.s32.totalorder %s16, 1
    %p60 = por %p58, %p59
    %p61 = scmp.ne.s32.totalorder %s50, %s51
    %p62 = scmp.eq.s32.totalorder %s16, 0
    %p63 = por %p61, %p62
    %p64 = scmp.ne.s32.totalorder %s50, %s51
    %p65 = scmp.eq.s32.totalorder %s17, 1
    %p66 = por %p64, %p65
    %p68 = scmp.ne.s32.totalorder %s51, %s67
    %p69 = scmp.eq.s32.totalorder %s17, 0
    %p70 = por %p68, %p69
    %s71 = ssub.s32 %s11, %s18
    %p72 = scmp.eq.s32.totalorder %s71, 0
    %s74 = sadd.s32 %s73, 1
    %s75 = scalar_select %p72, %s73, %s74
    %p78 = pneg %p72
    %p79 = scmp.eq.s32.totalorder %s11, 1
    %p80 = por %p78, %p79
    %p81 = scmp.ne.s32.totalorder %s73, %s76
    %p82 = scmp.eq.s32.totalorder %s11, 0
    %p83 = por %p81, %p82
    %p84 = scmp.ne.s32.totalorder %s73, %s76
    %p85 = scmp.eq.s32.totalorder %s16, 1
    %p86 = por %p84, %p85
    %p87 = scmp.ne.s32.totalorder %s76, %s77
    %p88 = scmp.eq.s32.totalorder %s16, 0
    %p89 = por %p87, %p88
    %p90 = scmp.ne.s32.totalorder %s76, %s77
    %p91 = scmp.eq.s32.totalorder %s17, 1
    %p92 = por %p90, %p91
    %p94 = scmp.ne.s32.totalorder %s77, %s93
    %p95 = scmp.eq.s32.totalorder %s17, 0
    %p96 = por %p94, %p95
    %s98 = sadd.s32 %s97, 1
    %p101 = scmp.eq.s32.totalorder %s11, 1
    %p102 = scmp.ne.s32.totalorder %s97, %s99
    %p103 = scmp.eq.s32.totalorder %s11, 0
    %p104 = por %p102, %p103
    %p105 = scmp.ne.s32.totalorder %s97, %s99
    %p106 = scmp.eq.s32.totalorder %s16, 1
    %p107 = por %p105, %p106
    %p108 = scmp.ne.s32.totalorder %s99, %s100
    %p109 = scmp.eq.s32.totalorder %s16, 0
    %p110 = por %p108, %p109
    %p111 = scmp.ne.s32.totalorder %s99, %s100
    %p112 = scmp.eq.s32.totalorder %s17, 1
    %p113 = por %p111, %p112
    %p115 = scmp.ne.s32.totalorder %s100, %s114
    %p116 = scmp.eq.s32.totalorder %s17, 0
    %p117 = por %p115, %p116
    %s118 = ssub.s32 %s11, %s18
    %p119 = scmp.eq.s32.totalorder %s118, 0
    %s121 = sadd.s32 %s120, 1
    %s122 = scalar_select %p119, %s120, %s121
    %p125 = pneg %p119
    %p126 = scmp.eq.s32.totalorder %s11, 1
    %p127 = por %p125, %p126
    %p128 = scmp.ne.s32.totalorder %s120, %s123
    %p129 = scmp.eq.s32.totalorder %s11, 0
    %p130 = por %p128, %p129
    %p131 = scmp.ne.s32.totalorder %s120, %s123
    %p132 = scmp.eq.s32.totalorder %s16, 1
    %p133 = por %p131, %p132
    %p134 = scmp.ne.s32.totalorder %s123, %s124
    %p135 = scmp.eq.s32.totalorder %s16, 0
    %p136 = por %p134, %p135
    %p137 = scmp.ne.s32.totalorder %s123, %s124
    %p138 = scmp.eq.s32.totalorder %s17, 1
    %p139 = por %p137, %p138
    %p141 = scmp.ne.s32.totalorder %s124, %s140
    %p142 = scmp.eq.s32.totalorder %s17, 0
    %p143 = por %p141, %p142
    %s144 = ssub.s32 %s11, %s18
    %p145 = scmp.eq.s32.totalorder %s144, 0
    %s147 = sadd.s32 %s146, 1
    %s148 = scalar_select %p145, %s146, %s147
    %p151 = pneg %p145
    %p152 = scmp.eq.s32.totalorder %s11, 1
    %p153 = por %p151, %p152
    %p154 = scmp.ne.s32.totalorder %s146, %s149
    %p155 = scmp.eq.s32.totalorder %s11, 0
    %p156 = por %p154, %p155
    %p157 = scmp.ne.s32.totalorder %s146, %s149
    %p158 = scmp.eq.s32.totalorder %s16, 1
    %p159 = por %p157, %p158
    %p160 = scmp.ne.s32.totalorder %s149, %s150
    %p161 = scmp.eq.s32.totalorder %s16, 0
    %p162 = por %p160, %p161
    %p163 = scmp.ne.s32.totalorder %s149, %s150
    %p164 = scmp.eq.s32.totalorder %s17, 1
    %p165 = por %p163, %p164
    %p167 = scmp.ne.s32.totalorder %s150, %s166
    %p168 = scmp.eq.s32.totalorder %s17, 0
    %p169 = por %p167, %p168
    %p170 = scmp.le.s32.totalorder 1, %s11
    %p171 = scmp.lt.s32.totalorder %s11, 3
    %p172 = pnand %p170, %p171
    %p173 = pneg %p172
    // Predicated region
    $region9: #{paligemma_forward.24} parent=5 // pred_check
      _
    $region10: #{paligemma_forward.24} parent=5 // pred_check_branch
      %175 = sbr.rel (%p172) target = $region12
    $region11: #{paligemma_forward.24} parent=5 // pred_region
      %s176 = ssub.s32 %s11, 1
      // Predicated region
      $region13: #{paligemma_forward.24} parent=11 // pred_check
        %p177 = pneg %p110
      $region14: #{paligemma_forward.24} parent=11 // pred_check_branch
        %179 = sbr.rel (%p177) target = $region16
      $region15: #{paligemma_forward.24} parent=11 // pred_region
        _
      $region16: #{paligemma_forward.24} parent=11 // pred_fallthru
        _
    $region12: #{paligemma_forward.24} parent=5 // pred_fallthru
      _
    %p180 = scmp.lt.s32.totalorder %s11, 2
    // Predicated region
    $region17: #{paligemma_forward.24} parent=5 // pred_check
      %p181 = pneg %p180
    $region18: #{paligemma_forward.24} parent=5 // pred_check_branch
      %183 = sbr.rel (%p181) target = $region20
    $region19: #{paligemma_forward.24} parent=5 // pred_region
      // Predicated region
      $region21: #{paligemma_forward.24} parent=19 // pred_check
        %p184 = pneg %p31
      $region22: #{paligemma_forward.24} parent=19 // pred_check_branch
        %186 = sbr.rel (%p184) target = $region24
      $region23: #{paligemma_forward.24} parent=19 // pred_region
        %p187 = scmp.lt.s32.totalorder %s11, 1
        %s188 = scalar_select %p187, %s11, 1
        %s189 = smul.addr %s188, 4
        %s190 = scalar_lea.vmem %s0, %s189
      $region24: #{paligemma_forward.24} parent=19 // pred_fallthru
        _
      // Predicated region
      $region25: #{paligemma_forward.24} parent=19 // pred_check
        %p191 = pneg %p57
      $region26: #{paligemma_forward.24} parent=19 // pred_check_branch
        %193 = sbr.rel (%p191) target = $region28
      $region27: #{paligemma_forward.24} parent=19 // pred_region
        %p194 = scmp.lt.s32.totalorder %s11, 1
        %s195 = scalar_select %p194, %s11, 1
        %s196 = smul.addr %s195, 8
        %s197 = scalar_lea.vmem %s1, %s196
      $region28: #{paligemma_forward.24} parent=19 // pred_fallthru
        _
      // Predicated region
      $region29: #{paligemma_forward.24} parent=19 // pred_check
        %p198 = pneg %p83
      $region30: #{paligemma_forward.24} parent=19 // pred_check_branch
        %200 = sbr.rel (%p198) target = $region32
      $region31: #{paligemma_forward.24} parent=19 // pred_region
        %p201 = scmp.lt.s32.totalorder %s11, 1
        %s202 = scalar_select %p201, %s11, 1
        %s203 = smul.addr %s202, 8
        %s204 = scalar_lea.vmem %s2, %s203
      $region32: #{paligemma_forward.24} parent=19 // pred_fallthru
        _
      // Predicated region
      $region33: #{paligemma_forward.24} parent=19 // pred_check
        %p205 = pneg %p130
      $region34: #{paligemma_forward.24} parent=19 // pred_check_branch
        %207 = sbr.rel (%p205) target = $region36
      $region35: #{paligemma_forward.24} parent=19 // pred_region
        %p208 = scmp.lt.s32.totalorder %s11, 1
        %s209 = scalar_select %p208, %s11, 1
        %s210 = smul.addr %s209, 8
        %s211 = scalar_lea.vmem %s4, %s210
      $region36: #{paligemma_forward.24} parent=19 // pred_fallthru
        _
    $region20: #{paligemma_forward.24} parent=5 // pred_fallthru
      _
    %p212 = scmp.le.s32.totalorder 1, %s11
    %p213 = scmp.lt.s32.totalorder %s11, 3
    %p214 = pnand %p212, %p213
    %p215 = pneg %p214
    // Predicated region
    $region37: #{paligemma_forward.24} parent=5 // pred_check
      _
    $region38: #{paligemma_forward.24} parent=5 // pred_check_branch
      %217 = sbr.rel (%p214) target = $region40
    $region39: #{paligemma_forward.24} parent=5 // pred_region
      %s218 = ssub.s32 %s11, 1
      %p219 = scmp.lt.s32.totalorder %s16, 1
      %s220 = scalar_select %p219, %s16, 1
      %s221 = smul.addr %s220, 4
      %s222 = scalar_lea.vmem %s0, %s221
      %p223 = pneg %p37
      %p224 = pneg %p34
      %p225 = scmp.lt.s32.totalorder %s16, 1
      %s226 = scalar_select %p225, %s16, 1
      %s227 = smul.addr %s226, 8
      %s228 = scalar_lea.vmem %s1, %s227
      %p229 = pneg %p63
      %p230 = pneg %p60
      %p231 = scmp.lt.s32.totalorder %s16, 1
      %s232 = scalar_select %p231, %s16, 1
      %s233 = smul.addr %s232, 8
      %s234 = scalar_lea.vmem %s2, %s233
      %p235 = pneg %p89
      %p236 = pneg %p86
      %p237 = pneg %p110
      %p238 = pneg %p107
      %p239 = scmp.lt.s32.totalorder %s16, 1
      %s240 = scalar_select %p239, %s16, 1
      %s241 = smul.addr %s240, 8
      %s242 = scalar_lea.vmem %s4, %s241
      %p243 = pneg %p136
      %p244 = pneg %p133
      %p245 = pneg %p162
      %p246 = pneg %p159
      %p247 = scmp.lt.s32.totalorder %s16, 1
      %s248 = scalar_select %p247, %s16, 1
      %s249 = smul.addr %s248, 8
      %s250 = scalar_lea.vmem %s5, %s249
      %p251 = scmp.lt.s32.totalorder %s16, 1
      %s252 = scalar_select %p251, %s16, 1
      %s253 = smul.addr %s252, 4
      %s254 = scalar_lea.vmem %s0, %s253
      %p255 = scmp.lt.s32.totalorder %s16, 1
      %s256 = scalar_select %p255, %s16, 1
      %s257 = smul.addr %s256, 8
      %s258 = scalar_lea.vmem %s1, %s257
      %p259 = scmp.lt.s32.totalorder %s16, 1
      %s260 = scalar_select %p259, %s16, 1
      %s261 = smul.addr %s260, 8
      %s262 = scalar_lea.vmem %s2, %s261
      %p263 = scmp.lt.s32.totalorder %s16, 1
      %s264 = scalar_select %p263, %s16, 1
      %s265 = smul.addr %s264, 8
      %s266 = scalar_lea.vmem %s4, %s265
      %p267 = scmp.lt.s32.totalorder %s16, 1
      %s268 = scalar_select %p267, %s16, 1
      %s269 = smul.addr %s268, 8
      %s270 = scalar_lea.vmem %s5, %s269
      %v272 = vld [vmem:[%s254] sm:$0xf]
      %v273 = vunpack.c.l.bf16 %v272
      %v274 = vld [vmem:[%s258] sm:$0xff]
      %v275 = vld [vmem:[%s262] sm:$0xff]
      %277 = vrot.lane.b32.xlu0 %v275, 64
      %v278 = vpop.permute.xlu0 %277
      %v280 = vmul.f32 %v273, %v278
      %v281 = vpack.c.bf16 %v280, %v280
      %v282 = vpack.c.bf16 %v273, %v273
      %v283 = vmul.f32 %v273, %v274
      %v284 = vpack.c.bf16 %v283, %v283
      %286 = vrot.lane.b32.xlu0 %v281, 64
      %v287 = vpop.permute.xlu0 %286
      %vm288 = vcmask 130048
      %v290 = vsel %vm288, %v284, 0
      %v293 = vsel %vm288, %v287, 0
      %295 = vmatprep.subr.bf16.mxu0 0
      %296 = vmatpush1.bf16.xpose.msra.mxu0 %v293
      %297 = vmatprep.subr.bf16.mxu0 0
      %298 = vmatpush1.bf16.xpose.msra.mxu0 0
      %299 = vmatprep.subr.bf16.mxu0 0
      %300 = vmatpush1.bf16.xpose.msra.mxu0 0
      %301 = vmatprep.subr.bf16.mxu0 0
      %302 = vmatpush1.bf16.xpose.msra.mxu0 0
      %303 = vmatprep.subr.bf16.mxu0 0
      %304 = vmatpush1.bf16.xpose.msra.mxu0 0
      %305 = vmatprep.subr.bf16.mxu0 0
      %306 = vmatpush1.bf16.xpose.msra.mxu0 0
      %307 = vmatprep.subr.bf16.mxu0 0
      %308 = vmatpush1.bf16.xpose.msra.mxu0 0
      %309 = vmatprep.subr.bf16.mxu0 0
      %310 = vmatpush1.bf16.xpose.msra.mxu0 0
      %311 = vmatprep.subr.bf16.mxu0 0
      %312 = vmatpush1.bf16.xpose.msra.mxu0 0
      %313 = vmatprep.subr.bf16.mxu0 0
      %314 = vmatpush1.bf16.xpose.msra.mxu0 0
      %315 = vmatprep.subr.bf16.mxu0 0
      %316 = vmatpush1.bf16.xpose.msra.mxu0 0
      %317 = vmatprep.subr.bf16.mxu0 0
      %318 = vmatpush1.bf16.xpose.msra.mxu0 0
      %319 = vmatprep.subr.bf16.mxu0 0
      %320 = vmatpush1.bf16.xpose.msra.mxu0 0
      %321 = vmatprep.subr.bf16.mxu0 0
      %322 = vmatpush1.bf16.xpose.msra.mxu0 0
      %323 = vmatprep.subr.bf16.mxu0 0
      %324 = vmatpush1.bf16.xpose.msra.mxu0 0
      %325 = vmatprep.subr.bf16.mxu0 0
      %326 = vmatpush1.bf16.xpose.msra.mxu0 0
      %327 = vmatprep.mubr.bf16.mxu0 0
      %328 = vmatmul.mubr.bf16.gmra.mrb[0].mxu0 %v290
      %v329 = vpop.f32.mrb[0].mxu0
      %v330 = vadd.f32 0.0, %v329
      %v331 = vpop.f32.mrb[0].mxu0
      %v332 = vpop.f32.mrb[0].mxu0
      %v333 = vpop.f32.mrb[0].mxu0
      %334 = vdwg.mxu0
      %vm335 = vcmask 64512
      %v336 = vsel %vm335, %v330, -inf
      %337 = vmax.xlane.f32.xlu0 %v336
      %v338 = vpop.xlane.xlu0 %337
      %v339 = vsub.f32 %v330, %v338
      %v340 = vmul.f32 %v339, 1.442695
      %v341 = vpow.pop %v340
      %v342 = vsel %vm335, %v341, 0.0
      %343 = vadd.xlane.f32.xlu0 %v342
      %v344 = vpop.xlane.xlu0 %343
      %v345 = vrcp.pop %v344
      %v346 = vmul.f32 %v341, %v345
      %v347 = vpack.c.bf16 %v346, %v346
      %349 = vrot.lane.b32.xlu0 %v282, 32
      %v350 = vpop.permute.xlu0 %349
      %v352 = vsel %vm335, %v347, 0
      %vm354 = vcmask 1043456
      %v356 = vsel %vm354, %v350, 0
      %358 = vmatprep.subr.bf16.mxu0 0
      %359 = vmatpush1.bf16.msra.mxu0 %v356
      %360 = vmatprep.subr.bf16.mxu0 0
      %361 = vmatpush1.bf16.msra.mxu0 0
      %362 = vmatprep.subr.bf16.mxu0 0
      %363 = vmatpush1.bf16.msra.mxu0 0
      %364 = vmatprep.subr.bf16.mxu0 0
      %365 = vmatpush1.bf16.msra.mxu0 0
      %366 = vmatprep.subr.bf16.mxu0 0
      %367 = vmatpush1.bf16.msra.mxu0 0
      %368 = vmatprep.subr.bf16.mxu0 0
      %369 = vmatpush1.bf16.msra.mxu0 0
      %370 = vmatprep.subr.bf16.mxu0 0
      %371 = vmatpush1.bf16.msra.mxu0 0
      %372 = vmatprep.subr.bf16.mxu0 0
      %373 = vmatpush1.bf16.msra.mxu0 0
      %374 = vmatprep.subr.bf16.mxu0 0
      %375 = vmatpush1.bf16.msra.mxu0 0
      %376 = vmatprep.subr.bf16.mxu0 0
      %377 = vmatpush1.bf16.msra.mxu0 0
      %378 = vmatprep.subr.bf16.mxu0 0
      %379 = vmatpush1.bf16.msra.mxu0 0
      %380 = vmatprep.subr.bf16.mxu0 0
      %381 = vmatpush1.bf16.msra.mxu0 0
      %382 = vmatprep.subr.bf16.mxu0 0
      %383 = vmatpush1.bf16.msra.mxu0 0
      %384 = vmatprep.subr.bf16.mxu0 0
      %385 = vmatpush1.bf16.msra.mxu0 0
      %386 = vmatprep.subr.bf16.mxu0 0
      %387 = vmatpush1.bf16.msra.mxu0 0
      %388 = vmatprep.subr.bf16.mxu0 0
      %389 = vmatpush1.bf16.msra.mxu0 0
      %390 = vmatprep.mubr.bf16.mxu0 0
      %391 = vmatmul.mubr.bf16.gmra.mrb[0].mxu0 %v352
      %v392 = vpop.f32.mrb[0].mxu0
      %v393 = vadd.f32 0.0, %v392
      %v394 = vpop.f32.mrb[0].mxu0
      %v395 = vpop.f32.mrb[0].mxu0
      %v396 = vpop.f32.mrb[0].mxu0
      %397 = vdwg.mxu0
      %399 = vrot.lane.b32.xlu0 %v274, 16
      %v400 = vpop.permute.xlu0 %399
      %v402 = vmul.f32 %v273, %v400
      %v403 = vpack.c.bf16 %v402, %v402
      %405 = vrot.lane.b32.xlu0 %v403, 112
      %v406 = vpop.permute.xlu0 %405
      %v408 = vsel %vm288, %v406, 0
      %410 = vmatprep.subr.bf16.mxu0 0
      %411 = vmatpush1.bf16.xpose.msra.mxu0 %v293
      %412 = vmatprep.subr.bf16.mxu0 0
      %413 = vmatpush1.bf16.xpose.msra.mxu0 0
      %414 = vmatprep.subr.bf16.mxu0 0
      %415 = vmatpush1.bf16.xpose.msra.mxu0 0
      %416 = vmatprep.subr.bf16.mxu0 0
      %417 = vmatpush1.bf16.xpose.msra.mxu0 0
      %418 = vmatprep.subr.bf16.mxu0 0
      %419 = vmatpush1.bf16.xpose.msra.mxu0 0
      %420 = vmatprep.subr.bf16.mxu0 0
      %421 = vmatpush1.bf16.xpose.msra.mxu0 0
      %422 = vmatprep.subr.bf16.mxu0 0
      %423 = vmatpush1.bf16.xpose.msra.mxu0 0
      %424 = vmatprep.subr.bf16.mxu0 0
      %425 = vmatpush1.bf16.xpose.msra.mxu0 0
      %426 = vmatprep.subr.bf16.mxu0 0
      %427 = vmatpush1.bf16.xpose.msra.mxu0 0
      %428 = vmatprep.subr.bf16.mxu0 0
      %429 = vmatpush1.bf16.xpose.msra.mxu0 0
      %430 = vmatprep.subr.bf16.mxu0 0
      %431 = vmatpush1.bf16.xpose.msra.mxu0 0
      %432 = vmatprep.subr.bf16.mxu0 0
      %433 = vmatpush1.bf16.xpose.msra.mxu0 0
      %434 = vmatprep.subr.bf16.mxu0 0
      %435 = vmatpush1.bf16.xpose.msra.mxu0 0
      %436 = vmatprep.subr.bf16.mxu0 0
      %437 = vmatpush1.bf16.xpose.msra.mxu0 0
      %438 = vmatprep.subr.bf16.mxu0 0
      %439 = vmatpush1.bf16.xpose.msra.mxu0 0
      %440 = vmatprep.subr.bf16.mxu0 0
      %441 = vmatpush1.bf16.xpose.msra.mxu0 0
      %442 = vmatprep.mubr.bf16.mxu0 0
      %443 = vmatmul.mubr.bf16.gmra.mrb[0].mxu0 %v408
      %v444 = vpop.f32.mrb[0].mxu0
      %v445 = vadd.f32 0.0, %v444
      %v446 = vpop.f32.mrb[0].mxu0
      %v447 = vpop.f32.mrb[0].mxu0
      %v448 = vpop.f32.mrb[0].mxu0
      %449 = vdwg.mxu0
      %v450 = vsel %vm335, %v445, -inf
      %451 = vmax.xlane.f32.xlu0 %v450
      %v452 = vpop.xlane.xlu0 %451
      %v453 = vsub.f32 %v445, %v452
      %v454 = vmul.f32 %v453, 1.442695
      %v455 = vpow.pop %v454
      %v456 = vsel %vm335, %v455, 0.0
      %457 = vadd.xlane.f32.xlu0 %v456
      %v458 = vpop.xlane.xlu0 %457
      %v459 = vrcp.pop %v458
      %v460 = vmul.f32 %v455, %v459
      %v461 = vpack.c.bf16 %v460, %v460
      %v463 = vsel %vm335, %v461, 0
      %465 = vmatprep.subr.bf16.mxu0 0
      %466 = vmatpush1.bf16.msra.mxu0 %v356
      %467 = vmatprep.subr.bf16.mxu0 0
      %468 = vmatpush1.bf16.msra.mxu0 0
      %469 = vmatprep.subr.bf16.mxu0 0
      %470 = vmatpush1.bf16.msra.mxu0 0
      %471 = vmatprep.subr.bf16.mxu0 0
      %472 = vmatpush1.bf16.msra.mxu0 0
      %473 = vmatprep.subr.bf16.mxu0 0
      %474 = vmatpush1.bf16.msra.mxu0 0
      %475 = vmatprep.subr.bf16.mxu0 0
      %476 = vmatpush1.bf16.msra.mxu0 0
      %477 = vmatprep.subr.bf16.mxu0 0
      %478 = vmatpush1.bf16.msra.mxu0 0
      %479 = vmatprep.subr.bf16.mxu0 0
      %480 = vmatpush1.bf16.msra.mxu0 0
      %481 = vmatprep.subr.bf16.mxu0 0
      %482 = vmatpush1.bf16.msra.mxu0 0
      %483 = vmatprep.subr.bf16.mxu0 0
      %484 = vmatpush1.bf16.msra.mxu0 0
      %485 = vmatprep.subr.bf16.mxu0 0
      %486 = vmatpush1.bf16.msra.mxu0 0
      %487 = vmatprep.subr.bf16.mxu0 0
      %488 = vmatpush1.bf16.msra.mxu0 0
      %489 = vmatprep.subr.bf16.mxu0 0
      %490 = vmatpush1.bf16.msra.mxu0 0
      %491 = vmatprep.subr.bf16.mxu0 0
      %492 = vmatpush1.bf16.msra.mxu0 0
      %493 = vmatprep.subr.bf16.mxu0 0
      %494 = vmatpush1.bf16.msra.mxu0 0
      %495 = vmatprep.subr.bf16.mxu0 0
      %496 = vmatpush1.bf16.msra.mxu0 0
      %497 = vmatprep.mubr.bf16.mxu0 0
      %498 = vmatmul.mubr.bf16.gmra.mrb[0].mxu0 %v463
      %v499 = vpop.f32.mrb[0].mxu0
      %v500 = vadd.f32 0.0, %v499
      %v501 = vpop.f32.mrb[0].mxu0
      %v502 = vpop.f32.mrb[0].mxu0
      %v503 = vpop.f32.mrb[0].mxu0
      %504 = vdwg.mxu0
      %505 = vrot.lane.b32.xlu0 %v275, 80
      %v506 = vpop.permute.xlu0 %505
      %v508 = vmul.f32 %v273, %v506
      %v509 = vpack.c.bf16 %v508, %v508
      %510 = vrot.lane.b32.xlu0 %v274, 32
      %v511 = vpop.permute.xlu0 %510
      %v513 = vmul.f32 %v273, %v511
      %v514 = vpack.c.bf16 %v513, %v513
      %516 = vrot.lane.b32.xlu0 %v514, 96
      %v517 = vpop.permute.xlu0 %516
      %519 = vrot.lane.b32.xlu0 %v509, 48
      %v520 = vpop.permute.xlu0 %519
      %v522 = vsel %vm288, %v517, 0
      %v525 = vsel %vm288, %v520, 0
      %527 = vmatprep.subr.bf16.mxu0 0
      %528 = vmatpush1.bf16.xpose.msra.mxu0 %v525
      %529 = vmatprep.subr.bf16.mxu0 0
      %530 = vmatpush1.bf16.xpose.msra.mxu0 0
      %531 = vmatprep.subr.bf16.mxu0 0
      %532 = vmatpush1.bf16.xpose.msra.mxu0 0
      %533 = vmatprep.subr.bf16.mxu0 0
      %534 = vmatpush1.bf16.xpose.msra.mxu0 0
      %535 = vmatprep.subr.bf16.mxu0 0
      %536 = vmatpush1.bf16.xpose.msra.mxu0 0
      %537 = vmatprep.subr.bf16.mxu0 0
      %538 = vmatpush1.bf16.xpose.msra.mxu0 0
      %539 = vmatprep.subr.bf16.mxu0 0
      %540 = vmatpush1.bf16.xpose.msra.mxu0 0
      %541 = vmatprep.subr.bf16.mxu0 0
      %542 = vmatpush1.bf16.xpose.msra.mxu0 0
      %543 = vmatprep.subr.bf16.mxu0 0
      %544 = vmatpush1.bf16.xpose.msra.mxu0 0
      %545 = vmatprep.subr.bf16.mxu0 0
      %546 = vmatpush1.bf16.xpose.msra.mxu0 0
      %547 = vmatprep.subr.bf16.mxu0 0
      %548 = vmatpush1.bf16.xpose.msra.mxu0 0
      %549 = vmatprep.subr.bf16.mxu0 0
      %550 = vmatpush1.bf16.xpose.msra.mxu0 0
      %551 = vmatprep.subr.bf16.mxu0 0
      %552 = vmatpush1.bf16.xpose.msra.mxu0 0
      %553 = vmatprep.subr.bf16.mxu0 0
      %554 = vmatpush1.bf16.xpose.msra.mxu0 0
      %555 = vmatprep.subr.bf16.mxu0 0
      %556 = vmatpush1.bf16.xpose.msra.mxu0 0
      %557 = vmatprep.subr.bf16.mxu0 0
      %558 = vmatpush1.bf16.xpose.msra.mxu0 0
      %559 = vmatprep.mubr.bf16.mxu0 0
      %560 = vmatmul.mubr.bf16.gmra.mrb[0].mxu0 %v522
      %v561 = vpop.f32.mrb[0].mxu0
      %v562 = vadd.f32 0.0, %v561
      %v563 = vpop.f32.mrb[0].mxu0
      %v564 = vpop.f32.mrb[0].mxu0
      %v565 = vpop.f32.mrb[0].mxu0
      %566 = vdwg.mxu0
      %v567 = vsel %vm335, %v562, -inf
      %568 = vmax.xlane.f32.xlu0 %v567
      %v569 = vpop.xlane.xlu0 %568
      %v570 = vsub.f32 %v562, %v569
      %v571 = vmul.f32 %v570, 1.442695
      %v572 = vpow.pop %v571
      %v573 = vsel %vm335, %v572, 0.0
      %574 = vadd.xlane.f32.xlu0 %v573
      %v575 = vpop.xlane.xlu0 %574
      %v576 = vrcp.pop %v575
      %v577 = vmul.f32 %v572, %v576
      %v578 = vpack.c.bf16 %v577, %v577
      %579 = vrot.lane.b32.xlu0 %v282, 16
      %v580 = vpop.permute.xlu0 %579
      %v582 = vsel %vm335, %v578, 0
      %v585 = vsel %vm354, %v580, 0
      %587 = vmatprep.subr.bf16.mxu0 0
      %588 = vmatpush1.bf16.msra.mxu0 %v585
      %589 = vmatprep.subr.bf16.mxu0 0
      %590 = vmatpush1.bf16.msra.mxu0 0
      %591 = vmatprep.subr.bf16.mxu0 0
      %592 = vmatpush1.bf16.msra.mxu0 0
      %593 = vmatprep.subr.bf16.mxu0 0
      %594 = vmatpush1.bf16.msra.mxu0 0
      %595 = vmatprep.subr.bf16.mxu0 0
      %596 = vmatpush1.bf16.msra.mxu0 0
      %597 = vmatprep.subr.bf16.mxu0 0
      %598 = vmatpush1.bf16.msra.mxu0 0
      %599 = vmatprep.subr.bf16.mxu0 0
      %600 = vmatpush1.bf16.msra.mxu0 0
      %601 = vmatprep.subr.bf16.mxu0 0
      %602 = vmatpush1.bf16.msra.mxu0 0
      %603 = vmatprep.subr.bf16.mxu0 0
      %604 = vmatpush1.bf16.msra.mxu0 0
      %605 = vmatprep.subr.bf16.mxu0 0
      %606 = vmatpush1.bf16.msra.mxu0 0
      %607 = vmatprep.subr.bf16.mxu0 0
      %608 = vmatpush1.bf16.msra.mxu0 0
      %609 = vmatprep.subr.bf16.mxu0 0
      %610 = vmatpush1.bf16.msra.mxu0 0
      %611 = vmatprep.subr.bf16.mxu0 0
      %612 = vmatpush1.bf16.msra.mxu0 0
      %613 = vmatprep.subr.bf16.mxu0 0
      %614 = vmatpush1.bf16.msra.mxu0 0
      %615 = vmatprep.subr.bf16.mxu0 0
      %616 = vmatpush1.bf16.msra.mxu0 0
      %617 = vmatprep.subr.bf16.mxu0 0
      %618 = vmatpush1.bf16.msra.mxu0 0
      %619 = vmatprep.mubr.bf16.mxu0 0
      %620 = vmatmul.mubr.bf16.gmra.mrb[0].mxu0 %v582
      %v621 = vpop.f32.mrb[0].mxu0
      %v622 = vadd.f32 0.0, %v621
      %v623 = vpop.f32.mrb[0].mxu0
      %v624 = vpop.f32.mrb[0].mxu0
      %v625 = vpop.f32.mrb[0].mxu0
      %626 = vdwg.mxu0
      %627 = vrot.lane.b32.xlu0 %v274, 48
      %v628 = vpop.permute.xlu0 %627
      %v630 = vmul.f32 %v273, %v628
      %v631 = vpack.c.bf16 %v630, %v630
      %633 = vrot.lane.b32.xlu0 %v631, 80
      %v634 = vpop.permute.xlu0 %633
      %v636 = vsel %vm288, %v634, 0
      %638 = vmatprep.subr.bf16.mxu0 0
      %639 = vmatpush1.bf16.xpose.msra.mxu0 %v525
      %640 = vmatprep.subr.bf16.mxu0 0
      %641 = vmatpush1.bf16.xpose.msra.mxu0 0
      %642 = vmatprep.subr.bf16.mxu0 0
      %643 = vmatpush1.bf16.xpose.msra.mxu0 0
      %644 = vmatprep.subr.bf16.mxu0 0
      %645 = vmatpush1.bf16.xpose.msra.mxu0 0
      %646 = vmatprep.subr.bf16.mxu0 0
      %647 = vmatpush1.bf16.xpose.msra.mxu0 0
      %648 = vmatprep.subr.bf16.mxu0 0
      %649 = vmatpush1.bf16.xpose.msra.mxu0 0
      %650 = vmatprep.subr.bf16.mxu0 0
      %651 = vmatpush1.bf16.xpose.msra.mxu0 0
      %652 = vmatprep.subr.bf16.mxu0 0
      %653 = vmatpush1.bf16.xpose.msra.mxu0 0
      %654 = vmatprep.subr.bf16.mxu0 0
      %655 = vmatpush1.bf16.xpose.msra.mxu0 0
      %656 = vmatprep.subr.bf16.mxu0 0
      %657 = vmatpush1.bf16.xpose.msra.mxu0 0
      %658 = vmatprep.subr.bf16.mxu0 0
      %659 = vmatpush1.bf16.xpose.msra.mxu0 0
      %660 = vmatprep.subr.bf16.mxu0 0
      %661 = vmatpush1.bf16.xpose.msra.mxu0 0
      %662 = vmatprep.subr.bf16.mxu0 0
      %663 = vmatpush1.bf16.xpose.msra.mxu0 0
      %664 = vmatprep.subr.bf16.mxu0 0
      %665 = vmatpush1.bf16.xpose.msra.mxu0 0
      %666 = vmatprep.subr.bf16.mxu0 0
      %667 = vmatpush1.bf16.xpose.msra.mxu0 0
      %668 = vmatprep.subr.bf16.mxu0 0
      %669 = vmatpush1.bf16.xpose.msra.mxu0 0
      %670 = vmatprep.mubr.bf16.mxu0 0
      %671 = vmatmul.mubr.bf16.gmra.mrb[0].mxu0 %v636
      %v672 = vpop.f32.mrb[0].mxu0
      %v673 = vadd.f32 0.0, %v672
      %v674 = vpop.f32.mrb[0].mxu0
      %v675 = vpop.f32.mrb[0].mxu0
      %v676 = vpop.f32.mrb[0].mxu0
      %677 = vdwg.mxu0
      %v678 = vsel %vm335, %v673, -inf
      %679 = vmax.xlane.f32.xlu0 %v678
      %v680 = vpop.xlane.xlu0 %679
      %v681 = vsub.f32 %v673, %v680
      %v682 = vmul.f32 %v681, 1.442695
      %v683 = vpow.pop %v682
      %v684 = vsel %vm335, %v683, 0.0
      %685 = vadd.xlane.f32.xlu0 %v684
      %v686 = vpop.xlane.xlu0 %685
      %v687 = vrcp.pop %v686
      %v688 = vmul.f32 %v683, %v687
      %v689 = vpack.c.bf16 %v688, %v688
      %v691 = vsel %vm335, %v689, 0
      %693 = vmatprep.subr.bf16.mxu0 0
      %694 = vmatpush1.bf16.msra.mxu0 %v585
      %695 = vmatprep.subr.bf16.mxu0 0
      %696 = vmatpush1.bf16.msra.mxu0 0
      %697 = vmatprep.subr.bf16.mxu0 0
      %698 = vmatpush1.bf16.msra.mxu0 0
      %699 = vmatprep.subr.bf16.mxu0 0
      %700 = vmatpush1.bf16.msra.mxu0 0
      %701 = vmatprep.subr.bf16.mxu0 0
      %702 = vmatpush1.bf16.msra.mxu0 0
      %703 = vmatprep.subr.bf16.mxu0 0
      %704 = vmatpush1.bf16.msra.mxu0 0
      %705 = vmatprep.subr.bf16.mxu0 0
      %706 = vmatpush1.bf16.msra.mxu0 0
      %707 = vmatprep.subr.bf16.mxu0 0
      %708 = vmatpush1.bf16.msra.mxu0 0
      %709 = vmatprep.subr.bf16.mxu0 0
      %710 = vmatpush1.bf16.msra.mxu0 0
      %711 = vmatprep.subr.bf16.mxu0 0
      %712 = vmatpush1.bf16.msra.mxu0 0
      %713 = vmatprep.subr.bf16.mxu0 0
      %714 = vmatpush1.bf16.msra.mxu0 0
      %715 = vmatprep.subr.bf16.mxu0 0
      %716 = vmatpush1.bf16.msra.mxu0 0
      %717 = vmatprep.subr.bf16.mxu0 0
      %718 = vmatpush1.bf16.msra.mxu0 0
      %719 = vmatprep.subr.bf16.mxu0 0
      %720 = vmatpush1.bf16.msra.mxu0 0
      %721 = vmatprep.subr.bf16.mxu0 0
      %722 = vmatpush1.bf16.msra.mxu0 0
      %723 = vmatprep.subr.bf16.mxu0 0
      %724 = vmatpush1.bf16.msra.mxu0 0
      %725 = vmatprep.mubr.bf16.mxu0 0
      %726 = vmatmul.mubr.bf16.gmra.mrb[0].mxu0 %v691
      %v727 = vpop.f32.mrb[0].mxu0
      %v728 = vadd.f32 0.0, %v727
      %v729 = vpop.f32.mrb[0].mxu0
      %v730 = vpop.f32.mrb[0].mxu0
      %v731 = vpop.f32.mrb[0].mxu0
      %732 = vdwg.mxu0
      %734 = vrot.lane.b32.xlu0 %v500, 16
      %v735 = vpop.permute.xlu0 %734
      %738 = vrot.lane.b32.xlu0 %v622, 32
      %v739 = vpop.permute.xlu0 %738
      %742 = vrot.lane.b32.xlu0 %v728, 48
      %v743 = vpop.permute.xlu0 %742
      %v745 = vsel %vm288, %v393, %v735
      %vm746 = vcmask 261120
      %v747 = vsel %vm746, %v745, %v739
      %vm748 = vcmask 392192
      %v749 = vsel %vm748, %v747, %v743
      %v750 = vpack.c.bf16 %v749, %v749
      %v751 = vld [vmem:[%s3] sm:$0xf]
      %v752 = vld [vmem:[%s3 + $0x4] sm:$0xf]
      %v753 = vld [vmem:[%s3 + $0x8] sm:$0xf]
      %v754 = vld [vmem:[%s3 + $0xc] sm:$0xf]
      %v755 = vld [vmem:[%s3 + $0x10] sm:$0xf]
      %v756 = vld [vmem:[%s3 + $0x14] sm:$0xf]
      %v757 = vld [vmem:[%s3 + $0x18] sm:$0xf]
      %v758 = vld [vmem:[%s3 + $0x1c] sm:$0xf]
      %v759 = vld [vmem:[%s266] sm:$0xff]
      %v768 = vunpack.c.l.b16 %v751
      %v769 = vunpack.c.l.b16 %v752
      %v770 = vunpack.c.l.b16 %v753
      %v771 = vunpack.c.l.b16 %v754
      %v772 = vunpack.c.l.b16 %v755
      %v773 = vunpack.c.l.b16 %v756
      %v774 = vunpack.c.l.b16 %v757
      %v775 = vunpack.c.l.b16 %v758
      %v776 = vpack.c.b16 %v769, %v768
      %v777 = vpack.c.b16 %v771, %v770
      %v778 = vpack.c.b16 %v773, %v772
      %v779 = vpack.c.b16 %v775, %v774
      %vm784 = vcmask 523264
      %v786 = vsel %vm784, %v750, 0
      %788 = vmatprep.subr.bf16.mxu0 0
      %789 = vmatpush1.bf16.msra.mxu0 %v776
      %790 = vmatprep.subr.bf16.mxu0 0
      %791 = vmatpush1.bf16.msra.mxu0 %v777
      %792 = vmatprep.subr.bf16.mxu0 0
      %793 = vmatpush1.bf16.msra.mxu0 %v778
      %794 = vmatprep.subr.bf16.mxu0 0
      %795 = vmatpush1.bf16.msra.mxu0 %v779
      %796 = vmatprep.subr.bf16.mxu0 0
      %797 = vmatpush1.bf16.msra.mxu0 0
      %798 = vmatprep.subr.bf16.mxu0 0
      %799 = vmatpush1.bf16.msra.mxu0 0
      %800 = vmatprep.subr.bf16.mxu0 0
      %801 = vmatpush1.bf16.msra.mxu0 0
      %802 = vmatprep.subr.bf16.mxu0 0
      %803 = vmatpush1.bf16.msra.mxu0 0
      %804 = vmatprep.subr.bf16.mxu0 0
      %805 = vmatpush1.bf16.msra.mxu0 0
      %806 = vmatprep.subr.bf16.mxu0 0
      %807 = vmatpush1.bf16.msra.mxu0 0
      %808 = vmatprep.subr.bf16.mxu0 0
      %809 = vmatpush1.bf16.msra.mxu0 0
      %810 = vmatprep.subr.bf16.mxu0 0
      %811 = vmatpush1.bf16.msra.mxu0 0
      %812 = vmatprep.subr.bf16.mxu0 0
      %813 = vmatpush1.bf16.msra.mxu0 0
      %814 = vmatprep.subr.bf16.mxu0 0
      %815 = vmatpush1.bf16.msra.mxu0 0
      %816 = vmatprep.subr.bf16.mxu0 0
      %817 = vmatpush1.bf16.msra.mxu0 0
      %818 = vmatprep.subr.bf16.mxu0 0
      %819 = vmatpush1.bf16.msra.mxu0 0
      %820 = vmatprep.mubr.bf16.mxu0 0
      %821 = vmatmul.mubr.bf16.gmra.mrb[0].mxu0 %v786
      %v822 = vpop.f32.mrb[0].mxu0
      %v823 = vadd.f32 %v759, %v822
      %v824 = vpop.f32.mrb[0].mxu0
      %v825 = vpop.f32.mrb[0].mxu0
      %v826 = vpop.f32.mrb[0].mxu0
      %827 = vdwg.mxu0
      %828 = vst.msk [vmem:[%s270] sm:$0xff] %vm746, %v823
      %p829 = scmp.lt.s32.totalorder %s16, 1
      %s830 = scalar_select %p829, %s16, 1
      %s831 = smul.addr %s830, 8
      %s832 = scalar_lea.vmem %s5, %s831
      // Predicated region
      $region41: #{paligemma_forward.24} parent=39 // pred_check
        %p833 = pneg %p159
      $region42: #{paligemma_forward.24} parent=39 // pred_check_branch
        %835 = sbr.rel (%p833) target = $region44
      $region43: #{paligemma_forward.24} parent=39 // pred_region
        _
      $region44: #{paligemma_forward.24} parent=39 // pred_fallthru
        _
    $region40: #{paligemma_forward.24} parent=5 // pred_fallthru
      _
    %p836 = scmp.le.s32.totalorder 2, %s11
    // Predicated region
    $region45: #{paligemma_forward.24} parent=5 // pred_check
      %p837 = pneg %p836
    $region46: #{paligemma_forward.24} parent=5 // pred_check_branch
      %839 = sbr.rel (%p837) target = $region48
    $region47: #{paligemma_forward.24} parent=5 // pred_region
      %s840 = ssub.s32 %s11, 2
      // Predicated region
      $region49: #{paligemma_forward.24} parent=47 // pred_check
        %p841 = pneg %p165
      $region50: #{paligemma_forward.24} parent=47 // pred_check_branch
        %843 = sbr.rel (%p841) target = $region52
      $region51: #{paligemma_forward.24} parent=47 // pred_region
        %p844 = scmp.lt.s32.totalorder %s17, 1
        %s845 = scalar_select %p844, %s17, 1
        %s846 = smul.addr %s845, 8
        %s847 = scalar_lea.vmem %s5, %s846
      $region52: #{paligemma_forward.24} parent=47 // pred_fallthru
        _
    $region48: #{paligemma_forward.24} parent=5 // pred_fallthru
      _
  $region6: #{paligemma_forward.24} parent=0 // loop_footer
    %s15 = sadd.s32 1, %s11
  $region7: #{paligemma_forward.24} parent=0 // loop_footer_branch
    %10 = sbr.rel target = $region3
  $region8: #{paligemma_forward.24} parent=0 // loop_exit
    _

</llo_original>
